<compile_context>
chip_gen: v7x
topology: tpu7x:2x2x1
jax: 0.10.0
libtpu: 0.0.40
codegen_flags: <defaults>
</compile_context>

<pallas_src>
import functools

import numpy as np

import jax
import jax.numpy as jnp
from jax.experimental import pallas as pl
from jax.experimental.pallas import tpu as pltpu

RELU_SLOPE = 0.2
# MXU operand / output dtype (f32 accumulation inside the kernel).  Set to
# jnp.float32 for tighter numerics at lower MXU throughput.
MXU_DTYPE = jnp.bfloat16


# ----------------------------------------------------------------------------
# Fused per-stage kernel: skip_conv + ConvTranspose up + conv_1/relu + conv_2/relu
# + identity, all resident in VMEM / vregs.
# ----------------------------------------------------------------------------
def _decoder_stage_kernel(x_ref, br_ref, upw_ref, er_ref, skw_ref, w1u_ref,
                          w1s_ref, w2_ref, wid_ref, vec_ref, msk_ref, out_ref,
                          *, slope):
    f32 = jnp.float32
    mxu = x_ref.dtype

    vv = vec_ref[...]                  # (5, Lout) f32: up_b, skip_b, b1, b2, bid
    m = msk_ref[...]                   # (Mout, 2) f32: per-image row-boundary masks
    top = m[:, 0:1]                    # zero where the row above crosses an image start
    bot = m[:, 1:2]                    # zero where the row below crosses an image end

    def lrelu(v):
        return jnp.where(v >= 0, v, slope * v)

    def conv3(act32, w3_ref):
        """3x3 'same' conv in planar layout (rows=(b,h), lanes=w*C).

        Row taps = static sublane slices (zero-padded, boundary-masked);
        width taps are folded into the banded weight matrices w3_ref[tap]."""
        zr = jnp.zeros_like(act32[:1])
        prev_r = jnp.concatenate([zr, act32[:-1]], axis=0) * top    # act[r-1]
        next_r = jnp.concatenate([act32[1:], zr], axis=0) * bot     # act[r+1]
        acc = jnp.dot(prev_r.astype(mxu), w3_ref[0], preferred_element_type=f32)
        acc = acc + jnp.dot(act32.astype(mxu), w3_ref[1], preferred_element_type=f32)
        acc = acc + jnp.dot(next_r.astype(mxu), w3_ref[2], preferred_element_type=f32)
        return acc

    # ---- up = ConvTranspose2d(x, k=2, s=2) + bias ---------------------------
    xb = x_ref[...]                                               # (Min, Lx)   bf16
    u0 = jnp.dot(xb, upw_ref[0], preferred_element_type=f32)      # rows 2h
    u1 = jnp.dot(xb, upw_ref[1], preferred_element_type=f32)      # rows 2h+1
    up = (jnp.dot(er_ref[0], u0, preferred_element_type=f32)      # exact 0/1 row
          + jnp.dot(er_ref[1], u1, preferred_element_type=f32)    # interleave
          + vv[0:1, :])                                           # (Mout, Lout) f32

    # ---- skip = skip_conv(bridge): 3x3 + bias --------------------------------
    skip = conv3(br_ref[...].astype(f32), skw_ref) + vv[1:2, :]

    # ---- conv_1 on concat([up, skip]) (weights split) + LeakyReLU ------------
    r1 = lrelu(conv3(up, w1u_ref) + conv3(skip, w1s_ref) + vv[2:3, :])

    # ---- conv_2 + LeakyReLU ---------------------------------------------------
    r2 = lrelu(conv3(r1, w2_ref) + vv[3:4, :])

    # ---- identity 1x1 on concat + residual add --------------------------------
    idn = (jnp.dot(up.astype(mxu), wid_ref[0], preferred_element_type=f32)
           + jnp.dot(skip.astype(mxu), wid_ref[1], preferred_element_type=f32)
           + vv[4:5, :])

    out_ref[...] = (r2 + idn).astype(out_ref.dtype)               # lane-dense store


# ----------------------------------------------------------------------------
# Host-side (numpy) constant builders — run ONCE at setup, not in the jit path.
# ----------------------------------------------------------------------------
def _banded_conv_weight(w_oihw, w_in, w_out, stride, pad):
    """(Co,Ci,kh,kw) -> (kh, w_in*Ci, w_out*Co) banded matrices for planar convs."""
    w = np.asarray(w_oihw, np.float32)
    co, ci, kh, kw = w.shape
    out = np.zeros((kh, w_in * ci, w_out * co), np.float32)
    for dh in range(kh):
        for dw in range(kw):
            pos = np.zeros((w_in, w_out), np.float32)
            for wo in range(w_out):
                wi = stride * wo - pad + dw
                if 0 <= wi < w_in:
                    pos[wi, wo] = 1.0
            out[dh] += np.kron(pos, w[:, :, dh, dw].T)
    return out


def _banded_convT_weight(w_iohw, w_in):
    """(Ci,Co,2,2) ConvTranspose (stride 2) -> (2, w_in*Ci, 2*w_in*Co) banded mats."""
    w = np.asarray(w_iohw, np.float32)
    ci, co, kh, kw = w.shape
    w_out = 2 * w_in
    out = np.zeros((kh, w_in * ci, w_out * co), np.float32)
    for dh in range(kh):
        for dw in range(kw):
            pos = np.zeros((w_in, w_out), np.float32)
            for wi in range(w_in):
                pos[wi, 2 * wi + dw] = 1.0
            out[dh] += np.kron(pos, w[:, :, dh, dw])
    return out


def _row_expand(bblk, h_in):
    """(2, bblk*2*h_in, bblk*h_in) exact 0/1 mats: row 2h+dh <- input row h."""
    h_out = 2 * h_in
    e = np.zeros((2, bblk * h_out, bblk * h_in), np.float32)
    for b in range(bblk):
        for h in range(h_in):
            for dh in range(2):
                e[dh, b * h_out + 2 * h + dh, b * h_in + h] = 1.0
    return e


def _row_masks(bblk, h):
    """(bblk*h, 2) masks zeroing row taps that would cross folded-image boundaries."""
    rows = bblk * h
    m = np.ones((rows, 2), np.float32)
    r = np.arange(rows)
    m[r % h == 0, 0] = 0.0
    m[r % h == h - 1, 1] = 0.0
    return m


def build_stage_operands(p, h_in, w_in, batch_block, mxu_dtype=MXU_DTYPE):
    """Assemble all per-stage kernel constants (numpy, once)."""
    in_size, out_size = p["up_w"].shape[0], p["up_w"].shape[1]
    h_out, w_out = 2 * h_in, 2 * w_in

    w1 = np.asarray(p["w1"], np.float32)
    wid = np.asarray(p["wid"], np.float32)

    upw = _banded_convT_weight(p["up_w"], w_in)                      # (2, Win*Cin, Wout*Cout)
    skw = _banded_conv_weight(p["skip_w"], w_out, w_out, 1, 1)       # (3, Wout*Cin, Wout*Cout)
    w1u = _banded_conv_weight(w1[:, :out_size], w_out, w_out, 1, 1)  # (3, Lout, Lout)
    w1s = _banded_conv_weight(w1[:, out_size:], w_out, w_out, 1, 1)
    w2 = _banded_conv_weight(p["w2"], w_out, w_out, 1, 1)
    wid_u = _banded_conv_weight(wid[:, :out_size], w_out, w_out, 1, 0)[0]
    wid_s = _banded_conv_weight(wid[:, out_size:], w_out, w_out, 1, 0)[0]

    vecs = np.stack([
        np.tile(np.asarray(p["up_b"], np.float32), w_out),
        np.tile(np.asarray(p["skip_b"], np.float32), w_out),
        np.tile(np.asarray(p["b1"], np.float32), w_out),
        np.tile(np.asarray(p["b2"], np.float32), w_out),
        np.tile(np.asarray(p["bid"], np.float32), w_out),
    ]).astype(np.float32)                                            # (5, Wout*Cout)

    cast = lambda a: jnp.asarray(a, mxu_dtype)
    return {
        "upw": cast(upw), "skw": cast(skw), "w1u": cast(w1u), "w1s": cast(w1s),
        "w2": cast(w2), "wid": cast(np.stack([wid_u, wid_s])),
        "e": jnp.asarray(_row_expand(batch_block, h_in), jnp.float32),
        "masks": jnp.asarray(_row_masks(batch_block, h_out), jnp.float32),
        "vecs": jnp.asarray(vecs, jnp.float32),
    }


# ----------------------------------------------------------------------------
# Per-stage wrapper (UNetUpBlock + skip_conv) around one pallas_call.
# ----------------------------------------------------------------------------
def decoder_stage_forward(x, bridge, ops, *, slope=RELU_SLOPE, batch_block=None):
    B, Cin, Hin, Win = x.shape
    Bb, Cbr, Hout, Wout = bridge.shape
    assert Bb == B and Hout == 2 * Hin and Wout == 2 * Win and Cbr == Cin
    Cout = ops["vecs"].shape[1] // Wout
    Lx, Lb, Lout = Win * Cin, Wout * Cbr, Wout * Cout

    Bblk = B if batch_block is None else batch_block
    assert B % Bblk == 0
    nblk = B // Bblk
    Min, Mout = Bblk * Hin, Bblk * Hout
    assert ops["masks"].shape[0] == Mout and ops["e"].shape[1] == Mout

    # planar lane-dense activations (rows=(b,h), lanes=w*C), bf16 at the boundary
    x_pl = jnp.transpose(x, (0, 2, 3, 1)).reshape(B * Hin, Lx).astype(MXU_DTYPE)
    br_pl = jnp.transpose(bridge, (0, 2, 3, 1)).reshape(B * Hout, Lb).astype(MXU_DTYPE)

    # vmem limit derived from the actual (double-buffered) per-block footprint
    itm = np.dtype(MXU_DTYPE).itemsize
    ops_bytes = sum(int(np.prod(a.shape)) * np.dtype(a.dtype).itemsize
                    for a in ops.values())
    io_bytes = (Min * Lx + Mout * Lb + Mout * Lout) * itm
    vmem_limit = int(min(100 * 2**20, max(16 * 2**20,
                                          2 * (ops_bytes + io_bytes) + 4 * 2**20)))

    kernel = functools.partial(_decoder_stage_kernel, slope=slope)

    out_pl = pl.pallas_call(
        kernel,
        out_shape=jax.ShapeDtypeStruct((B * Hout, Lout), MXU_DTYPE),
        grid=(nblk,),
        in_specs=[
            pl.BlockSpec((Min, Lx), lambda b: (b, 0)),
            pl.BlockSpec((Mout, Lb), lambda b: (b, 0)),
            pl.BlockSpec(ops["upw"].shape, lambda b: (0, 0, 0)),
            pl.BlockSpec(ops["e"].shape, lambda b: (0, 0, 0)),
            pl.BlockSpec(ops["skw"].shape, lambda b: (0, 0, 0)),
            pl.BlockSpec(ops["w1u"].shape, lambda b: (0, 0, 0)),
            pl.BlockSpec(ops["w1s"].shape, lambda b: (0, 0, 0)),
            pl.BlockSpec(ops["w2"].shape, lambda b: (0, 0, 0)),
            pl.BlockSpec(ops["wid"].shape, lambda b: (0, 0, 0)),
            pl.BlockSpec(ops["vecs"].shape, lambda b: (0, 0)),
            pl.BlockSpec(ops["masks"].shape, lambda b: (0, 0)),
        ],
        out_specs=pl.BlockSpec((Mout, Lout), lambda b: (b, 0)),
        compiler_params=pltpu.CompilerParams(
            # v7x note: set batch_block=B//2 (grid=(2,)) + CORE_PARALLEL to use both
            # TensorCores; default collapses to grid=(1,) (best on v5e/v6e).
            dimension_semantics=("parallel",),
            vmem_limit_bytes=vmem_limit),
    )(x_pl, br_pl, ops["upw"], ops["e"], ops["skw"], ops["w1u"], ops["w1s"],
      ops["w2"], ops["wid"], ops["vecs"], ops["masks"])

    out = jnp.transpose(out_pl.reshape(B, Hout, Wout, Cout), (0, 3, 1, 2))
    return out.astype(jnp.float32)


def decoder_forward(x, bridges, stage_ops, *, slope=RELU_SLOPE, batch_block=None):
    """Decoder.forward: loops UNetUpBlock stages, returns the list `res`."""
    res = []
    cur = x
    for i, ops in enumerate(stage_ops):
        cur = decoder_stage_forward(cur, bridges[-i - 1], ops,
                                    slope=slope, batch_block=batch_block)
        res.append(cur)
    return res


# ----------------------------------------------------------------------------
# Parameter init (mirrors the nn.Module structure; random weights)
# ----------------------------------------------------------------------------
def init_decoder_params(key, n_feat, scale_unetfeats, depth):
    params = []
    s = 0.1
    for i in range(depth - 1):
        in_size = n_feat + scale_unetfeats * (depth - i - 1)
        out_size = n_feat + scale_unetfeats * (depth - i - 2)
        keys = jax.random.split(key, 11)
        key = keys[0]
        nrm = lambda k, shp: s * jax.random.normal(k, shp, jnp.float32)
        params.append({
            "up_w": nrm(keys[1], (in_size, out_size, 2, 2)),      # ConvTranspose2d (Ci,Co,2,2)
            "up_b": nrm(keys[2], (out_size,)),
            "skip_w": nrm(keys[3], (out_size, in_size, 3, 3)),
            "skip_b": nrm(keys[4], (out_size,)),
            "w1": nrm(keys[5], (out_size, 2 * out_size, 3, 3)),
            "b1": nrm(keys[6], (out_size,)),
            "w2": nrm(keys[7], (out_size, out_size, 3, 3)),
            "b2": nrm(keys[8], (out_size,)),
            "wid": nrm(keys[9], (out_size, 2 * out_size, 1, 1)),
            "bid": nrm(keys[10], (out_size,)),
        })
    return params


# ----------------------------------------------------------------------------
# Plain-JAX reference (mirrors the PyTorch semantics) for correctness checking
# ----------------------------------------------------------------------------
def _conv2d(x, w, b=None, stride=1, pad=0):
    y = jax.lax.conv_general_dilated(
        x, w, (stride, stride), [(pad, pad), (pad, pad)],
        dimension_numbers=("NCHW", "OIHW", "NCHW"))
    if b is not None:
        y = y + b[None, :, None, None]
    return y


def _conv_transpose_2x2(x, w, b):
    B, _, H, W = x.shape
    co = w.shape[1]
    y = jnp.einsum("bchw,cokl->bohkwl", x, w).reshape(B, co, 2 * H, 2 * W)
    return y + b[None, :, None, None]


def reference_decoder(x, bridges, params, slope=RELU_SLOPE):
    lrelu = lambda v: jnp.where(v >= 0, v, slope * v)
    res = []
    for i, p in enumerate(params):
        skip = _conv2d(bridges[-i - 1], p["skip_w"], p["skip_b"], pad=1)
        up = _conv_transpose_2x2(x, p["up_w"], p["up_b"])
        cat = jnp.concatenate([up, skip], axis=1)
        h = lrelu(_conv2d(cat, p["w1"], p["b1"], pad=1))
        h = lrelu(_conv2d(h, p["w2"], p["b2"], pad=1))
        out = h + _conv2d(cat, p["wid"], p["bid"], pad=0)
        x = out
        res.append(out)
    return res


# ----------------------------------------------------------------------------
if __name__ == "__main__":
    N_FEAT, SCALE, DEPTH = 4, 4, 3          # 2 decoder stages
    B = 2

    key = jax.random.PRNGKey(0)
    kx, kb0, kb1, kp = jax.random.split(key, 4)

    # Decoder input at the coarsest scale + encoder bridges (deepest last).
    x = jax.random.normal(kx, (B, N_FEAT + SCALE * (DEPTH - 1), 8, 8), jnp.float32)
    bridges = (
        jax.random.normal(kb0, (B, N_FEAT + SCALE * 1, 32, 32), jnp.float32),  # stage 1
        jax.random.normal(kb1, (B, N_FEAT + SCALE * 2, 16, 16), jnp.float32),  # stage 0
    )
    params = init_decoder_params(kp, N_FEAT, SCALE, DEPTH)

    # Host-side constant assembly (hoisted out of the jitted per-call path).
    stage_ops = []
    h, w = x.shape[2], x.shape[3]
    for p in params:
        stage_ops.append(build_stage_operands(p, h, w, batch_block=B))
        h, w = 2 * h, 2 * w
    stage_ops = tuple(stage_ops)

    fwd = jax.jit(decoder_forward)
    res = fwd(x, bridges, stage_ops)
    jax.block_until_ready(res)

    ref = reference_decoder(x, bridges, params)
    assert len(res) == len(ref) == DEPTH - 1
    assert res[0].shape == (B, N_FEAT + SCALE, 16, 16)
    assert res[1].shape == (B, N_FEAT, 32, 32)
    # bf16 MXU operands / bf16 outputs (f32 accumulation) vs. f32 XLA reference.
    tol = 5e-2 if MXU_DTYPE == jnp.bfloat16 else 1e-3
    for r, rr in zip(res, ref):
        err = float(jnp.max(jnp.abs(r - rr)))
        assert jnp.allclose(r, rr, atol=tol, rtol=tol), err

    print("KERNEL_OK")
</pallas_src>

<mosaic_0001>
module attributes {stable_mosaic.version = 11 : i64} {
  func.func @_decoder_stage_kernel(%arg0: i32, %arg1: memref<16x96xbf16, #tpu.memory_space<vmem>>, %arg2: memref<32x192xbf16, #tpu.memory_space<vmem>>, %arg3: memref<2x96x128xbf16, #tpu.memory_space<vmem>>, %arg4: memref<2x32x16xf32, #tpu.memory_space<vmem>>, %arg5: memref<3x192x128xbf16, #tpu.memory_space<vmem>>, %arg6: memref<3x128x128xbf16, #tpu.memory_space<vmem>>, %arg7: memref<3x128x128xbf16, #tpu.memory_space<vmem>>, %arg8: memref<3x128x128xbf16, #tpu.memory_space<vmem>>, %arg9: memref<2x128x128xbf16, #tpu.memory_space<vmem>>, %arg10: memref<5x128xf32, #tpu.memory_space<vmem>>, %arg11: memref<32x2xf32, #tpu.memory_space<vmem>>, %arg12: memref<32x128xbf16, #tpu.memory_space<vmem>>) attributes {dimension_semantics = [#tpu.dimension_semantics<parallel>], iteration_bounds = array<i64: 1>, scalar_prefetch = 0 : i64, scratch_operands = 0 : i64, tpu.core_type = #tpu.core_type<tc>, window_params = [{transform_indices = @transform_0, window_bounds = array<i64: 16, 96>}, {transform_indices = @transform_1, window_bounds = array<i64: 32, 192>}, {pipeline_mode = #tpu.pipeline_mode<synchronous>, transform_indices = @transform_2, window_bounds = array<i64: 2, 96, 128>}, {pipeline_mode = #tpu.pipeline_mode<synchronous>, transform_indices = @transform_3, window_bounds = array<i64: 2, 32, 16>}, {pipeline_mode = #tpu.pipeline_mode<synchronous>, transform_indices = @transform_4, window_bounds = array<i64: 3, 192, 128>}, {pipeline_mode = #tpu.pipeline_mode<synchronous>, transform_indices = @transform_5, window_bounds = array<i64: 3, 128, 128>}, {pipeline_mode = #tpu.pipeline_mode<synchronous>, transform_indices = @transform_6, window_bounds = array<i64: 3, 128, 128>}, {pipeline_mode = #tpu.pipeline_mode<synchronous>, transform_indices = @transform_7, window_bounds = array<i64: 3, 128, 128>}, {pipeline_mode = #tpu.pipeline_mode<synchronous>, transform_indices = @transform_8, window_bounds = array<i64: 2, 128, 128>}, {pipeline_mode = #tpu.pipeline_mode<synchronous>, transform_indices = @transform_9, window_bounds = array<i64: 5, 128>}, {pipeline_mode = #tpu.pipeline_mode<synchronous>, transform_indices = @transform_10, window_bounds = array<i64: 32, 2>}, {transform_indices = @transform_11, window_bounds = array<i64: 32, 128>}]} {
    %c0 = arith.constant 0 : index
    %c0_0 = arith.constant 0 : index
    %0 = vector.load %arg10[%c0, %c0_0] : memref<5x128xf32, #tpu.memory_space<vmem>>, vector<5x128xf32>
    %c0_1 = arith.constant 0 : index
    %c0_2 = arith.constant 0 : index
    %1 = vector.load %arg11[%c0_1, %c0_2] : memref<32x2xf32, #tpu.memory_space<vmem>>, vector<32x2xf32>
    %2 = vector.extract_strided_slice %1 {offsets = [0, 0], sizes = [32, 1], strides = [1, 1]} : vector<32x2xf32> to vector<32x1xf32>
    %3 = vector.extract_strided_slice %1 {offsets = [0, 1], sizes = [32, 1], strides = [1, 1]} : vector<32x2xf32> to vector<32x1xf32>
    %c0_3 = arith.constant 0 : index
    %c0_4 = arith.constant 0 : index
    %4 = vector.load %arg1[%c0_3, %c0_4] : memref<16x96xbf16, #tpu.memory_space<vmem>>, vector<16x96xbf16>
    %c0_5 = arith.constant 0 : index
    %c0_6 = arith.constant 0 : index
    %c0_7 = arith.constant 0 : index
    %5 = vector.load %arg3[%c0_5, %c0_6, %c0_7] : memref<2x96x128xbf16, #tpu.memory_space<vmem>>, vector<1x96x128xbf16>
    %6 = vector.shape_cast %5 : vector<1x96x128xbf16> to vector<96x128xbf16>
    %cst = arith.constant dense<0.000000e+00> : vector<16x128xf32>
    %7 = tpu.matmul %4, %6, %cst {dimension_numbers = #tpu.dot_dimension_numbers<[1], [0], [0], [1], [0, 0, 1, 1], [], []>} : vector<16x96xbf16>, vector<96x128xbf16>, vector<16x128xf32> -> vector<16x128xf32>
    %c1 = arith.constant 1 : index
    %c0_8 = arith.constant 0 : index
    %c0_9 = arith.constant 0 : index
    %8 = vector.load %arg3[%c1, %c0_8, %c0_9] : memref<2x96x128xbf16, #tpu.memory_space<vmem>>, vector<1x96x128xbf16>
    %9 = vector.shape_cast %8 : vector<1x96x128xbf16> to vector<96x128xbf16>
    %cst_10 = arith.constant dense<0.000000e+00> : vector<16x128xf32>
    %10 = tpu.matmul %4, %9, %cst_10 {dimension_numbers = #tpu.dot_dimension_numbers<[1], [0], [0], [1], [0, 0, 1, 1], [], []>} : vector<16x96xbf16>, vector<96x128xbf16>, vector<16x128xf32> -> vector<16x128xf32>
    %c0_11 = arith.constant 0 : index
    %c0_12 = arith.constant 0 : index
    %c0_13 = arith.constant 0 : index
    %11 = vector.load %arg4[%c0_11, %c0_12, %c0_13] : memref<2x32x16xf32, #tpu.memory_space<vmem>>, vector<1x32x16xf32>
    %12 = vector.shape_cast %11 : vector<1x32x16xf32> to vector<32x16xf32>
    %cst_14 = arith.constant dense<0.000000e+00> : vector<32x128xf32>
    %13 = tpu.matmul %12, %7, %cst_14 {dimension_numbers = #tpu.dot_dimension_numbers<[1], [0], [0], [1], [0, 0, 1, 1], [], []>} : vector<32x16xf32>, vector<16x128xf32>, vector<32x128xf32> -> vector<32x128xf32>
    %c1_15 = arith.constant 1 : index
    %c0_16 = arith.constant 0 : index
    %c0_17 = arith.constant 0 : index
    %14 = vector.load %arg4[%c1_15, %c0_16, %c0_17] : memref<2x32x16xf32, #tpu.memory_space<vmem>>, vector<1x32x16xf32>
    %15 = vector.shape_cast %14 : vector<1x32x16xf32> to vector<32x16xf32>
    %cst_18 = arith.constant dense<0.000000e+00> : vector<32x128xf32>
    %16 = tpu.matmul %15, %10, %cst_18 {dimension_numbers = #tpu.dot_dimension_numbers<[1], [0], [0], [1], [0, 0, 1, 1], [], []>} : vector<32x16xf32>, vector<16x128xf32>, vector<32x128xf32> -> vector<32x128xf32>
    %17 = arith.addf %13, %16 : vector<32x128xf32>
    %18 = vector.extract_strided_slice %0 {offsets = [0, 0], sizes = [1, 128], strides = [1, 1]} : vector<5x128xf32> to vector<1x128xf32>
    %19 = vector.broadcast %18 : vector<1x128xf32> to vector<32x128xf32>
    %20 = arith.addf %17, %19 : vector<32x128xf32>
    %c0_19 = arith.constant 0 : index
    %c0_20 = arith.constant 0 : index
    %21 = vector.load %arg2[%c0_19, %c0_20] : memref<32x192xbf16, #tpu.memory_space<vmem>>, vector<32x192xbf16>
    %22 = arith.extf %21 : vector<32x192xbf16> to vector<32x192xf32>
    %cst_21 = arith.constant 0.000000e+00 : f32
    %23 = vector.broadcast %cst_21 : f32 to vector<1x192xf32>
    %24 = vector.extract_strided_slice %22 {offsets = [0, 0], sizes = [31, 192], strides = [1, 1]} : vector<32x192xf32> to vector<31x192xf32>
    %25 = tpu.concatenate %23, %24 in 0 : vector<1x192xf32>, vector<31x192xf32> -> vector<32x192xf32>
    %26 = vector.broadcast %2 : vector<32x1xf32> to vector<32x192xf32>
    %27 = arith.mulf %25, %26 : vector<32x192xf32>
    %28 = vector.extract_strided_slice %22 {offsets = [1, 0], sizes = [31, 192], strides = [1, 1]} : vector<32x192xf32> to vector<31x192xf32>
    %29 = tpu.concatenate %28, %23 in 0 : vector<31x192xf32>, vector<1x192xf32> -> vector<32x192xf32>
    %30 = vector.broadcast %3 : vector<32x1xf32> to vector<32x192xf32>
    %31 = arith.mulf %29, %30 : vector<32x192xf32>
    %32 = arith.truncf %27 : vector<32x192xf32> to vector<32x192xbf16>
    %c0_22 = arith.constant 0 : index
    %c0_23 = arith.constant 0 : index
    %c0_24 = arith.constant 0 : index
    %33 = vector.load %arg5[%c0_22, %c0_23, %c0_24] : memref<3x192x128xbf16, #tpu.memory_space<vmem>>, vector<1x192x128xbf16>
    %34 = vector.shape_cast %33 : vector<1x192x128xbf16> to vector<192x128xbf16>
    %cst_25 = arith.constant dense<0.000000e+00> : vector<32x128xf32>
    %35 = tpu.matmul %32, %34, %cst_25 {dimension_numbers = #tpu.dot_dimension_numbers<[1], [0], [0], [1], [0, 0, 1, 1], [], []>} : vector<32x192xbf16>, vector<192x128xbf16>, vector<32x128xf32> -> vector<32x128xf32>
    %36 = arith.truncf %22 : vector<32x192xf32> to vector<32x192xbf16>
    %c1_26 = arith.constant 1 : index
    %c0_27 = arith.constant 0 : index
    %c0_28 = arith.constant 0 : index
    %37 = vector.load %arg5[%c1_26, %c0_27, %c0_28] : memref<3x192x128xbf16, #tpu.memory_space<vmem>>, vector<1x192x128xbf16>
    %38 = vector.shape_cast %37 : vector<1x192x128xbf16> to vector<192x128xbf16>
    %cst_29 = arith.constant dense<0.000000e+00> : vector<32x128xf32>
    %39 = tpu.matmul %36, %38, %cst_29 {dimension_numbers = #tpu.dot_dimension_numbers<[1], [0], [0], [1], [0, 0, 1, 1], [], []>} : vector<32x192xbf16>, vector<192x128xbf16>, vector<32x128xf32> -> vector<32x128xf32>
    %40 = arith.addf %35, %39 : vector<32x128xf32>
    %41 = arith.truncf %31 : vector<32x192xf32> to vector<32x192xbf16>
    %c2 = arith.constant 2 : index
    %c0_30 = arith.constant 0 : index
    %c0_31 = arith.constant 0 : index
    %42 = vector.load %arg5[%c2, %c0_30, %c0_31] : memref<3x192x128xbf16, #tpu.memory_space<vmem>>, vector<1x192x128xbf16>
    %43 = vector.shape_cast %42 : vector<1x192x128xbf16> to vector<192x128xbf16>
    %cst_32 = arith.constant dense<0.000000e+00> : vector<32x128xf32>
    %44 = tpu.matmul %41, %43, %cst_32 {dimension_numbers = #tpu.dot_dimension_numbers<[1], [0], [0], [1], [0, 0, 1, 1], [], []>} : vector<32x192xbf16>, vector<192x128xbf16>, vector<32x128xf32> -> vector<32x128xf32>
    %45 = arith.addf %40, %44 : vector<32x128xf32>
    %46 = vector.extract_strided_slice %0 {offsets = [1, 0], sizes = [1, 128], strides = [1, 1]} : vector<5x128xf32> to vector<1x128xf32>
    %47 = vector.broadcast %46 : vector<1x128xf32> to vector<32x128xf32>
    %48 = arith.addf %45, %47 : vector<32x128xf32>
    %cst_33 = arith.constant 0.000000e+00 : f32
    %49 = vector.broadcast %cst_33 : f32 to vector<1x128xf32>
    %50 = vector.extract_strided_slice %20 {offsets = [0, 0], sizes = [31, 128], strides = [1, 1]} : vector<32x128xf32> to vector<31x128xf32>
    %51 = tpu.concatenate %49, %50 in 0 : vector<1x128xf32>, vector<31x128xf32> -> vector<32x128xf32>
    %52 = vector.broadcast %2 : vector<32x1xf32> to vector<32x128xf32>
    %53 = arith.mulf %51, %52 : vector<32x128xf32>
    %54 = vector.extract_strided_slice %20 {offsets = [1, 0], sizes = [31, 128], strides = [1, 1]} : vector<32x128xf32> to vector<31x128xf32>
    %55 = tpu.concatenate %54, %49 in 0 : vector<31x128xf32>, vector<1x128xf32> -> vector<32x128xf32>
    %56 = vector.broadcast %3 : vector<32x1xf32> to vector<32x128xf32>
    %57 = arith.mulf %55, %56 : vector<32x128xf32>
    %58 = arith.truncf %53 : vector<32x128xf32> to vector<32x128xbf16>
    %c0_34 = arith.constant 0 : index
    %c0_35 = arith.constant 0 : index
    %c0_36 = arith.constant 0 : index
    %59 = vector.load %arg6[%c0_34, %c0_35, %c0_36] : memref<3x128x128xbf16, #tpu.memory_space<vmem>>, vector<1x128x128xbf16>
    %60 = vector.shape_cast %59 : vector<1x128x128xbf16> to vector<128x128xbf16>
    %cst_37 = arith.constant dense<0.000000e+00> : vector<32x128xf32>
    %61 = tpu.matmul %58, %60, %cst_37 {dimension_numbers = #tpu.dot_dimension_numbers<[1], [0], [0], [1], [0, 0, 1, 1], [], []>} : vector<32x128xbf16>, vector<128x128xbf16>, vector<32x128xf32> -> vector<32x128xf32>
    %62 = arith.truncf %20 : vector<32x128xf32> to vector<32x128xbf16>
    %c1_38 = arith.constant 1 : index
    %c0_39 = arith.constant 0 : index
    %c0_40 = arith.constant 0 : index
    %63 = vector.load %arg6[%c1_38, %c0_39, %c0_40] : memref<3x128x128xbf16, #tpu.memory_space<vmem>>, vector<1x128x128xbf16>
    %64 = vector.shape_cast %63 : vector<1x128x128xbf16> to vector<128x128xbf16>
    %cst_41 = arith.constant dense<0.000000e+00> : vector<32x128xf32>
    %65 = tpu.matmul %62, %64, %cst_41 {dimension_numbers = #tpu.dot_dimension_numbers<[1], [0], [0], [1], [0, 0, 1, 1], [], []>} : vector<32x128xbf16>, vector<128x128xbf16>, vector<32x128xf32> -> vector<32x128xf32>
    %66 = arith.addf %61, %65 : vector<32x128xf32>
    %67 = arith.truncf %57 : vector<32x128xf32> to vector<32x128xbf16>
    %c2_42 = arith.constant 2 : index
    %c0_43 = arith.constant 0 : index
    %c0_44 = arith.constant 0 : index
    %68 = vector.load %arg6[%c2_42, %c0_43, %c0_44] : memref<3x128x128xbf16, #tpu.memory_space<vmem>>, vector<1x128x128xbf16>
    %69 = vector.shape_cast %68 : vector<1x128x128xbf16> to vector<128x128xbf16>
    %cst_45 = arith.constant dense<0.000000e+00> : vector<32x128xf32>
    %70 = tpu.matmul %67, %69, %cst_45 {dimension_numbers = #tpu.dot_dimension_numbers<[1], [0], [0], [1], [0, 0, 1, 1], [], []>} : vector<32x128xbf16>, vector<128x128xbf16>, vector<32x128xf32> -> vector<32x128xf32>
    %71 = arith.addf %66, %70 : vector<32x128xf32>
    %cst_46 = arith.constant 0.000000e+00 : f32
    %72 = vector.broadcast %cst_46 : f32 to vector<1x128xf32>
    %73 = vector.extract_strided_slice %48 {offsets = [0, 0], sizes = [31, 128], strides = [1, 1]} : vector<32x128xf32> to vector<31x128xf32>
    %74 = tpu.concatenate %72, %73 in 0 : vector<1x128xf32>, vector<31x128xf32> -> vector<32x128xf32>
    %75 = vector.broadcast %2 : vector<32x1xf32> to vector<32x128xf32>
    %76 = arith.mulf %74, %75 : vector<32x128xf32>
    %77 = vector.extract_strided_slice %48 {offsets = [1, 0], sizes = [31, 128], strides = [1, 1]} : vector<32x128xf32> to vector<31x128xf32>
    %78 = tpu.concatenate %77, %72 in 0 : vector<31x128xf32>, vector<1x128xf32> -> vector<32x128xf32>
    %79 = vector.broadcast %3 : vector<32x1xf32> to vector<32x128xf32>
    %80 = arith.mulf %78, %79 : vector<32x128xf32>
    %81 = arith.truncf %76 : vector<32x128xf32> to vector<32x128xbf16>
    %c0_47 = arith.constant 0 : index
    %c0_48 = arith.constant 0 : index
    %c0_49 = arith.constant 0 : index
    %82 = vector.load %arg7[%c0_47, %c0_48, %c0_49] : memref<3x128x128xbf16, #tpu.memory_space<vmem>>, vector<1x128x128xbf16>
    %83 = vector.shape_cast %82 : vector<1x128x128xbf16> to vector<128x128xbf16>
    %cst_50 = arith.constant dense<0.000000e+00> : vector<32x128xf32>
    %84 = tpu.matmul %81, %83, %cst_50 {dimension_numbers = #tpu.dot_dimension_numbers<[1], [0], [0], [1], [0, 0, 1, 1], [], []>} : vector<32x128xbf16>, vector<128x128xbf16>, vector<32x128xf32> -> vector<32x128xf32>
    %85 = arith.truncf %48 : vector<32x128xf32> to vector<32x128xbf16>
    %c1_51 = arith.constant 1 : index
    %c0_52 = arith.constant 0 : index
    %c0_53 = arith.constant 0 : index
    %86 = vector.load %arg7[%c1_51, %c0_52, %c0_53] : memref<3x128x128xbf16, #tpu.memory_space<vmem>>, vector<1x128x128xbf16>
    %87 = vector.shape_cast %86 : vector<1x128x128xbf16> to vector<128x128xbf16>
    %cst_54 = arith.constant dense<0.000000e+00> : vector<32x128xf32>
    %88 = tpu.matmul %85, %87, %cst_54 {dimension_numbers = #tpu.dot_dimension_numbers<[1], [0], [0], [1], [0, 0, 1, 1], [], []>} : vector<32x128xbf16>, vector<128x128xbf16>, vector<32x128xf32> -> vector<32x128xf32>
    %89 = arith.addf %84, %88 : vector<32x128xf32>
    %90 = arith.truncf %80 : vector<32x128xf32> to vector<32x128xbf16>
    %c2_55 = arith.constant 2 : index
    %c0_56 = arith.constant 0 : index
    %c0_57 = arith.constant 0 : index
    %91 = vector.load %arg7[%c2_55, %c0_56, %c0_57] : memref<3x128x128xbf16, #tpu.memory_space<vmem>>, vector<1x128x128xbf16>
    %92 = vector.shape_cast %91 : vector<1x128x128xbf16> to vector<128x128xbf16>
    %cst_58 = arith.constant dense<0.000000e+00> : vector<32x128xf32>
    %93 = tpu.matmul %90, %92, %cst_58 {dimension_numbers = #tpu.dot_dimension_numbers<[1], [0], [0], [1], [0, 0, 1, 1], [], []>} : vector<32x128xbf16>, vector<128x128xbf16>, vector<32x128xf32> -> vector<32x128xf32>
    %94 = arith.addf %89, %93 : vector<32x128xf32>
    %95 = arith.addf %71, %94 : vector<32x128xf32>
    %96 = vector.extract_strided_slice %0 {offsets = [2, 0], sizes = [1, 128], strides = [1, 1]} : vector<5x128xf32> to vector<1x128xf32>
    %97 = vector.broadcast %96 : vector<1x128xf32> to vector<32x128xf32>
    %98 = arith.addf %95, %97 : vector<32x128xf32>
    %cst_59 = arith.constant 0.000000e+00 : f32
    %99 = vector.broadcast %cst_59 : f32 to vector<32x128xf32>
    %100 = arith.cmpf oge, %98, %99 : vector<32x128xf32>
    %cst_60 = arith.constant 2.000000e-01 : f32
    %101 = vector.broadcast %cst_60 : f32 to vector<32x128xf32>
    %102 = arith.mulf %101, %98 : vector<32x128xf32>
    %103 = arith.select %100, %98, %102 : vector<32x128xi1>, vector<32x128xf32>
    %cst_61 = arith.constant 0.000000e+00 : f32
    %104 = vector.broadcast %cst_61 : f32 to vector<1x128xf32>
    %105 = vector.extract_strided_slice %103 {offsets = [0, 0], sizes = [31, 128], strides = [1, 1]} : vector<32x128xf32> to vector<31x128xf32>
    %106 = tpu.concatenate %104, %105 in 0 : vector<1x128xf32>, vector<31x128xf32> -> vector<32x128xf32>
    %107 = vector.broadcast %2 : vector<32x1xf32> to vector<32x128xf32>
    %108 = arith.mulf %106, %107 : vector<32x128xf32>
    %109 = vector.extract_strided_slice %103 {offsets = [1, 0], sizes = [31, 128], strides = [1, 1]} : vector<32x128xf32> to vector<31x128xf32>
    %110 = tpu.concatenate %109, %104 in 0 : vector<31x128xf32>, vector<1x128xf32> -> vector<32x128xf32>
    %111 = vector.broadcast %3 : vector<32x1xf32> to vector<32x128xf32>
    %112 = arith.mulf %110, %111 : vector<32x128xf32>
    %113 = arith.truncf %108 : vector<32x128xf32> to vector<32x128xbf16>
    %c0_62 = arith.constant 0 : index
    %c0_63 = arith.constant 0 : index
    %c0_64 = arith.constant 0 : index
    %114 = vector.load %arg8[%c0_62, %c0_63, %c0_64] : memref<3x128x128xbf16, #tpu.memory_space<vmem>>, vector<1x128x128xbf16>
    %115 = vector.shape_cast %114 : vector<1x128x128xbf16> to vector<128x128xbf16>
    %cst_65 = arith.constant dense<0.000000e+00> : vector<32x128xf32>
    %116 = tpu.matmul %113, %115, %cst_65 {dimension_numbers = #tpu.dot_dimension_numbers<[1], [0], [0], [1], [0, 0, 1, 1], [], []>} : vector<32x128xbf16>, vector<128x128xbf16>, vector<32x128xf32> -> vector<32x128xf32>
    %117 = arith.truncf %103 : vector<32x128xf32> to vector<32x128xbf16>
    %c1_66 = arith.constant 1 : index
    %c0_67 = arith.constant 0 : index
    %c0_68 = arith.constant 0 : index
    %118 = vector.load %arg8[%c1_66, %c0_67, %c0_68] : memref<3x128x128xbf16, #tpu.memory_space<vmem>>, vector<1x128x128xbf16>
    %119 = vector.shape_cast %118 : vector<1x128x128xbf16> to vector<128x128xbf16>
    %cst_69 = arith.constant dense<0.000000e+00> : vector<32x128xf32>
    %120 = tpu.matmul %117, %119, %cst_69 {dimension_numbers = #tpu.dot_dimension_numbers<[1], [0], [0], [1], [0, 0, 1, 1], [], []>} : vector<32x128xbf16>, vector<128x128xbf16>, vector<32x128xf32> -> vector<32x128xf32>
    %121 = arith.addf %116, %120 : vector<32x128xf32>
    %122 = arith.truncf %112 : vector<32x128xf32> to vector<32x128xbf16>
    %c2_70 = arith.constant 2 : index
    %c0_71 = arith.constant 0 : index
    %c0_72 = arith.constant 0 : index
    %123 = vector.load %arg8[%c2_70, %c0_71, %c0_72] : memref<3x128x128xbf16, #tpu.memory_space<vmem>>, vector<1x128x128xbf16>
    %124 = vector.shape_cast %123 : vector<1x128x128xbf16> to vector<128x128xbf16>
    %cst_73 = arith.constant dense<0.000000e+00> : vector<32x128xf32>
    %125 = tpu.matmul %122, %124, %cst_73 {dimension_numbers = #tpu.dot_dimension_numbers<[1], [0], [0], [1], [0, 0, 1, 1], [], []>} : vector<32x128xbf16>, vector<128x128xbf16>, vector<32x128xf32> -> vector<32x128xf32>
    %126 = arith.addf %121, %125 : vector<32x128xf32>
    %127 = vector.extract_strided_slice %0 {offsets = [3, 0], sizes = [1, 128], strides = [1, 1]} : vector<5x128xf32> to vector<1x128xf32>
    %128 = vector.broadcast %127 : vector<1x128xf32> to vector<32x128xf32>
    %129 = arith.addf %126, %128 : vector<32x128xf32>
    %cst_74 = arith.constant 0.000000e+00 : f32
    %130 = vector.broadcast %cst_74 : f32 to vector<32x128xf32>
    %131 = arith.cmpf oge, %129, %130 : vector<32x128xf32>
    %cst_75 = arith.constant 2.000000e-01 : f32
    %132 = vector.broadcast %cst_75 : f32 to vector<32x128xf32>
    %133 = arith.mulf %132, %129 : vector<32x128xf32>
    %134 = arith.select %131, %129, %133 : vector<32x128xi1>, vector<32x128xf32>
    %135 = arith.truncf %20 : vector<32x128xf32> to vector<32x128xbf16>
    %c0_76 = arith.constant 0 : index
    %c0_77 = arith.constant 0 : index
    %c0_78 = arith.constant 0 : index
    %136 = vector.load %arg9[%c0_76, %c0_77, %c0_78] : memref<2x128x128xbf16, #tpu.memory_space<vmem>>, vector<1x128x128xbf16>
    %137 = vector.shape_cast %136 : vector<1x128x128xbf16> to vector<128x128xbf16>
    %cst_79 = arith.constant dense<0.000000e+00> : vector<32x128xf32>
    %138 = tpu.matmul %135, %137, %cst_79 {dimension_numbers = #tpu.dot_dimension_numbers<[1], [0], [0], [1], [0, 0, 1, 1], [], []>} : vector<32x128xbf16>, vector<128x128xbf16>, vector<32x128xf32> -> vector<32x128xf32>
    %139 = arith.truncf %48 : vector<32x128xf32> to vector<32x128xbf16>
    %c1_80 = arith.constant 1 : index
    %c0_81 = arith.constant 0 : index
    %c0_82 = arith.constant 0 : index
    %140 = vector.load %arg9[%c1_80, %c0_81, %c0_82] : memref<2x128x128xbf16, #tpu.memory_space<vmem>>, vector<1x128x128xbf16>
    %141 = vector.shape_cast %140 : vector<1x128x128xbf16> to vector<128x128xbf16>
    %cst_83 = arith.constant dense<0.000000e+00> : vector<32x128xf32>
    %142 = tpu.matmul %139, %141, %cst_83 {dimension_numbers = #tpu.dot_dimension_numbers<[1], [0], [0], [1], [0, 0, 1, 1], [], []>} : vector<32x128xbf16>, vector<128x128xbf16>, vector<32x128xf32> -> vector<32x128xf32>
    %143 = arith.addf %138, %142 : vector<32x128xf32>
    %144 = vector.extract_strided_slice %0 {offsets = [4, 0], sizes = [1, 128], strides = [1, 1]} : vector<5x128xf32> to vector<1x128xf32>
    %145 = vector.broadcast %144 : vector<1x128xf32> to vector<32x128xf32>
    %146 = arith.addf %143, %145 : vector<32x128xf32>
    %147 = arith.addf %134, %146 : vector<32x128xf32>
    %148 = arith.truncf %147 : vector<32x128xf32> to vector<32x128xbf16>
    %c0_84 = arith.constant 0 : index
    %c0_85 = arith.constant 0 : index
    %149 = vector.load %arg12[%c0_84, %c0_85] : memref<32x128xbf16, #tpu.memory_space<vmem>>, vector<32x128xbf16>
    tpu.vector_store %arg12[%c0_84, %c0_85], %148 {strides = array<i32>} : memref<32x128xbf16, #tpu.memory_space<vmem>>, vector<32x128xbf16>,
    return
  }
  func.func @transform_0(%arg0: i32) -> (i32, i32) {
    %c0_i32 = arith.constant 0 : i32
    %c0_i32_0 = arith.constant 0 : i32
    return %arg0, %c0_i32 : i32, i32
  }
  func.func @transform_1(%arg0: i32) -> (i32, i32) {
    %c0_i32 = arith.constant 0 : i32
    %c0_i32_0 = arith.constant 0 : i32
    return %arg0, %c0_i32 : i32, i32
  }
  func.func @transform_2(%arg0: i32) -> (i32, i32, i32) {
    %c0_i32 = arith.constant 0 : i32
    %c0_i32_0 = arith.constant 0 : i32
    %c0_i32_1 = arith.constant 0 : i32
    %c0_i32_2 = arith.constant 0 : i32
    return %c0_i32, %c0_i32_0, %c0_i32_1 : i32, i32, i32
  }
  func.func @transform_3(%arg0: i32) -> (i32, i32, i32) {
    %c0_i32 = arith.constant 0 : i32
    %c0_i32_0 = arith.constant 0 : i32
    %c0_i32_1 = arith.constant 0 : i32
    %c0_i32_2 = arith.constant 0 : i32
    return %c0_i32, %c0_i32_0, %c0_i32_1 : i32, i32, i32
  }
  func.func @transform_4(%arg0: i32) -> (i32, i32, i32) {
    %c0_i32 = arith.constant 0 : i32
    %c0_i32_0 = arith.constant 0 : i32
    %c0_i32_1 = arith.constant 0 : i32
    %c0_i32_2 = arith.constant 0 : i32
    return %c0_i32, %c0_i32_0, %c0_i32_1 : i32, i32, i32
  }
  func.func @transform_5(%arg0: i32) -> (i32, i32, i32) {
    %c0_i32 = arith.constant 0 : i32
    %c0_i32_0 = arith.constant 0 : i32
    %c0_i32_1 = arith.constant 0 : i32
    %c0_i32_2 = arith.constant 0 : i32
    return %c0_i32, %c0_i32_0, %c0_i32_1 : i32, i32, i32
  }
  func.func @transform_6(%arg0: i32) -> (i32, i32, i32) {
    %c0_i32 = arith.constant 0 : i32
    %c0_i32_0 = arith.constant 0 : i32
    %c0_i32_1 = arith.constant 0 : i32
    %c0_i32_2 = arith.constant 0 : i32
    return %c0_i32, %c0_i32_0, %c0_i32_1 : i32, i32, i32
  }
  func.func @transform_7(%arg0: i32) -> (i32, i32, i32) {
    %c0_i32 = arith.constant 0 : i32
    %c0_i32_0 = arith.constant 0 : i32
    %c0_i32_1 = arith.constant 0 : i32
    %c0_i32_2 = arith.constant 0 : i32
    return %c0_i32, %c0_i32_0, %c0_i32_1 : i32, i32, i32
  }
  func.func @transform_8(%arg0: i32) -> (i32, i32, i32) {
    %c0_i32 = arith.constant 0 : i32
    %c0_i32_0 = arith.constant 0 : i32
    %c0_i32_1 = arith.constant 0 : i32
    %c0_i32_2 = arith.constant 0 : i32
    return %c0_i32, %c0_i32_0, %c0_i32_1 : i32, i32, i32
  }
  func.func @transform_9(%arg0: i32) -> (i32, i32) {
    %c0_i32 = arith.constant 0 : i32
    %c0_i32_0 = arith.constant 0 : i32
    %c0_i32_1 = arith.constant 0 : i32
    return %c0_i32, %c0_i32_0 : i32, i32
  }
  func.func @transform_10(%arg0: i32) -> (i32, i32) {
    %c0_i32 = arith.constant 0 : i32
    %c0_i32_0 = arith.constant 0 : i32
    %c0_i32_1 = arith.constant 0 : i32
    return %c0_i32, %c0_i32_0 : i32, i32
  }
  func.func @transform_11(%arg0: i32) -> (i32, i32) {
    %c0_i32 = arith.constant 0 : i32
    %c0_i32_0 = arith.constant 0 : i32
    return %arg0, %c0_i32 : i32, i32
  }
}

module attributes {stable_mosaic.version = 11 : i64} {
  func.func @_decoder_stage_kernel(%arg0: i32, %arg1: memref<32x128xbf16, #tpu.memory_space<vmem>>, %arg2: memref<64x256xbf16, #tpu.memory_space<vmem>>, %arg3: memref<2x128x128xbf16, #tpu.memory_space<vmem>>, %arg4: memref<2x64x32xf32, #tpu.memory_space<vmem>>, %arg5: memref<3x256x128xbf16, #tpu.memory_space<vmem>>, %arg6: memref<3x128x128xbf16, #tpu.memory_space<vmem>>, %arg7: memref<3x128x128xbf16, #tpu.memory_space<vmem>>, %arg8: memref<3x128x128xbf16, #tpu.memory_space<vmem>>, %arg9: memref<2x128x128xbf16, #tpu.memory_space<vmem>>, %arg10: memref<5x128xf32, #tpu.memory_space<vmem>>, %arg11: memref<64x2xf32, #tpu.memory_space<vmem>>, %arg12: memref<64x128xbf16, #tpu.memory_space<vmem>>) attributes {dimension_semantics = [#tpu.dimension_semantics<parallel>], iteration_bounds = array<i64: 1>, scalar_prefetch = 0 : i64, scratch_operands = 0 : i64, tpu.core_type = #tpu.core_type<tc>, window_params = [{transform_indices = @transform_0, window_bounds = array<i64: 32, 128>}, {transform_indices = @transform_1, window_bounds = array<i64: 64, 256>}, {pipeline_mode = #tpu.pipeline_mode<synchronous>, transform_indices = @transform_2, window_bounds = array<i64: 2, 128, 128>}, {pipeline_mode = #tpu.pipeline_mode<synchronous>, transform_indices = @transform_3, window_bounds = array<i64: 2, 64, 32>}, {pipeline_mode = #tpu.pipeline_mode<synchronous>, transform_indices = @transform_4, window_bounds = array<i64: 3, 256, 128>}, {pipeline_mode = #tpu.pipeline_mode<synchronous>, transform_indices = @transform_5, window_bounds = array<i64: 3, 128, 128>}, {pipeline_mode = #tpu.pipeline_mode<synchronous>, transform_indices = @transform_6, window_bounds = array<i64: 3, 128, 128>}, {pipeline_mode = #tpu.pipeline_mode<synchronous>, transform_indices = @transform_7, window_bounds = array<i64: 3, 128, 128>}, {pipeline_mode = #tpu.pipeline_mode<synchronous>, transform_indices = @transform_8, window_bounds = array<i64: 2, 128, 128>}, {pipeline_mode = #tpu.pipeline_mode<synchronous>, transform_indices = @transform_9, window_bounds = array<i64: 5, 128>}, {pipeline_mode = #tpu.pipeline_mode<synchronous>, transform_indices = @transform_10, window_bounds = array<i64: 64, 2>}, {transform_indices = @transform_11, window_bounds = array<i64: 64, 128>}]} {
    %c0 = arith.constant 0 : index
    %c0_0 = arith.constant 0 : index
    %0 = vector.load %arg10[%c0, %c0_0] : memref<5x128xf32, #tpu.memory_space<vmem>>, vector<5x128xf32>
    %c0_1 = arith.constant 0 : index
    %c0_2 = arith.constant 0 : index
    %1 = vector.load %arg11[%c0_1, %c0_2] : memref<64x2xf32, #tpu.memory_space<vmem>>, vector<64x2xf32>
    %2 = vector.extract_strided_slice %1 {offsets = [0, 0], sizes = [64, 1], strides = [1, 1]} : vector<64x2xf32> to vector<64x1xf32>
    %3 = vector.extract_strided_slice %1 {offsets = [0, 1], sizes = [64, 1], strides = [1, 1]} : vector<64x2xf32> to vector<64x1xf32>
    %c0_3 = arith.constant 0 : index
    %c0_4 = arith.constant 0 : index
    %4 = vector.load %arg1[%c0_3, %c0_4] : memref<32x128xbf16, #tpu.memory_space<vmem>>, vector<32x128xbf16>
    %c0_5 = arith.constant 0 : index
    %c0_6 = arith.constant 0 : index
    %c0_7 = arith.constant 0 : index
    %5 = vector.load %arg3[%c0_5, %c0_6, %c0_7] : memref<2x128x128xbf16, #tpu.memory_space<vmem>>, vector<1x128x128xbf16>
    %6 = vector.shape_cast %5 : vector<1x128x128xbf16> to vector<128x128xbf16>
    %cst = arith.constant dense<0.000000e+00> : vector<32x128xf32>
    %7 = tpu.matmul %4, %6, %cst {dimension_numbers = #tpu.dot_dimension_numbers<[1], [0], [0], [1], [0, 0, 1, 1], [], []>} : vector<32x128xbf16>, vector<128x128xbf16>, vector<32x128xf32> -> vector<32x128xf32>
    %c1 = arith.constant 1 : index
    %c0_8 = arith.constant 0 : index
    %c0_9 = arith.constant 0 : index
    %8 = vector.load %arg3[%c1, %c0_8, %c0_9] : memref<2x128x128xbf16, #tpu.memory_space<vmem>>, vector<1x128x128xbf16>
    %9 = vector.shape_cast %8 : vector<1x128x128xbf16> to vector<128x128xbf16>
    %cst_10 = arith.constant dense<0.000000e+00> : vector<32x128xf32>
    %10 = tpu.matmul %4, %9, %cst_10 {dimension_numbers = #tpu.dot_dimension_numbers<[1], [0], [0], [1], [0, 0, 1, 1], [], []>} : vector<32x128xbf16>, vector<128x128xbf16>, vector<32x128xf32> -> vector<32x128xf32>
    %c0_11 = arith.constant 0 : index
    %c0_12 = arith.constant 0 : index
    %c0_13 = arith.constant 0 : index
    %11 = vector.load %arg4[%c0_11, %c0_12, %c0_13] : memref<2x64x32xf32, #tpu.memory_space<vmem>>, vector<1x64x32xf32>
    %12 = vector.shape_cast %11 : vector<1x64x32xf32> to vector<64x32xf32>
    %cst_14 = arith.constant dense<0.000000e+00> : vector<64x128xf32>
    %13 = tpu.matmul %12, %7, %cst_14 {dimension_numbers = #tpu.dot_dimension_numbers<[1], [0], [0], [1], [0, 0, 1, 1], [], []>} : vector<64x32xf32>, vector<32x128xf32>, vector<64x128xf32> -> vector<64x128xf32>
    %c1_15 = arith.constant 1 : index
    %c0_16 = arith.constant 0 : index
    %c0_17 = arith.constant 0 : index
    %14 = vector.load %arg4[%c1_15, %c0_16, %c0_17] : memref<2x64x32xf32, #tpu.memory_space<vmem>>, vector<1x64x32xf32>
    %15 = vector.shape_cast %14 : vector<1x64x32xf32> to vector<64x32xf32>
    %cst_18 = arith.constant dense<0.000000e+00> : vector<64x128xf32>
    %16 = tpu.matmul %15, %10, %cst_18 {dimension_numbers = #tpu.dot_dimension_numbers<[1], [0], [0], [1], [0, 0, 1, 1], [], []>} : vector<64x32xf32>, vector<32x128xf32>, vector<64x128xf32> -> vector<64x128xf32>
    %17 = arith.addf %13, %16 : vector<64x128xf32>
    %18 = vector.extract_strided_slice %0 {offsets = [0, 0], sizes = [1, 128], strides = [1, 1]} : vector<5x128xf32> to vector<1x128xf32>
    %19 = vector.broadcast %18 : vector<1x128xf32> to vector<64x128xf32>
    %20 = arith.addf %17, %19 : vector<64x128xf32>
    %c0_19 = arith.constant 0 : index
    %c0_20 = arith.constant 0 : index
    %21 = vector.load %arg2[%c0_19, %c0_20] : memref<64x256xbf16, #tpu.memory_space<vmem>>, vector<64x256xbf16>
    %22 = arith.extf %21 : vector<64x256xbf16> to vector<64x256xf32>
    %cst_21 = arith.constant 0.000000e+00 : f32
    %23 = vector.broadcast %cst_21 : f32 to vector<1x256xf32>
    %24 = vector.extract_strided_slice %22 {offsets = [0, 0], sizes = [63, 256], strides = [1, 1]} : vector<64x256xf32> to vector<63x256xf32>
    %25 = tpu.concatenate %23, %24 in 0 : vector<1x256xf32>, vector<63x256xf32> -> vector<64x256xf32>
    %26 = vector.broadcast %2 : vector<64x1xf32> to vector<64x256xf32>
    %27 = arith.mulf %25, %26 : vector<64x256xf32>
    %28 = vector.extract_strided_slice %22 {offsets = [1, 0], sizes = [63, 256], strides = [1, 1]} : vector<64x256xf32> to vector<63x256xf32>
    %29 = tpu.concatenate %28, %23 in 0 : vector<63x256xf32>, vector<1x256xf32> -> vector<64x256xf32>
    %30 = vector.broadcast %3 : vector<64x1xf32> to vector<64x256xf32>
    %31 = arith.mulf %29, %30 : vector<64x256xf32>
    %32 = arith.truncf %27 : vector<64x256xf32> to vector<64x256xbf16>
    %c0_22 = arith.constant 0 : index
    %c0_23 = arith.constant 0 : index
    %c0_24 = arith.constant 0 : index
    %33 = vector.load %arg5[%c0_22, %c0_23, %c0_24] : memref<3x256x128xbf16, #tpu.memory_space<vmem>>, vector<1x256x128xbf16>
    %34 = vector.shape_cast %33 : vector<1x256x128xbf16> to vector<256x128xbf16>
    %cst_25 = arith.constant dense<0.000000e+00> : vector<64x128xf32>
    %35 = tpu.matmul %32, %34, %cst_25 {dimension_numbers = #tpu.dot_dimension_numbers<[1], [0], [0], [1], [0, 0, 1, 1], [], []>} : vector<64x256xbf16>, vector<256x128xbf16>, vector<64x128xf32> -> vector<64x128xf32>
    %36 = arith.truncf %22 : vector<64x256xf32> to vector<64x256xbf16>
    %c1_26 = arith.constant 1 : index
    %c0_27 = arith.constant 0 : index
    %c0_28 = arith.constant 0 : index
    %37 = vector.load %arg5[%c1_26, %c0_27, %c0_28] : memref<3x256x128xbf16, #tpu.memory_space<vmem>>, vector<1x256x128xbf16>
    %38 = vector.shape_cast %37 : vector<1x256x128xbf16> to vector<256x128xbf16>
    %cst_29 = arith.constant dense<0.000000e+00> : vector<64x128xf32>
    %39 = tpu.matmul %36, %38, %cst_29 {dimension_numbers = #tpu.dot_dimension_numbers<[1], [0], [0], [1], [0, 0, 1, 1], [], []>} : vector<64x256xbf16>, vector<256x128xbf16>, vector<64x128xf32> -> vector<64x128xf32>
    %40 = arith.addf %35, %39 : vector<64x128xf32>
    %41 = arith.truncf %31 : vector<64x256xf32> to vector<64x256xbf16>
    %c2 = arith.constant 2 : index
    %c0_30 = arith.constant 0 : index
    %c0_31 = arith.constant 0 : index
    %42 = vector.load %arg5[%c2, %c0_30, %c0_31] : memref<3x256x128xbf16, #tpu.memory_space<vmem>>, vector<1x256x128xbf16>
    %43 = vector.shape_cast %42 : vector<1x256x128xbf16> to vector<256x128xbf16>
    %cst_32 = arith.constant dense<0.000000e+00> : vector<64x128xf32>
    %44 = tpu.matmul %41, %43, %cst_32 {dimension_numbers = #tpu.dot_dimension_numbers<[1], [0], [0], [1], [0, 0, 1, 1], [], []>} : vector<64x256xbf16>, vector<256x128xbf16>, vector<64x128xf32> -> vector<64x128xf32>
    %45 = arith.addf %40, %44 : vector<64x128xf32>
    %46 = vector.extract_strided_slice %0 {offsets = [1, 0], sizes = [1, 128], strides = [1, 1]} : vector<5x128xf32> to vector<1x128xf32>
    %47 = vector.broadcast %46 : vector<1x128xf32> to vector<64x128xf32>
    %48 = arith.addf %45, %47 : vector<64x128xf32>
    %cst_33 = arith.constant 0.000000e+00 : f32
    %49 = vector.broadcast %cst_33 : f32 to vector<1x128xf32>
    %50 = vector.extract_strided_slice %20 {offsets = [0, 0], sizes = [63, 128], strides = [1, 1]} : vector<64x128xf32> to vector<63x128xf32>
    %51 = tpu.concatenate %49, %50 in 0 : vector<1x128xf32>, vector<63x128xf32> -> vector<64x128xf32>
    %52 = vector.broadcast %2 : vector<64x1xf32> to vector<64x128xf32>
    %53 = arith.mulf %51, %52 : vector<64x128xf32>
    %54 = vector.extract_strided_slice %20 {offsets = [1, 0], sizes = [63, 128], strides = [1, 1]} : vector<64x128xf32> to vector<63x128xf32>
    %55 = tpu.concatenate %54, %49 in 0 : vector<63x128xf32>, vector<1x128xf32> -> vector<64x128xf32>
    %56 = vector.broadcast %3 : vector<64x1xf32> to vector<64x128xf32>
    %57 = arith.mulf %55, %56 : vector<64x128xf32>
    %58 = arith.truncf %53 : vector<64x128xf32> to vector<64x128xbf16>
    %c0_34 = arith.constant 0 : index
    %c0_35 = arith.constant 0 : index
    %c0_36 = arith.constant 0 : index
    %59 = vector.load %arg6[%c0_34, %c0_35, %c0_36] : memref<3x128x128xbf16, #tpu.memory_space<vmem>>, vector<1x128x128xbf16>
    %60 = vector.shape_cast %59 : vector<1x128x128xbf16> to vector<128x128xbf16>
    %cst_37 = arith.constant dense<0.000000e+00> : vector<64x128xf32>
    %61 = tpu.matmul %58, %60, %cst_37 {dimension_numbers = #tpu.dot_dimension_numbers<[1], [0], [0], [1], [0, 0, 1, 1], [], []>} : vector<64x128xbf16>, vector<128x128xbf16>, vector<64x128xf32> -> vector<64x128xf32>
    %62 = arith.truncf %20 : vector<64x128xf32> to vector<64x128xbf16>
    %c1_38 = arith.constant 1 : index
    %c0_39 = arith.constant 0 : index
    %c0_40 = arith.constant 0 : index
    %63 = vector.load %arg6[%c1_38, %c0_39, %c0_40] : memref<3x128x128xbf16, #tpu.memory_space<vmem>>, vector<1x128x128xbf16>
    %64 = vector.shape_cast %63 : vector<1x128x128xbf16> to vector<128x128xbf16>
    %cst_41 = arith.constant dense<0.000000e+00> : vector<64x128xf32>
    %65 = tpu.matmul %62, %64, %cst_41 {dimension_numbers = #tpu.dot_dimension_numbers<[1], [0], [0], [1], [0, 0, 1, 1], [], []>} : vector<64x128xbf16>, vector<128x128xbf16>, vector<64x128xf32> -> vector<64x128xf32>
    %66 = arith.addf %61, %65 : vector<64x128xf32>
    %67 = arith.truncf %57 : vector<64x128xf32> to vector<64x128xbf16>
    %c2_42 = arith.constant 2 : index
    %c0_43 = arith.constant 0 : index
    %c0_44 = arith.constant 0 : index
    %68 = vector.load %arg6[%c2_42, %c0_43, %c0_44] : memref<3x128x128xbf16, #tpu.memory_space<vmem>>, vector<1x128x128xbf16>
    %69 = vector.shape_cast %68 : vector<1x128x128xbf16> to vector<128x128xbf16>
    %cst_45 = arith.constant dense<0.000000e+00> : vector<64x128xf32>
    %70 = tpu.matmul %67, %69, %cst_45 {dimension_numbers = #tpu.dot_dimension_numbers<[1], [0], [0], [1], [0, 0, 1, 1], [], []>} : vector<64x128xbf16>, vector<128x128xbf16>, vector<64x128xf32> -> vector<64x128xf32>
    %71 = arith.addf %66, %70 : vector<64x128xf32>
    %cst_46 = arith.constant 0.000000e+00 : f32
    %72 = vector.broadcast %cst_46 : f32 to vector<1x128xf32>
    %73 = vector.extract_strided_slice %48 {offsets = [0, 0], sizes = [63, 128], strides = [1, 1]} : vector<64x128xf32> to vector<63x128xf32>
    %74 = tpu.concatenate %72, %73 in 0 : vector<1x128xf32>, vector<63x128xf32> -> vector<64x128xf32>
    %75 = vector.broadcast %2 : vector<64x1xf32> to vector<64x128xf32>
    %76 = arith.mulf %74, %75 : vector<64x128xf32>
    %77 = vector.extract_strided_slice %48 {offsets = [1, 0], sizes = [63, 128], strides = [1, 1]} : vector<64x128xf32> to vector<63x128xf32>
    %78 = tpu.concatenate %77, %72 in 0 : vector<63x128xf32>, vector<1x128xf32> -> vector<64x128xf32>
    %79 = vector.broadcast %3 : vector<64x1xf32> to vector<64x128xf32>
    %80 = arith.mulf %78, %79 : vector<64x128xf32>
    %81 = arith.truncf %76 : vector<64x128xf32> to vector<64x128xbf16>
    %c0_47 = arith.constant 0 : index
    %c0_48 = arith.constant 0 : index
    %c0_49 = arith.constant 0 : index
    %82 = vector.load %arg7[%c0_47, %c0_48, %c0_49] : memref<3x128x128xbf16, #tpu.memory_space<vmem>>, vector<1x128x128xbf16>
    %83 = vector.shape_cast %82 : vector<1x128x128xbf16> to vector<128x128xbf16>
    %cst_50 = arith.constant dense<0.000000e+00> : vector<64x128xf32>
    %84 = tpu.matmul %81, %83, %cst_50 {dimension_numbers = #tpu.dot_dimension_numbers<[1], [0], [0], [1], [0, 0, 1, 1], [], []>} : vector<64x128xbf16>, vector<128x128xbf16>, vector<64x128xf32> -> vector<64x128xf32>
    %85 = arith.truncf %48 : vector<64x128xf32> to vector<64x128xbf16>
    %c1_51 = arith.constant 1 : index
    %c0_52 = arith.constant 0 : index
    %c0_53 = arith.constant 0 : index
    %86 = vector.load %arg7[%c1_51, %c0_52, %c0_53] : memref<3x128x128xbf16, #tpu.memory_space<vmem>>, vector<1x128x128xbf16>
    %87 = vector.shape_cast %86 : vector<1x128x128xbf16> to vector<128x128xbf16>
    %cst_54 = arith.constant dense<0.000000e+00> : vector<64x128xf32>
    %88 = tpu.matmul %85, %87, %cst_54 {dimension_numbers = #tpu.dot_dimension_numbers<[1], [0], [0], [1], [0, 0, 1, 1], [], []>} : vector<64x128xbf16>, vector<128x128xbf16>, vector<64x128xf32> -> vector<64x128xf32>
    %89 = arith.addf %84, %88 : vector<64x128xf32>
    %90 = arith.truncf %80 : vector<64x128xf32> to vector<64x128xbf16>
    %c2_55 = arith.constant 2 : index
    %c0_56 = arith.constant 0 : index
    %c0_57 = arith.constant 0 : index
    %91 = vector.load %arg7[%c2_55, %c0_56, %c0_57] : memref<3x128x128xbf16, #tpu.memory_space<vmem>>, vector<1x128x128xbf16>
    %92 = vector.shape_cast %91 : vector<1x128x128xbf16> to vector<128x128xbf16>
    %cst_58 = arith.constant dense<0.000000e+00> : vector<64x128xf32>
    %93 = tpu.matmul %90, %92, %cst_58 {dimension_numbers = #tpu.dot_dimension_numbers<[1], [0], [0], [1], [0, 0, 1, 1], [], []>} : vector<64x128xbf16>, vector<128x128xbf16>, vector<64x128xf32> -> vector<64x128xf32>
    %94 = arith.addf %89, %93 : vector<64x128xf32>
    %95 = arith.addf %71, %94 : vector<64x128xf32>
    %96 = vector.extract_strided_slice %0 {offsets = [2, 0], sizes = [1, 128], strides = [1, 1]} : vector<5x128xf32> to vector<1x128xf32>
    %97 = vector.broadcast %96 : vector<1x128xf32> to vector<64x128xf32>
    %98 = arith.addf %95, %97 : vector<64x128xf32>
    %cst_59 = arith.constant 0.000000e+00 : f32
    %99 = vector.broadcast %cst_59 : f32 to vector<64x128xf32>
    %100 = arith.cmpf oge, %98, %99 : vector<64x128xf32>
    %cst_60 = arith.constant 2.000000e-01 : f32
    %101 = vector.broadcast %cst_60 : f32 to vector<64x128xf32>
    %102 = arith.mulf %101, %98 : vector<64x128xf32>
    %103 = arith.select %100, %98, %102 : vector<64x128xi1>, vector<64x128xf32>
    %cst_61 = arith.constant 0.000000e+00 : f32
    %104 = vector.broadcast %cst_61 : f32 to vector<1x128xf32>
    %105 = vector.extract_strided_slice %103 {offsets = [0, 0], sizes = [63, 128], strides = [1, 1]} : vector<64x128xf32> to vector<63x128xf32>
    %106 = tpu.concatenate %104, %105 in 0 : vector<1x128xf32>, vector<63x128xf32> -> vector<64x128xf32>
    %107 = vector.broadcast %2 : vector<64x1xf32> to vector<64x128xf32>
    %108 = arith.mulf %106, %107 : vector<64x128xf32>
    %109 = vector.extract_strided_slice %103 {offsets = [1, 0], sizes = [63, 128], strides = [1, 1]} : vector<64x128xf32> to vector<63x128xf32>
    %110 = tpu.concatenate %109, %104 in 0 : vector<63x128xf32>, vector<1x128xf32> -> vector<64x128xf32>
    %111 = vector.broadcast %3 : vector<64x1xf32> to vector<64x128xf32>
    %112 = arith.mulf %110, %111 : vector<64x128xf32>
    %113 = arith.truncf %108 : vector<64x128xf32> to vector<64x128xbf16>
    %c0_62 = arith.constant 0 : index
    %c0_63 = arith.constant 0 : index
    %c0_64 = arith.constant 0 : index
    %114 = vector.load %arg8[%c0_62, %c0_63, %c0_64] : memref<3x128x128xbf16, #tpu.memory_space<vmem>>, vector<1x128x128xbf16>
    %115 = vector.shape_cast %114 : vector<1x128x128xbf16> to vector<128x128xbf16>
    %cst_65 = arith.constant dense<0.000000e+00> : vector<64x128xf32>
    %116 = tpu.matmul %113, %115, %cst_65 {dimension_numbers = #tpu.dot_dimension_numbers<[1], [0], [0], [1], [0, 0, 1, 1], [], []>} : vector<64x128xbf16>, vector<128x128xbf16>, vector<64x128xf32> -> vector<64x128xf32>
    %117 = arith.truncf %103 : vector<64x128xf32> to vector<64x128xbf16>
    %c1_66 = arith.constant 1 : index
    %c0_67 = arith.constant 0 : index
    %c0_68 = arith.constant 0 : index
    %118 = vector.load %arg8[%c1_66, %c0_67, %c0_68] : memref<3x128x128xbf16, #tpu.memory_space<vmem>>, vector<1x128x128xbf16>
    %119 = vector.shape_cast %118 : vector<1x128x128xbf16> to vector<128x128xbf16>
    %cst_69 = arith.constant dense<0.000000e+00> : vector<64x128xf32>
    %120 = tpu.matmul %117, %119, %cst_69 {dimension_numbers = #tpu.dot_dimension_numbers<[1], [0], [0], [1], [0, 0, 1, 1], [], []>} : vector<64x128xbf16>, vector<128x128xbf16>, vector<64x128xf32> -> vector<64x128xf32>
    %121 = arith.addf %116, %120 : vector<64x128xf32>
    %122 = arith.truncf %112 : vector<64x128xf32> to vector<64x128xbf16>
    %c2_70 = arith.constant 2 : index
    %c0_71 = arith.constant 0 : index
    %c0_72 = arith.constant 0 : index
    %123 = vector.load %arg8[%c2_70, %c0_71, %c0_72] : memref<3x128x128xbf16, #tpu.memory_space<vmem>>, vector<1x128x128xbf16>
    %124 = vector.shape_cast %123 : vector<1x128x128xbf16> to vector<128x128xbf16>
    %cst_73 = arith.constant dense<0.000000e+00> : vector<64x128xf32>
    %125 = tpu.matmul %122, %124, %cst_73 {dimension_numbers = #tpu.dot_dimension_numbers<[1], [0], [0], [1], [0, 0, 1, 1], [], []>} : vector<64x128xbf16>, vector<128x128xbf16>, vector<64x128xf32> -> vector<64x128xf32>
    %126 = arith.addf %121, %125 : vector<64x128xf32>
    %127 = vector.extract_strided_slice %0 {offsets = [3, 0], sizes = [1, 128], strides = [1, 1]} : vector<5x128xf32> to vector<1x128xf32>
    %128 = vector.broadcast %127 : vector<1x128xf32> to vector<64x128xf32>
    %129 = arith.addf %126, %128 : vector<64x128xf32>
    %cst_74 = arith.constant 0.000000e+00 : f32
    %130 = vector.broadcast %cst_74 : f32 to vector<64x128xf32>
    %131 = arith.cmpf oge, %129, %130 : vector<64x128xf32>
    %cst_75 = arith.constant 2.000000e-01 : f32
    %132 = vector.broadcast %cst_75 : f32 to vector<64x128xf32>
    %133 = arith.mulf %132, %129 : vector<64x128xf32>
    %134 = arith.select %131, %129, %133 : vector<64x128xi1>, vector<64x128xf32>
    %135 = arith.truncf %20 : vector<64x128xf32> to vector<64x128xbf16>
    %c0_76 = arith.constant 0 : index
    %c0_77 = arith.constant 0 : index
    %c0_78 = arith.constant 0 : index
    %136 = vector.load %arg9[%c0_76, %c0_77, %c0_78] : memref<2x128x128xbf16, #tpu.memory_space<vmem>>, vector<1x128x128xbf16>
    %137 = vector.shape_cast %136 : vector<1x128x128xbf16> to vector<128x128xbf16>
    %cst_79 = arith.constant dense<0.000000e+00> : vector<64x128xf32>
    %138 = tpu.matmul %135, %137, %cst_79 {dimension_numbers = #tpu.dot_dimension_numbers<[1], [0], [0], [1], [0, 0, 1, 1], [], []>} : vector<64x128xbf16>, vector<128x128xbf16>, vector<64x128xf32> -> vector<64x128xf32>
    %139 = arith.truncf %48 : vector<64x128xf32> to vector<64x128xbf16>
    %c1_80 = arith.constant 1 : index
    %c0_81 = arith.constant 0 : index
    %c0_82 = arith.constant 0 : index
    %140 = vector.load %arg9[%c1_80, %c0_81, %c0_82] : memref<2x128x128xbf16, #tpu.memory_space<vmem>>, vector<1x128x128xbf16>
    %141 = vector.shape_cast %140 : vector<1x128x128xbf16> to vector<128x128xbf16>
    %cst_83 = arith.constant dense<0.000000e+00> : vector<64x128xf32>
    %142 = tpu.matmul %139, %141, %cst_83 {dimension_numbers = #tpu.dot_dimension_numbers<[1], [0], [0], [1], [0, 0, 1, 1], [], []>} : vector<64x128xbf16>, vector<128x128xbf16>, vector<64x128xf32> -> vector<64x128xf32>
    %143 = arith.addf %138, %142 : vector<64x128xf32>
    %144 = vector.extract_strided_slice %0 {offsets = [4, 0], sizes = [1, 128], strides = [1, 1]} : vector<5x128xf32> to vector<1x128xf32>
    %145 = vector.broadcast %144 : vector<1x128xf32> to vector<64x128xf32>
    %146 = arith.addf %143, %145 : vector<64x128xf32>
    %147 = arith.addf %134, %146 : vector<64x128xf32>
    %148 = arith.truncf %147 : vector<64x128xf32> to vector<64x128xbf16>
    %c0_84 = arith.constant 0 : index
    %c0_85 = arith.constant 0 : index
    %149 = vector.load %arg12[%c0_84, %c0_85] : memref<64x128xbf16, #tpu.memory_space<vmem>>, vector<64x128xbf16>
    tpu.vector_store %arg12[%c0_84, %c0_85], %148 {strides = array<i32>} : memref<64x128xbf16, #tpu.memory_space<vmem>>, vector<64x128xbf16>,
    return
  }
  func.func @transform_0(%arg0: i32) -> (i32, i32) {
    %c0_i32 = arith.constant 0 : i32
    %c0_i32_0 = arith.constant 0 : i32
    return %arg0, %c0_i32 : i32, i32
  }
  func.func @transform_1(%arg0: i32) -> (i32, i32) {
    %c0_i32 = arith.constant 0 : i32
    %c0_i32_0 = arith.constant 0 : i32
    return %arg0, %c0_i32 : i32, i32
  }
  func.func @transform_2(%arg0: i32) -> (i32, i32, i32) {
    %c0_i32 = arith.constant 0 : i32
    %c0_i32_0 = arith.constant 0 : i32
    %c0_i32_1 = arith.constant 0 : i32
    %c0_i32_2 = arith.constant 0 : i32
    return %c0_i32, %c0_i32_0, %c0_i32_1 : i32, i32, i32
  }
  func.func @transform_3(%arg0: i32) -> (i32, i32, i32) {
    %c0_i32 = arith.constant 0 : i32
    %c0_i32_0 = arith.constant 0 : i32
    %c0_i32_1 = arith.constant 0 : i32
    %c0_i32_2 = arith.constant 0 : i32
    return %c0_i32, %c0_i32_0, %c0_i32_1 : i32, i32, i32
  }
  func.func @transform_4(%arg0: i32) -> (i32, i32, i32) {
    %c0_i32 = arith.constant 0 : i32
    %c0_i32_0 = arith.constant 0 : i32
    %c0_i32_1 = arith.constant 0 : i32
    %c0_i32_2 = arith.constant 0 : i32
    return %c0_i32, %c0_i32_0, %c0_i32_1 : i32, i32, i32
  }
  func.func @transform_5(%arg0: i32) -> (i32, i32, i32) {
    %c0_i32 = arith.constant 0 : i32
    %c0_i32_0 = arith.constant 0 : i32
    %c0_i32_1 = arith.constant 0 : i32
    %c0_i32_2 = arith.constant 0 : i32
    return %c0_i32, %c0_i32_0, %c0_i32_1 : i32, i32, i32
  }
  func.func @transform_6(%arg0: i32) -> (i32, i32, i32) {
    %c0_i32 = arith.constant 0 : i32
    %c0_i32_0 = arith.constant 0 : i32
    %c0_i32_1 = arith.constant 0 : i32
    %c0_i32_2 = arith.constant 0 : i32
    return %c0_i32, %c0_i32_0, %c0_i32_1 : i32, i32, i32
  }
  func.func @transform_7(%arg0: i32) -> (i32, i32, i32) {
    %c0_i32 = arith.constant 0 : i32
    %c0_i32_0 = arith.constant 0 : i32
    %c0_i32_1 = arith.constant 0 : i32
    %c0_i32_2 = arith.constant 0 : i32
    return %c0_i32, %c0_i32_0, %c0_i32_1 : i32, i32, i32
  }
  func.func @transform_8(%arg0: i32) -> (i32, i32, i32) {
    %c0_i32 = arith.constant 0 : i32
    %c0_i32_0 = arith.constant 0 : i32
    %c0_i32_1 = arith.constant 0 : i32
    %c0_i32_2 = arith.constant 0 : i32
    return %c0_i32, %c0_i32_0, %c0_i32_1 : i32, i32, i32
  }
  func.func @transform_9(%arg0: i32) -> (i32, i32) {
    %c0_i32 = arith.constant 0 : i32
    %c0_i32_0 = arith.constant 0 : i32
    %c0_i32_1 = arith.constant 0 : i32
    return %c0_i32, %c0_i32_0 : i32, i32
  }
  func.func @transform_10(%arg0: i32) -> (i32, i32) {
    %c0_i32 = arith.constant 0 : i32
    %c0_i32_0 = arith.constant 0 : i32
    %c0_i32_1 = arith.constant 0 : i32
    return %c0_i32, %c0_i32_0 : i32, i32
  }
  func.func @transform_11(%arg0: i32) -> (i32, i32) {
    %c0_i32 = arith.constant 0 : i32
    %c0_i32_0 = arith.constant 0 : i32
    return %arg0, %c0_i32 : i32, i32
  }
}

</mosaic_0001>

<llo_original>
// kernel: decoder_forward.2
$region0: #{decoder_forward.2}
  #allocation0 [shape = 'u32[]', space=smem, size = 0x4, offset = 0x4, fixed_abs, tag = 'smem constant byte address 0x4 - core index']
  #allocation1 [shape = 'u32[144,128]{1,0:T(1,128)}', space=vmem, size = 0x12000, scoped, tag = 'internal scratch']
  %s0 = inlined_call_operand.vmem [shape: bf16[16,96], index: 0, kind: input, shape index: {}]
  %s1 = inlined_call_operand.vmem [shape: bf16[32,192], index: 1, kind: input, shape index: {}]
  %s2 = inlined_call_operand.vmem [shape: bf16[2,96,128], index: 2, kind: input, shape index: {}]
  %s3 = inlined_call_operand.vmem [shape: f32[2,32,16], index: 3, kind: input, shape index: {}]
  %s4 = inlined_call_operand.vmem [shape: bf16[3,192,128], index: 4, kind: input, shape index: {}]
  %s5 = inlined_call_operand.vmem [shape: bf16[3,128,128], index: 5, kind: input, shape index: {}]
  %s6 = inlined_call_operand.vmem [shape: bf16[3,128,128], index: 6, kind: input, shape index: {}]
  %s7 = inlined_call_operand.vmem [shape: bf16[3,128,128], index: 7, kind: input, shape index: {}]
  %s8 = inlined_call_operand.vmem [shape: bf16[2,128,128], index: 8, kind: input, shape index: {}]
  %s9 = inlined_call_operand.vmem [shape: f32[5,128], index: 9, kind: input, shape index: {}]
  %s10 = inlined_call_operand.vmem [shape: f32[32,2], index: 10, kind: input, shape index: {}]
  %s11 = inlined_call_operand.vmem [shape: bf16[32,128], index: 11, kind: output, shape index: {}]
  %s12 = sld [smem:[#allocation0]]
  $region54: #{decoder_forward.2} parent=0
    _
  %s14 = ssub.s32 1, %s12
  %s15 = scalar_select 0, %s14, %s12
  // Predicated region
  $region2: #{decoder_forward.2} parent=0 // pred_check
    _
  $region3: #{decoder_forward.2} parent=0 // pred_check_branch
    %17 = sbr.rel (0) target = $region5
  $region4: #{decoder_forward.2} parent=0 // pred_region
    _
  $region5: #{decoder_forward.2} parent=0 // pred_fallthru
    _
  // Predicated region
  $region6: #{decoder_forward.2} parent=0 // pred_check
    _
  $region7: #{decoder_forward.2} parent=0 // pred_check_branch
    %19 = sbr.rel (0) target = $region9
  $region8: #{decoder_forward.2} parent=0 // pred_region
    _
  $region9: #{decoder_forward.2} parent=0 // pred_fallthru
    _
  // Predicated region
  $region10: #{decoder_forward.2} parent=0 // pred_check
    _
  $region11: #{decoder_forward.2} parent=0 // pred_check_branch
    %21 = sbr.rel (0) target = $region13
  $region12: #{decoder_forward.2} parent=0 // pred_region
    _
  $region13: #{decoder_forward.2} parent=0 // pred_fallthru
    _
  // Predicated region
  $region14: #{decoder_forward.2} parent=0 // pred_check
    _
  $region15: #{decoder_forward.2} parent=0 // pred_check_branch
    %23 = sbr.rel (0) target = $region17
  $region16: #{decoder_forward.2} parent=0 // pred_region
    _
  $region17: #{decoder_forward.2} parent=0 // pred_fallthru
    _
  // Predicated region
  $region18: #{decoder_forward.2} parent=0 // pred_check
    _
  $region19: #{decoder_forward.2} parent=0 // pred_check_branch
    %25 = sbr.rel (0) target = $region21
  $region20: #{decoder_forward.2} parent=0 // pred_region
    _
  $region21: #{decoder_forward.2} parent=0 // pred_fallthru
    _
  // Predicated region
  $region22: #{decoder_forward.2} parent=0 // pred_check
    _
  $region23: #{decoder_forward.2} parent=0 // pred_check_branch
    %27 = sbr.rel (0) target = $region25
  $region24: #{decoder_forward.2} parent=0 // pred_region
    _
  $region25: #{decoder_forward.2} parent=0 // pred_fallthru
    _
  // Predicated region
  $region26: #{decoder_forward.2} parent=0 // pred_check
    _
  $region27: #{decoder_forward.2} parent=0 // pred_check_branch
    %29 = sbr.rel (0) target = $region29
  $region28: #{decoder_forward.2} parent=0 // pred_region
    _
  $region29: #{decoder_forward.2} parent=0 // pred_fallthru
    _
  // Predicated region
  $region30: #{decoder_forward.2} parent=0 // pred_check
    _
  $region31: #{decoder_forward.2} parent=0 // pred_check_branch
    %31 = sbr.rel (0) target = $region33
  $region32: #{decoder_forward.2} parent=0 // pred_region
    _
  $region33: #{decoder_forward.2} parent=0 // pred_fallthru
    _
  // Predicated region
  $region34: #{decoder_forward.2} parent=0 // pred_check
    _
  $region35: #{decoder_forward.2} parent=0 // pred_check_branch
    %33 = sbr.rel (0) target = $region37
  $region36: #{decoder_forward.2} parent=0 // pred_region
    _
  $region37: #{decoder_forward.2} parent=0 // pred_fallthru
    _
  // Predicated region
  $region38: #{decoder_forward.2} parent=0 // pred_check
    _
  $region39: #{decoder_forward.2} parent=0 // pred_check_branch
    %35 = sbr.rel (0) target = $region41
  $region40: #{decoder_forward.2} parent=0 // pred_region
    _
  $region41: #{decoder_forward.2} parent=0 // pred_fallthru
    _
  // Predicated region
  $region42: #{decoder_forward.2} parent=0 // pred_check
    _
  $region43: #{decoder_forward.2} parent=0 // pred_check_branch
    %37 = sbr.rel (0) target = $region45
  $region44: #{decoder_forward.2} parent=0 // pred_region
    _
  $region45: #{decoder_forward.2} parent=0 // pred_fallthru
    _
  %v39 = vld [vmem:[%s9] sm:$0x1f]
  %v40 = vld [vmem:[%s10] sm:$0xff]
  %v41 = vld [vmem:[%s10 + $0x8] sm:$0xff]
  %v42 = vld [vmem:[%s10 + $0x10] sm:$0xff]
  %v43 = vld [vmem:[%s10 + $0x18] sm:$0xff]
  %v44 = vld [vmem:[%s0] sm:$0xf]
  %v45 = vld [vmem:[%s0 + $0x4] sm:$0xf]
  %v46 = vld [vmem:[%s2] sm:$0xf]
  %v47 = vld [vmem:[%s2 + $0x4] sm:$0xf]
  %v48 = vld [vmem:[%s2 + $0x8] sm:$0xf]
  %v49 = vld [vmem:[%s2 + $0xc] sm:$0xf]
  %v50 = vld [vmem:[%s2 + $0x10] sm:$0xf]
  %v51 = vld [vmem:[%s2 + $0x14] sm:$0xf]
  %v52 = vld [vmem:[%s2 + $0x18] sm:$0xf]
  %v53 = vld [vmem:[%s2 + $0x1c] sm:$0xf]
  %v54 = vld [vmem:[%s2 + $0x20] sm:$0xf]
  %v55 = vld [vmem:[%s2 + $0x24] sm:$0xf]
  %v56 = vld [vmem:[%s2 + $0x28] sm:$0xf]
  %v57 = vld [vmem:[%s2 + $0x2c] sm:$0xf]
  %v60 = vunpack.c.l.b16 %v44
  %v61 = vunpack.c.l.b16 %v45
  %v62 = vpack.c.b16 %v61, %v60
  %v75 = vunpack.c.l.b16 %v46
  %v76 = vunpack.c.l.b16 %v47
  %v77 = vunpack.c.l.b16 %v48
  %v78 = vunpack.c.l.b16 %v49
  %v79 = vunpack.c.l.b16 %v50
  %v80 = vunpack.c.l.b16 %v51
  %v81 = vunpack.c.l.b16 %v52
  %v82 = vunpack.c.l.b16 %v53
  %v83 = vunpack.c.l.b16 %v54
  %v84 = vunpack.c.l.b16 %v55
  %v85 = vunpack.c.l.b16 %v56
  %v86 = vunpack.c.l.b16 %v57
  %v87 = vpack.c.b16 %v76, %v75
  %v88 = vpack.c.b16 %v78, %v77
  %v89 = vpack.c.b16 %v80, %v79
  %v90 = vpack.c.b16 %v82, %v81
  %v91 = vpack.c.b16 %v84, %v83
  %v92 = vpack.c.b16 %v86, %v85
  %vm99 = vcmask 785408
  %v101 = vsel %vm99, %v62, 0
  %103 = vmatprep.subr.bf16.mxu0 0
  %104 = vmatpush1.bf16.msra.mxu0 %v87
  %105 = vmatprep.subr.bf16.mxu0 0
  %106 = vmatpush1.bf16.msra.mxu0 %v88
  %107 = vmatprep.subr.bf16.mxu0 0
  %108 = vmatpush1.bf16.msra.mxu0 %v89
  %109 = vmatprep.subr.bf16.mxu0 0
  %110 = vmatpush1.bf16.msra.mxu0 %v90
  %111 = vmatprep.subr.bf16.mxu0 0
  %112 = vmatpush1.bf16.msra.mxu0 %v91
  %113 = vmatprep.subr.bf16.mxu0 0
  %114 = vmatpush1.bf16.msra.mxu0 %v92
  %115 = vmatprep.subr.bf16.mxu0 0
  %116 = vmatpush1.bf16.msra.mxu0 0
  %117 = vmatprep.subr.bf16.mxu0 0
  %118 = vmatpush1.bf16.msra.mxu0 0
  %119 = vmatprep.subr.bf16.mxu0 0
  %120 = vmatpush1.bf16.msra.mxu0 0
  %121 = vmatprep.subr.bf16.mxu0 0
  %122 = vmatpush1.bf16.msra.mxu0 0
  %123 = vmatprep.subr.bf16.mxu0 0
  %124 = vmatpush1.bf16.msra.mxu0 0
  %125 = vmatprep.subr.bf16.mxu0 0
  %126 = vmatpush1.bf16.msra.mxu0 0
  %127 = vmatprep.subr.bf16.mxu0 0
  %128 = vmatpush1.bf16.msra.mxu0 0
  %129 = vmatprep.subr.bf16.mxu0 0
  %130 = vmatpush1.bf16.msra.mxu0 0
  %131 = vmatprep.subr.bf16.mxu0 0
  %132 = vmatpush1.bf16.msra.mxu0 0
  %133 = vmatprep.subr.bf16.mxu0 0
  %134 = vmatpush1.bf16.msra.mxu0 0
  %135 = vmatprep.mubr.bf16.mxu0 0
  %136 = vmatmul.mubr.bf16.gmra.mrb[0].mxu0 %v101
  %v137 = vpop.f32.mrb[0].mxu0
  %v138 = vadd.f32 0.0, %v137
  %v139 = vpop.f32.mrb[0].mxu0
  %v140 = vpop.f32.mrb[0].mxu0
  %v141 = vadd.f32 0.0, %v140
  %v142 = vpop.f32.mrb[0].mxu0
  %143 = vdwg.mxu0
  %s144 = scalar_lea.vmem %s2, 48
  %v145 = vld [vmem:[%s144] sm:$0xf]
  %v146 = vld [vmem:[%s144 + $0x4] sm:$0xf]
  %v147 = vld [vmem:[%s144 + $0x8] sm:$0xf]
  %v148 = vld [vmem:[%s144 + $0xc] sm:$0xf]
  %v149 = vld [vmem:[%s144 + $0x10] sm:$0xf]
  %v150 = vld [vmem:[%s144 + $0x14] sm:$0xf]
  %v151 = vld [vmem:[%s144 + $0x18] sm:$0xf]
  %v152 = vld [vmem:[%s144 + $0x1c] sm:$0xf]
  %v153 = vld [vmem:[%s144 + $0x20] sm:$0xf]
  %v154 = vld [vmem:[%s144 + $0x24] sm:$0xf]
  %v155 = vld [vmem:[%s144 + $0x28] sm:$0xf]
  %v156 = vld [vmem:[%s144 + $0x2c] sm:$0xf]
  %v169 = vunpack.c.l.b16 %v145
  %v170 = vunpack.c.l.b16 %v146
  %v171 = vunpack.c.l.b16 %v147
  %v172 = vunpack.c.l.b16 %v148
  %v173 = vunpack.c.l.b16 %v149
  %v174 = vunpack.c.l.b16 %v150
  %v175 = vunpack.c.l.b16 %v151
  %v176 = vunpack.c.l.b16 %v152
  %v177 = vunpack.c.l.b16 %v153
  %v178 = vunpack.c.l.b16 %v154
  %v179 = vunpack.c.l.b16 %v155
  %v180 = vunpack.c.l.b16 %v156
  %v181 = vpack.c.b16 %v170, %v169
  %v182 = vpack.c.b16 %v172, %v171
  %v183 = vpack.c.b16 %v174, %v173
  %v184 = vpack.c.b16 %v176, %v175
  %v185 = vpack.c.b16 %v178, %v177
  %v186 = vpack.c.b16 %v180, %v179
  %193 = vmatprep.subr.bf16.mxu0 0
  %194 = vmatpush1.bf16.msra.mxu0 %v181
  %195 = vmatprep.subr.bf16.mxu0 0
  %196 = vmatpush1.bf16.msra.mxu0 %v182
  %197 = vmatprep.subr.bf16.mxu0 0
  %198 = vmatpush1.bf16.msra.mxu0 %v183
  %199 = vmatprep.subr.bf16.mxu0 0
  %200 = vmatpush1.bf16.msra.mxu0 %v184
  %201 = vmatprep.subr.bf16.mxu0 0
  %202 = vmatpush1.bf16.msra.mxu0 %v185
  %203 = vmatprep.subr.bf16.mxu0 0
  %204 = vmatpush1.bf16.msra.mxu0 %v186
  %205 = vmatprep.subr.bf16.mxu0 0
  %206 = vmatpush1.bf16.msra.mxu0 0
  %207 = vmatprep.subr.bf16.mxu0 0
  %208 = vmatpush1.bf16.msra.mxu0 0
  %209 = vmatprep.subr.bf16.mxu0 0
  %210 = vmatpush1.bf16.msra.mxu0 0
  %211 = vmatprep.subr.bf16.mxu0 0
  %212 = vmatpush1.bf16.msra.mxu0 0
  %213 = vmatprep.subr.bf16.mxu0 0
  %214 = vmatpush1.bf16.msra.mxu0 0
  %215 = vmatprep.subr.bf16.mxu0 0
  %216 = vmatpush1.bf16.msra.mxu0 0
  %217 = vmatprep.subr.bf16.mxu0 0
  %218 = vmatpush1.bf16.msra.mxu0 0
  %219 = vmatprep.subr.bf16.mxu0 0
  %220 = vmatpush1.bf16.msra.mxu0 0
  %221 = vmatprep.subr.bf16.mxu0 0
  %222 = vmatpush1.bf16.msra.mxu0 0
  %223 = vmatprep.subr.bf16.mxu0 0
  %224 = vmatpush1.bf16.msra.mxu0 0
  %225 = vmatprep.mubr.bf16.mxu0 0
  %226 = vmatmul.mubr.bf16.gmra.mrb[0].mxu0 %v101
  %v227 = vpop.f32.mrb[0].mxu0
  %v228 = vadd.f32 0.0, %v227
  %v229 = vpop.f32.mrb[0].mxu0
  %v230 = vpop.f32.mrb[0].mxu0
  %v231 = vadd.f32 0.0, %v230
  %v232 = vpop.f32.mrb[0].mxu0
  %233 = vdwg.mxu0
  %v234 = vld [vmem:[%s3] sm:$0xff]
  %v235 = vld [vmem:[%s3 + $0x8] sm:$0xff]
  %v236 = vld [vmem:[%s3 + $0x10] sm:$0xff]
  %v237 = vld [vmem:[%s3 + $0x18] sm:$0xff]
  %s238 = scalar_lea.vmem %s3, 32
  %v239 = vld [vmem:[%s238] sm:$0xff]
  %v240 = vld [vmem:[%s238 + $0x8] sm:$0xff]
  %v241 = vld [vmem:[%s238 + $0x10] sm:$0xff]
  %v242 = vld [vmem:[%s238 + $0x18] sm:$0xff]
  %vm243 = vcmask 130048
  %v245 = vsel %vm243, %v239, 0
  %v248 = vsel %vm243, %v240, 0
  %v251 = vsel %vm243, %v241, 0
  %v254 = vsel %vm243, %v242, 0
  %256 = vmatprep.subr.mxu0 0.0
  %257 = vmatpush1.msra.mxu0 %v228
  %258 = vmatprep.subr.mxu0 0.0
  %259 = vmatpush1.msra.mxu0 %v231
  %260 = vmatprep.subr.mxu0 0.0
  %261 = vmatpush1.msra.mxu0 0.0
  %262 = vmatprep.subr.mxu0 0.0
  %263 = vmatpush1.msra.mxu0 0.0
  %264 = vmatprep.subr.mxu0 0.0
  %265 = vmatpush1.msra.mxu0 0.0
  %266 = vmatprep.subr.mxu0 0.0
  %267 = vmatpush1.msra.mxu0 0.0
  %268 = vmatprep.subr.mxu0 0.0
  %269 = vmatpush1.msra.mxu0 0.0
  %270 = vmatprep.subr.mxu0 0.0
  %271 = vmatpush1.msra.mxu0 0.0
  %272 = vmatprep.subr.mxu0 0.0
  %273 = vmatpush1.msra.mxu0 0.0
  %274 = vmatprep.subr.mxu0 0.0
  %275 = vmatpush1.msra.mxu0 0.0
  %276 = vmatprep.subr.mxu0 0.0
  %277 = vmatpush1.msra.mxu0 0.0
  %278 = vmatprep.subr.mxu0 0.0
  %279 = vmatpush1.msra.mxu0 0.0
  %280 = vmatprep.subr.mxu0 0.0
  %281 = vmatpush1.msra.mxu0 0.0
  %282 = vmatprep.subr.mxu0 0.0
  %283 = vmatpush1.msra.mxu0 0.0
  %284 = vmatprep.subr.mxu0 0.0
  %285 = vmatpush1.msra.mxu0 0.0
  %286 = vmatprep.subr.mxu0 0.0
  %287 = vmatpush1.msra.mxu0 0.0
  %288 = vmatprep.subr.mxu0 0.0
  %289 = vmatpush1.msra.mxu0 0.0
  %290 = vmatprep.subr.mxu0 0.0
  %291 = vmatpush1.msra.mxu0 0.0
  %292 = vmatprep.subr.mxu0 0.0
  %293 = vmatpush1.msra.mxu0 0.0
  %294 = vmatprep.subr.mxu0 0.0
  %295 = vmatpush1.msra.mxu0 0.0
  %296 = vmatprep.subr.mxu0 0.0
  %297 = vmatpush1.msra.mxu0 0.0
  %298 = vmatprep.subr.mxu0 0.0
  %299 = vmatpush1.msra.mxu0 0.0
  %300 = vmatprep.subr.mxu0 0.0
  %301 = vmatpush1.msra.mxu0 0.0
  %302 = vmatprep.subr.mxu0 0.0
  %303 = vmatpush1.msra.mxu0 0.0
  %304 = vmatprep.subr.mxu0 0.0
  %305 = vmatpush1.msra.mxu0 0.0
  %306 = vmatprep.subr.mxu0 0.0
  %307 = vmatpush1.msra.mxu0 0.0
  %308 = vmatprep.subr.mxu0 0.0
  %309 = vmatpush1.msra.mxu0 0.0
  %310 = vmatprep.subr.mxu0 0.0
  %311 = vmatpush1.msra.mxu0 0.0
  %312 = vmatprep.subr.mxu0 0.0
  %313 = vmatpush1.msra.mxu0 0.0
  %314 = vmatprep.subr.mxu0 0.0
  %315 = vmatpush1.msra.mxu0 0.0
  %316 = vmatprep.subr.mxu0 0.0
  %317 = vmatpush1.msra.mxu0 0.0
  %318 = vmatprep.subr.mxu0 0.0
  %319 = vmatpush1.msra.mxu0 0.0
  %320 = vmatprep.mubr.f32.mxu0 0.0
  %321 = vmatmul.mubr.f32.gmra.mrb[0].mxu0 %v245
  %v322 = vpop.f32.mrb[0].mxu0
  %v323 = vadd.f32 0.0, %v322
  %v324 = vpop.f32.mrb[0].mxu0
  %325 = vmatprep.mubr.f32.mxu0 0.0
  %326 = vmatmul.mubr.f32.gmra.mrb[0].mxu0 %v248
  %v327 = vpop.f32.mrb[0].mxu0
  %v328 = vadd.f32 0.0, %v327
  %v329 = vpop.f32.mrb[0].mxu0
  %330 = vmatprep.mubr.f32.mxu0 0.0
  %331 = vmatmul.mubr.f32.gmra.mrb[0].mxu0 %v251
  %v332 = vpop.f32.mrb[0].mxu0
  %v333 = vadd.f32 0.0, %v332
  %v334 = vpop.f32.mrb[0].mxu0
  %335 = vmatprep.mubr.f32.mxu0 0.0
  %336 = vmatmul.mubr.f32.gmra.mrb[0].mxu0 %v254
  %v337 = vpop.f32.mrb[0].mxu0
  %v338 = vadd.f32 0.0, %v337
  %v339 = vpop.f32.mrb[0].mxu0
  %340 = vdwg.mxu0
  %v342 = vsel %vm243, %v234, 0
  %v345 = vsel %vm243, %v235, 0
  %v348 = vsel %vm243, %v236, 0
  %v351 = vsel %vm243, %v237, 0
  %353 = vmatprep.subr.mxu0 0.0
  %354 = vmatpush1.msra.mxu0 %v138
  %355 = vmatprep.subr.mxu0 0.0
  %356 = vmatpush1.msra.mxu0 %v141
  %357 = vmatprep.subr.mxu0 0.0
  %358 = vmatpush1.msra.mxu0 0.0
  %359 = vmatprep.subr.mxu0 0.0
  %360 = vmatpush1.msra.mxu0 0.0
  %361 = vmatprep.subr.mxu0 0.0
  %362 = vmatpush1.msra.mxu0 0.0
  %363 = vmatprep.subr.mxu0 0.0
  %364 = vmatpush1.msra.mxu0 0.0
  %365 = vmatprep.subr.mxu0 0.0
  %366 = vmatpush1.msra.mxu0 0.0
  %367 = vmatprep.subr.mxu0 0.0
  %368 = vmatpush1.msra.mxu0 0.0
  %369 = vmatprep.subr.mxu0 0.0
  %370 = vmatpush1.msra.mxu0 0.0
  %371 = vmatprep.subr.mxu0 0.0
  %372 = vmatpush1.msra.mxu0 0.0
  %373 = vmatprep.subr.mxu0 0.0
  %374 = vmatpush1.msra.mxu0 0.0
  %375 = vmatprep.subr.mxu0 0.0
  %376 = vmatpush1.msra.mxu0 0.0
  %377 = vmatprep.subr.mxu0 0.0
  %378 = vmatpush1.msra.mxu0 0.0
  %379 = vmatprep.subr.mxu0 0.0
  %380 = vmatpush1.msra.mxu0 0.0
  %381 = vmatprep.subr.mxu0 0.0
  %382 = vmatpush1.msra.mxu0 0.0
  %383 = vmatprep.subr.mxu0 0.0
  %384 = vmatpush1.msra.mxu0 0.0
  %385 = vmatprep.subr.mxu0 0.0
  %386 = vmatpush1.msra.mxu0 0.0
  %387 = vmatprep.subr.mxu0 0.0
  %388 = vmatpush1.msra.mxu0 0.0
  %389 = vmatprep.subr.mxu0 0.0
  %390 = vmatpush1.msra.mxu0 0.0
  %391 = vmatprep.subr.mxu0 0.0
  %392 = vmatpush1.msra.mxu0 0.0
  %393 = vmatprep.subr.mxu0 0.0
  %394 = vmatpush1.msra.mxu0 0.0
  %395 = vmatprep.subr.mxu0 0.0
  %396 = vmatpush1.msra.mxu0 0.0
  %397 = vmatprep.subr.mxu0 0.0
  %398 = vmatpush1.msra.mxu0 0.0
  %399 = vmatprep.subr.mxu0 0.0
  %400 = vmatpush1.msra.mxu0 0.0
  %401 = vmatprep.subr.mxu0 0.0
  %402 = vmatpush1.msra.mxu0 0.0
  %403 = vmatprep.subr.mxu0 0.0
  %404 = vmatpush1.msra.mxu0 0.0
  %405 = vmatprep.subr.mxu0 0.0
  %406 = vmatpush1.msra.mxu0 0.0
  %407 = vmatprep.subr.mxu0 0.0
  %408 = vmatpush1.msra.mxu0 0.0
  %409 = vmatprep.subr.mxu0 0.0
  %410 = vmatpush1.msra.mxu0 0.0
  %411 = vmatprep.subr.mxu0 0.0
  %412 = vmatpush1.msra.mxu0 0.0
  %413 = vmatprep.subr.mxu0 0.0
  %414 = vmatpush1.msra.mxu0 0.0
  %415 = vmatprep.subr.mxu0 0.0
  %416 = vmatpush1.msra.mxu0 0.0
  %417 = vmatprep.mubr.f32.mxu0 0.0
  %418 = vmatmul.mubr.f32.gmra.mrb[0].mxu0 %v342
  %v419 = vpop.f32.mrb[0].mxu0
  %v420 = vadd.f32 %v323, %v419
  %v421 = vpop.f32.mrb[0].mxu0
  %422 = vmatprep.mubr.f32.mxu0 0.0
  %423 = vmatmul.mubr.f32.gmra.mrb[0].mxu0 %v345
  %v424 = vpop.f32.mrb[0].mxu0
  %v425 = vadd.f32 %v328, %v424
  %v426 = vpop.f32.mrb[0].mxu0
  %427 = vmatprep.mubr.f32.mxu0 0.0
  %428 = vmatmul.mubr.f32.gmra.mrb[0].mxu0 %v348
  %v429 = vpop.f32.mrb[0].mxu0
  %v430 = vadd.f32 %v333, %v429
  %v431 = vpop.f32.mrb[0].mxu0
  %432 = vmatprep.mubr.f32.mxu0 0.0
  %433 = vmatmul.mubr.f32.gmra.mrb[0].mxu0 %v351
  %v434 = vpop.f32.mrb[0].mxu0
  %v435 = vadd.f32 %v338, %v434
  %v436 = vpop.f32.mrb[0].mxu0
  %437 = vdwg.mxu0
  %v438 = vlaneseq
  %v439 = vshrl.u32 %v438, 7
  %v440 = vsub.s32 0, %v439
  %v441 = vrot.slane %v39, %v440
  %v442 = vadd.f32 %v420, %v441
  %v443 = vadd.f32 %v425, %v441
  %v444 = vadd.f32 %v430, %v441
  %v445 = vadd.f32 %v435, %v441
  %v446 = vld [vmem:[%s1] sm:$0xff]
  %v447 = vld [vmem:[%s1 + $0x8] sm:$0xff]
  %v448 = vld [vmem:[%s1 + $0x10] sm:$0xff]
  %v449 = vld [vmem:[%s1 + $0x18] sm:$0xff]
  %v450 = vunpack.c.l.bf16 %v446
  %v451 = vunpack.c.h.bf16 %v446
  %v452 = vunpack.c.l.bf16 %v447
  %v453 = vunpack.c.h.bf16 %v447
  %v454 = vunpack.c.l.bf16 %v448
  %v455 = vunpack.c.h.bf16 %v448
  %v456 = vunpack.c.l.bf16 %v449
  %v457 = vunpack.c.h.bf16 %v449
  %vm466 = vcmask 1040384
  %v467 = vrot.slane %v450, 7
  %v468 = vrot.slane %v451, 7
  %v469 = vrot.slane %v452, 7
  %v470 = vsel %vm466, %v467, %v469
  %v471 = vrot.slane %v453, 7
  %v472 = vsel %vm466, %v468, %v471
  %v473 = vrot.slane %v454, 7
  %v474 = vsel %vm466, %v469, %v473
  %v475 = vrot.slane %v455, 7
  %v476 = vsel %vm466, %v471, %v475
  %v477 = vrot.slane %v456, 7
  %v478 = vsel %vm466, %v473, %v477
  %v479 = vrot.slane %v457, 7
  %v480 = vsel %vm466, %v475, %v479
  %v489 = vsel %vm466, 0.0, %v467
  %v490 = vsel %vm466, 0.0, %v468
  %492 = vset.pattern.permute.xlu0 0
  %493 = vperm.xlu0 %492, %v40
  %v494 = vpop.permute.xlu0 %493
  %497 = vset.pattern.permute.xlu0 0
  %498 = vperm.xlu0 %497, %v41
  %v499 = vpop.permute.xlu0 %498
  %502 = vset.pattern.permute.xlu0 0
  %503 = vperm.xlu0 %502, %v42
  %v504 = vpop.permute.xlu0 %503
  %507 = vset.pattern.permute.xlu0 0
  %508 = vperm.xlu0 %507, %v43
  %v509 = vpop.permute.xlu0 %508
  %v511 = vmul.f32 %v489, %v494
  %v512 = vmul.f32 %v490, %v494
  %v513 = vmul.f32 %v470, %v499
  %v514 = vmul.f32 %v472, %v499
  %v515 = vmul.f32 %v474, %v504
  %v516 = vmul.f32 %v476, %v504
  %v517 = vmul.f32 %v478, %v509
  %v518 = vmul.f32 %v480, %v509
  %vm519 = vcmask 1046528
  %v520 = vrot.slane %v450, 1
  %v521 = vrot.slane %v452, 1
  %v522 = vsel %vm519, %v520, %v521
  %v523 = vrot.slane %v451, 1
  %v524 = vrot.slane %v453, 1
  %v525 = vsel %vm519, %v523, %v524
  %v526 = vrot.slane %v454, 1
  %v527 = vsel %vm519, %v521, %v526
  %v528 = vrot.slane %v455, 1
  %v529 = vsel %vm519, %v524, %v528
  %v530 = vrot.slane %v456, 1
  %v531 = vsel %vm519, %v526, %v530
  %v532 = vrot.slane %v457, 1
  %v533 = vsel %vm519, %v528, %v532
  %v542 = vsel %vm519, %v530, 0.0
  %v543 = vsel %vm519, %v532, 0.0
  %544 = vset.pattern.permute.xlu0 1
  %545 = vperm.xlu0 %544, %v40
  %v546 = vpop.permute.xlu0 %545
  %548 = vset.pattern.permute.xlu0 1
  %549 = vperm.xlu0 %548, %v41
  %v550 = vpop.permute.xlu0 %549
  %552 = vset.pattern.permute.xlu0 1
  %553 = vperm.xlu0 %552, %v42
  %v554 = vpop.permute.xlu0 %553
  %556 = vset.pattern.permute.xlu0 1
  %557 = vperm.xlu0 %556, %v43
  %v558 = vpop.permute.xlu0 %557
  %v560 = vmul.f32 %v522, %v546
  %v561 = vmul.f32 %v525, %v546
  %v562 = vmul.f32 %v527, %v550
  %v563 = vmul.f32 %v529, %v550
  %v564 = vmul.f32 %v531, %v554
  %v565 = vmul.f32 %v533, %v554
  %v566 = vmul.f32 %v542, %v558
  %v567 = vmul.f32 %v543, %v558
  %v568 = vpack.c.bf16 %v513, %v511
  %v569 = vpack.c.bf16 %v514, %v512
  %v570 = vpack.c.bf16 %v517, %v515
  %v571 = vpack.c.bf16 %v518, %v516
  %v572 = vld [vmem:[%s4] sm:$0xf]
  %v573 = vld [vmem:[%s4 + $0x4] sm:$0xf]
  %v574 = vld [vmem:[%s4 + $0x8] sm:$0xf]
  %v575 = vld [vmem:[%s4 + $0xc] sm:$0xf]
  %v576 = vld [vmem:[%s4 + $0x10] sm:$0xf]
  %v577 = vld [vmem:[%s4 + $0x14] sm:$0xf]
  %v578 = vld [vmem:[%s4 + $0x18] sm:$0xf]
  %v579 = vld [vmem:[%s4 + $0x1c] sm:$0xf]
  %v580 = vld [vmem:[%s4 + $0x20] sm:$0xf]
  %v581 = vld [vmem:[%s4 + $0x24] sm:$0xf]
  %v582 = vld [vmem:[%s4 + $0x28] sm:$0xf]
  %v583 = vld [vmem:[%s4 + $0x2c] sm:$0xf]
  %v584 = vld [vmem:[%s4 + $0x30] sm:$0xf]
  %v585 = vld [vmem:[%s4 + $0x34] sm:$0xf]
  %v586 = vld [vmem:[%s4 + $0x38] sm:$0xf]
  %v587 = vld [vmem:[%s4 + $0x3c] sm:$0xf]
  %v588 = vld [vmem:[%s4 + $0x40] sm:$0xf]
  %v589 = vld [vmem:[%s4 + $0x44] sm:$0xf]
  %v590 = vld [vmem:[%s4 + $0x48] sm:$0xf]
  %v591 = vld [vmem:[%s4 + $0x4c] sm:$0xf]
  %v592 = vld [vmem:[%s4 + $0x50] sm:$0xf]
  %v593 = vld [vmem:[%s4 + $0x54] sm:$0xf]
  %v594 = vld [vmem:[%s4 + $0x58] sm:$0xf]
  %v595 = vld [vmem:[%s4 + $0x5c] sm:$0xf]
  %s596 = scalar_lea.vmem %s4, 96
  %v597 = vld [vmem:[%s596] sm:$0xf]
  %v598 = vld [vmem:[%s596 + $0x4] sm:$0xf]
  %v599 = vld [vmem:[%s596 + $0x8] sm:$0xf]
  %v600 = vld [vmem:[%s596 + $0xc] sm:$0xf]
  %v601 = vld [vmem:[%s596 + $0x10] sm:$0xf]
  %v602 = vld [vmem:[%s596 + $0x14] sm:$0xf]
  %v603 = vld [vmem:[%s596 + $0x18] sm:$0xf]
  %v604 = vld [vmem:[%s596 + $0x1c] sm:$0xf]
  %v605 = vld [vmem:[%s596 + $0x20] sm:$0xf]
  %v606 = vld [vmem:[%s596 + $0x24] sm:$0xf]
  %v607 = vld [vmem:[%s596 + $0x28] sm:$0xf]
  %v608 = vld [vmem:[%s596 + $0x2c] sm:$0xf]
  %v609 = vld [vmem:[%s596 + $0x30] sm:$0xf]
  %v610 = vld [vmem:[%s596 + $0x34] sm:$0xf]
  %v611 = vld [vmem:[%s596 + $0x38] sm:$0xf]
  %v612 = vld [vmem:[%s596 + $0x3c] sm:$0xf]
  %v613 = vld [vmem:[%s596 + $0x40] sm:$0xf]
  %v614 = vld [vmem:[%s596 + $0x44] sm:$0xf]
  %v615 = vld [vmem:[%s596 + $0x48] sm:$0xf]
  %v616 = vld [vmem:[%s596 + $0x4c] sm:$0xf]
  %v617 = vld [vmem:[%s596 + $0x50] sm:$0xf]
  %v618 = vld [vmem:[%s596 + $0x54] sm:$0xf]
  %v619 = vld [vmem:[%s596 + $0x58] sm:$0xf]
  %v620 = vld [vmem:[%s596 + $0x5c] sm:$0xf]
  %v625 = vunpack.c.l.b16 %v446
  %v626 = vunpack.c.h.b16 %v446
  %v627 = vunpack.c.l.b16 %v447
  %v628 = vunpack.c.h.b16 %v447
  %v629 = vunpack.c.l.b16 %v448
  %v630 = vunpack.c.h.b16 %v448
  %v631 = vunpack.c.l.b16 %v449
  %v632 = vunpack.c.h.b16 %v449
  %v633 = vpack.c.b16 %v627, %v625
  %v634 = vpack.c.b16 %v628, %v626
  %v635 = vpack.c.b16 %v631, %v629
  %v636 = vpack.c.b16 %v632, %v630
  %v663 = vunpack.c.l.b16 %v597
  %v664 = vunpack.c.l.b16 %v598
  %v665 = vunpack.c.l.b16 %v599
  %v666 = vunpack.c.l.b16 %v600
  %v667 = vunpack.c.l.b16 %v601
  %v668 = vunpack.c.l.b16 %v602
  %v669 = vunpack.c.l.b16 %v603
  %v670 = vunpack.c.l.b16 %v604
  %v671 = vunpack.c.l.b16 %v605
  %v672 = vunpack.c.l.b16 %v606
  %v673 = vunpack.c.l.b16 %v607
  %v674 = vunpack.c.l.b16 %v608
  %v675 = vunpack.c.l.b16 %v609
  %v676 = vunpack.c.l.b16 %v610
  %v677 = vunpack.c.l.b16 %v611
  %v678 = vunpack.c.l.b16 %v612
  %v679 = vunpack.c.l.b16 %v613
  %v680 = vunpack.c.l.b16 %v614
  %v681 = vunpack.c.l.b16 %v615
  %v682 = vunpack.c.l.b16 %v616
  %v683 = vunpack.c.l.b16 %v617
  %v684 = vunpack.c.l.b16 %v618
  %v685 = vunpack.c.l.b16 %v619
  %v686 = vunpack.c.l.b16 %v620
  %v687 = vpack.c.b16 %v664, %v663
  %v688 = vpack.c.b16 %v666, %v665
  %v689 = vpack.c.b16 %v668, %v667
  %v690 = vpack.c.b16 %v670, %v669
  %v691 = vpack.c.b16 %v672, %v671
  %v692 = vpack.c.b16 %v674, %v673
  %v693 = vpack.c.b16 %v676, %v675
  %v694 = vpack.c.b16 %v678, %v677
  %v695 = vpack.c.b16 %v680, %v679
  %v696 = vpack.c.b16 %v682, %v681
  %v697 = vpack.c.b16 %v684, %v683
  %v698 = vpack.c.b16 %v686, %v685
  %vm711 = vcmask 523264
  %v713 = vsel %vm711, %v634, 0
  %v716 = vsel %vm711, %v636, 0
  %718 = vmatprep.subr.bf16.mxu0 0
  %719 = vmatpush1.bf16.msra.mxu0 %v687
  %720 = vmatprep.subr.bf16.mxu0 0
  %721 = vmatpush1.bf16.msra.mxu0 %v688
  %722 = vmatprep.subr.bf16.mxu0 0
  %723 = vmatpush1.bf16.msra.mxu0 %v689
  %724 = vmatprep.subr.bf16.mxu0 0
  %725 = vmatpush1.bf16.msra.mxu0 %v690
  %726 = vmatprep.subr.bf16.mxu0 0
  %727 = vmatpush1.bf16.msra.mxu0 %v691
  %728 = vmatprep.subr.bf16.mxu0 0
  %729 = vmatpush1.bf16.msra.mxu0 %v692
  %730 = vmatprep.subr.bf16.mxu0 0
  %731 = vmatpush1.bf16.msra.mxu0 %v693
  %732 = vmatprep.subr.bf16.mxu0 0
  %733 = vmatpush1.bf16.msra.mxu0 %v694
  %734 = vmatprep.subr.bf16.mxu0 0
  %735 = vmatpush1.bf16.msra.mxu0 %v695
  %736 = vmatprep.subr.bf16.mxu0 0
  %737 = vmatpush1.bf16.msra.mxu0 %v696
  %738 = vmatprep.subr.bf16.mxu0 0
  %739 = vmatpush1.bf16.msra.mxu0 %v697
  %740 = vmatprep.subr.bf16.mxu0 0
  %741 = vmatpush1.bf16.msra.mxu0 %v698
  %742 = vmatprep.subr.bf16.mxu0 0
  %743 = vmatpush1.bf16.msra.mxu0 0
  %744 = vmatprep.subr.bf16.mxu0 0
  %745 = vmatpush1.bf16.msra.mxu0 0
  %746 = vmatprep.subr.bf16.mxu0 0
  %747 = vmatpush1.bf16.msra.mxu0 0
  %748 = vmatprep.subr.bf16.mxu0 0
  %749 = vmatpush1.bf16.msra.mxu0 0
  %750 = vmatprep.mubr.bf16.mxu0 %v713
  %751 = vmatmul.mubr.bf16.gmra.mrb[0].mxu0 %v633
  %v752 = vpop.f32.mrb[0].mxu0
  %v753 = vadd.f32 0.0, %v752
  %v754 = vpop.f32.mrb[0].mxu0
  %v755 = vpop.f32.mrb[0].mxu0
  %v756 = vadd.f32 0.0, %v755
  %v757 = vpop.f32.mrb[0].mxu0
  %758 = vmatprep.mubr.bf16.mxu0 %v716
  %759 = vmatmul.mubr.bf16.gmra.mrb[0].mxu0 %v635
  %v760 = vpop.f32.mrb[0].mxu0
  %v761 = vadd.f32 0.0, %v760
  %v762 = vpop.f32.mrb[0].mxu0
  %v763 = vpop.f32.mrb[0].mxu0
  %v764 = vadd.f32 0.0, %v763
  %v765 = vpop.f32.mrb[0].mxu0
  %766 = vdwg.mxu0
  %v791 = vunpack.c.l.b16 %v572
  %v792 = vunpack.c.l.b16 %v573
  %v793 = vunpack.c.l.b16 %v574
  %v794 = vunpack.c.l.b16 %v575
  %v795 = vunpack.c.l.b16 %v576
  %v796 = vunpack.c.l.b16 %v577
  %v797 = vunpack.c.l.b16 %v578
  %v798 = vunpack.c.l.b16 %v579
  %v799 = vunpack.c.l.b16 %v580
  %v800 = vunpack.c.l.b16 %v581
  %v801 = vunpack.c.l.b16 %v582
  %v802 = vunpack.c.l.b16 %v583
  %v803 = vunpack.c.l.b16 %v584
  %v804 = vunpack.c.l.b16 %v585
  %v805 = vunpack.c.l.b16 %v586
  %v806 = vunpack.c.l.b16 %v587
  %v807 = vunpack.c.l.b16 %v588
  %v808 = vunpack.c.l.b16 %v589
  %v809 = vunpack.c.l.b16 %v590
  %v810 = vunpack.c.l.b16 %v591
  %v811 = vunpack.c.l.b16 %v592
  %v812 = vunpack.c.l.b16 %v593
  %v813 = vunpack.c.l.b16 %v594
  %v814 = vunpack.c.l.b16 %v595
  %v815 = vpack.c.b16 %v792, %v791
  %v816 = vpack.c.b16 %v794, %v793
  %v817 = vpack.c.b16 %v796, %v795
  %v818 = vpack.c.b16 %v798, %v797
  %v819 = vpack.c.b16 %v800, %v799
  %v820 = vpack.c.b16 %v802, %v801
  %v821 = vpack.c.b16 %v804, %v803
  %v822 = vpack.c.b16 %v806, %v805
  %v823 = vpack.c.b16 %v808, %v807
  %v824 = vpack.c.b16 %v810, %v809
  %v825 = vpack.c.b16 %v812, %v811
  %v826 = vpack.c.b16 %v814, %v813
  %v840 = vsel %vm711, %v569, 0
  %v843 = vsel %vm711, %v571, 0
  %845 = vmatprep.subr.bf16.mxu0 0
  %846 = vmatpush1.bf16.msra.mxu0 %v815
  %847 = vmatprep.subr.bf16.mxu0 0
  %848 = vmatpush1.bf16.msra.mxu0 %v816
  %849 = vmatprep.subr.bf16.mxu0 0
  %850 = vmatpush1.bf16.msra.mxu0 %v817
  %851 = vmatprep.subr.bf16.mxu0 0
  %852 = vmatpush1.bf16.msra.mxu0 %v818
  %853 = vmatprep.subr.bf16.mxu0 0
  %854 = vmatpush1.bf16.msra.mxu0 %v819
  %855 = vmatprep.subr.bf16.mxu0 0
  %856 = vmatpush1.bf16.msra.mxu0 %v820
  %857 = vmatprep.subr.bf16.mxu0 0
  %858 = vmatpush1.bf16.msra.mxu0 %v821
  %859 = vmatprep.subr.bf16.mxu0 0
  %860 = vmatpush1.bf16.msra.mxu0 %v822
  %861 = vmatprep.subr.bf16.mxu0 0
  %862 = vmatpush1.bf16.msra.mxu0 %v823
  %863 = vmatprep.subr.bf16.mxu0 0
  %864 = vmatpush1.bf16.msra.mxu0 %v824
  %865 = vmatprep.subr.bf16.mxu0 0
  %866 = vmatpush1.bf16.msra.mxu0 %v825
  %867 = vmatprep.subr.bf16.mxu0 0
  %868 = vmatpush1.bf16.msra.mxu0 %v826
  %869 = vmatprep.subr.bf16.mxu0 0
  %870 = vmatpush1.bf16.msra.mxu0 0
  %871 = vmatprep.subr.bf16.mxu0 0
  %872 = vmatpush1.bf16.msra.mxu0 0
  %873 = vmatprep.subr.bf16.mxu0 0
  %874 = vmatpush1.bf16.msra.mxu0 0
  %875 = vmatprep.subr.bf16.mxu0 0
  %876 = vmatpush1.bf16.msra.mxu0 0
  %877 = vmatprep.mubr.bf16.mxu0 %v840
  %878 = vmatmul.mubr.bf16.gmra.mrb[0].mxu0 %v568
  %v879 = vpop.f32.mrb[0].mxu0
  %v880 = vadd.f32 %v753, %v879
  %v881 = vpop.f32.mrb[0].mxu0
  %v882 = vpop.f32.mrb[0].mxu0
  %v883 = vadd.f32 %v756, %v882
  %v884 = vpop.f32.mrb[0].mxu0
  %885 = vmatprep.mubr.bf16.mxu0 %v843
  %886 = vmatmul.mubr.bf16.gmra.mrb[0].mxu0 %v570
  %v887 = vpop.f32.mrb[0].mxu0
  %v888 = vadd.f32 %v761, %v887
  %v889 = vpop.f32.mrb[0].mxu0
  %v890 = vpop.f32.mrb[0].mxu0
  %v891 = vadd.f32 %v764, %v890
  %v892 = vpop.f32.mrb[0].mxu0
  %893 = vdwg.mxu0
  %v894 = vpack.c.bf16 %v562, %v560
  %v895 = vpack.c.bf16 %v563, %v561
  %v896 = vpack.c.bf16 %v566, %v564
  %v897 = vpack.c.bf16 %v567, %v565
  %s898 = scalar_lea.vmem %s4, 192
  %v899 = vld [vmem:[%s898] sm:$0xf]
  %v900 = vld [vmem:[%s898 + $0x4] sm:$0xf]
  %v901 = vld [vmem:[%s898 + $0x8] sm:$0xf]
  %v902 = vld [vmem:[%s898 + $0xc] sm:$0xf]
  %v903 = vld [vmem:[%s898 + $0x10] sm:$0xf]
  %v904 = vld [vmem:[%s898 + $0x14] sm:$0xf]
  %v905 = vld [vmem:[%s898 + $0x18] sm:$0xf]
  %v906 = vld [vmem:[%s898 + $0x1c] sm:$0xf]
  %v907 = vld [vmem:[%s898 + $0x20] sm:$0xf]
  %v908 = vld [vmem:[%s898 + $0x24] sm:$0xf]
  %v909 = vld [vmem:[%s898 + $0x28] sm:$0xf]
  %v910 = vld [vmem:[%s898 + $0x2c] sm:$0xf]
  %v911 = vld [vmem:[%s898 + $0x30] sm:$0xf]
  %v912 = vld [vmem:[%s898 + $0x34] sm:$0xf]
  %v913 = vld [vmem:[%s898 + $0x38] sm:$0xf]
  %v914 = vld [vmem:[%s898 + $0x3c] sm:$0xf]
  %v915 = vld [vmem:[%s898 + $0x40] sm:$0xf]
  %v916 = vld [vmem:[%s898 + $0x44] sm:$0xf]
  %v917 = vld [vmem:[%s898 + $0x48] sm:$0xf]
  %v918 = vld [vmem:[%s898 + $0x4c] sm:$0xf]
  %v919 = vld [vmem:[%s898 + $0x50] sm:$0xf]
  %v920 = vld [vmem:[%s898 + $0x54] sm:$0xf]
  %v921 = vld [vmem:[%s898 + $0x58] sm:$0xf]
  %v922 = vld [vmem:[%s898 + $0x5c] sm:$0xf]
  %v947 = vunpack.c.l.b16 %v899
  %v948 = vunpack.c.l.b16 %v900
  %v949 = vunpack.c.l.b16 %v901
  %v950 = vunpack.c.l.b16 %v902
  %v951 = vunpack.c.l.b16 %v903
  %v952 = vunpack.c.l.b16 %v904
  %v953 = vunpack.c.l.b16 %v905
  %v954 = vunpack.c.l.b16 %v906
  %v955 = vunpack.c.l.b16 %v907
  %v956 = vunpack.c.l.b16 %v908
  %v957 = vunpack.c.l.b16 %v909
  %v958 = vunpack.c.l.b16 %v910
  %v959 = vunpack.c.l.b16 %v911
  %v960 = vunpack.c.l.b16 %v912
  %v961 = vunpack.c.l.b16 %v913
  %v962 = vunpack.c.l.b16 %v914
  %v963 = vunpack.c.l.b16 %v915
  %v964 = vunpack.c.l.b16 %v916
  %v965 = vunpack.c.l.b16 %v917
  %v966 = vunpack.c.l.b16 %v918
  %v967 = vunpack.c.l.b16 %v919
  %v968 = vunpack.c.l.b16 %v920
  %v969 = vunpack.c.l.b16 %v921
  %v970 = vunpack.c.l.b16 %v922
  %v971 = vpack.c.b16 %v948, %v947
  %v972 = vpack.c.b16 %v950, %v949
  %v973 = vpack.c.b16 %v952, %v951
  %v974 = vpack.c.b16 %v954, %v953
  %v975 = vpack.c.b16 %v956, %v955
  %v976 = vpack.c.b16 %v958, %v957
  %v977 = vpack.c.b16 %v960, %v959
  %v978 = vpack.c.b16 %v962, %v961
  %v979 = vpack.c.b16 %v964, %v963
  %v980 = vpack.c.b16 %v966, %v965
  %v981 = vpack.c.b16 %v968, %v967
  %v982 = vpack.c.b16 %v970, %v969
  %v996 = vsel %vm711, %v895, 0
  %v999 = vsel %vm711, %v897, 0
  %1001 = vmatprep.subr.bf16.mxu0 0
  %1002 = vmatpush1.bf16.msra.mxu0 %v971
  %1003 = vmatprep.subr.bf16.mxu0 0
  %1004 = vmatpush1.bf16.msra.mxu0 %v972
  %1005 = vmatprep.subr.bf16.mxu0 0
  %1006 = vmatpush1.bf16.msra.mxu0 %v973
  %1007 = vmatprep.subr.bf16.mxu0 0
  %1008 = vmatpush1.bf16.msra.mxu0 %v974
  %1009 = vmatprep.subr.bf16.mxu0 0
  %1010 = vmatpush1.bf16.msra.mxu0 %v975
  %1011 = vmatprep.subr.bf16.mxu0 0
  %1012 = vmatpush1.bf16.msra.mxu0 %v976
  %1013 = vmatprep.subr.bf16.mxu0 0
  %1014 = vmatpush1.bf16.msra.mxu0 %v977
  %1015 = vmatprep.subr.bf16.mxu0 0
  %1016 = vmatpush1.bf16.msra.mxu0 %v978
  %1017 = vmatprep.subr.bf16.mxu0 0
  %1018 = vmatpush1.bf16.msra.mxu0 %v979
  %1019 = vmatprep.subr.bf16.mxu0 0
  %1020 = vmatpush1.bf16.msra.mxu0 %v980
  %1021 = vmatprep.subr.bf16.mxu0 0
  %1022 = vmatpush1.bf16.msra.mxu0 %v981
  %1023 = vmatprep.subr.bf16.mxu0 0
  %1024 = vmatpush1.bf16.msra.mxu0 %v982
  %1025 = vmatprep.subr.bf16.mxu0 0
  %1026 = vmatpush1.bf16.msra.mxu0 0
  %1027 = vmatprep.subr.bf16.mxu0 0
  %1028 = vmatpush1.bf16.msra.mxu0 0
  %1029 = vmatprep.subr.bf16.mxu0 0
  %1030 = vmatpush1.bf16.msra.mxu0 0
  %1031 = vmatprep.subr.bf16.mxu0 0
  %1032 = vmatpush1.bf16.msra.mxu0 0
  %1033 = vmatprep.mubr.bf16.mxu0 %v996
  %1034 = vmatmul.mubr.bf16.gmra.mrb[0].mxu0 %v894
  %v1035 = vpop.f32.mrb[0].mxu0
  %v1036 = vadd.f32 0.0, %v1035
  %v1037 = vpop.f32.mrb[0].mxu0
  %v1038 = vpop.f32.mrb[0].mxu0
  %v1039 = vadd.f32 0.0, %v1038
  %v1040 = vpop.f32.mrb[0].mxu0
  %1041 = vmatprep.mubr.bf16.mxu0 %v999
  %1042 = vmatmul.mubr.bf16.gmra.mrb[0].mxu0 %v896
  %v1043 = vpop.f32.mrb[0].mxu0
  %v1044 = vadd.f32 0.0, %v1043
  %v1045 = vpop.f32.mrb[0].mxu0
  %v1046 = vpop.f32.mrb[0].mxu0
  %v1047 = vadd.f32 0.0, %v1046
  %v1048 = vpop.f32.mrb[0].mxu0
  %1049 = vdwg.mxu0
  %v1050 = vadd.f32 %v880, %v1036
  %v1051 = vadd.f32 %v883, %v1039
  %v1052 = vadd.f32 %v888, %v1044
  %v1053 = vadd.f32 %v891, %v1047
  %v1054 = vlaneseq
  %v1055 = vshrl.u32 %v1054, 7
  %v1056 = vsub.s32 1, %v1055
  %v1057 = vrot.slane %v39, %v1056
  %v1058 = vadd.f32 %v1050, %v1057
  %v1059 = vadd.f32 %v1051, %v1057
  %v1060 = vadd.f32 %v1052, %v1057
  %v1061 = vadd.f32 %v1053, %v1057
  %v1066 = vrot.slane %v442, 7
  %v1067 = vrot.slane %v443, 7
  %v1068 = vsel %vm466, %v1066, %v1067
  %v1069 = vrot.slane %v444, 7
  %v1070 = vsel %vm466, %v1067, %v1069
  %v1071 = vrot.slane %v445, 7
  %v1072 = vsel %vm466, %v1069, %v1071
  %v1077 = vsel %vm466, 0.0, %v1066
  %v1078 = vmul.f32 %v1077, %v494
  %v1079 = vmul.f32 %v1068, %v499
  %v1080 = vmul.f32 %v1070, %v504
  %v1081 = vmul.f32 %v1072, %v509
  %v1082 = vrot.slane %v442, 1
  %v1083 = vrot.slane %v443, 1
  %v1084 = vsel %vm519, %v1082, %v1083
  %v1085 = vrot.slane %v444, 1
  %v1086 = vsel %vm519, %v1083, %v1085
  %v1087 = vrot.slane %v445, 1
  %v1088 = vsel %vm519, %v1085, %v1087
  %v1093 = vsel %vm519, %v1087, 0.0
  %v1094 = vmul.f32 %v1084, %v546
  %v1095 = vmul.f32 %v1086, %v550
  %v1096 = vmul.f32 %v1088, %v554
  %v1097 = vmul.f32 %v1093, %v558
  %v1098 = vpack.c.bf16 %v1079, %v1078
  %v1099 = vpack.c.bf16 %v1081, %v1080
  %v1100 = vld [vmem:[%s5] sm:$0xf]
  %v1101 = vld [vmem:[%s5 + $0x4] sm:$0xf]
  %v1102 = vld [vmem:[%s5 + $0x8] sm:$0xf]
  %v1103 = vld [vmem:[%s5 + $0xc] sm:$0xf]
  %v1104 = vld [vmem:[%s5 + $0x10] sm:$0xf]
  %v1105 = vld [vmem:[%s5 + $0x14] sm:$0xf]
  %v1106 = vld [vmem:[%s5 + $0x18] sm:$0xf]
  %v1107 = vld [vmem:[%s5 + $0x1c] sm:$0xf]
  %v1108 = vld [vmem:[%s5 + $0x20] sm:$0xf]
  %v1109 = vld [vmem:[%s5 + $0x24] sm:$0xf]
  %v1110 = vld [vmem:[%s5 + $0x28] sm:$0xf]
  %v1111 = vld [vmem:[%s5 + $0x2c] sm:$0xf]
  %v1112 = vld [vmem:[%s5 + $0x30] sm:$0xf]
  %v1113 = vld [vmem:[%s5 + $0x34] sm:$0xf]
  %v1114 = vld [vmem:[%s5 + $0x38] sm:$0xf]
  %v1115 = vld [vmem:[%s5 + $0x3c] sm:$0xf]
  %v1116 = vpack.c.bf16 %v443, %v442
  %v1117 = vpack.c.bf16 %v445, %v444
  %s1118 = scalar_lea.vmem %s5, 64
  %v1119 = vld [vmem:[%s1118] sm:$0xf]
  %v1120 = vld [vmem:[%s1118 + $0x4] sm:$0xf]
  %v1121 = vld [vmem:[%s1118 + $0x8] sm:$0xf]
  %v1122 = vld [vmem:[%s1118 + $0xc] sm:$0xf]
  %v1123 = vld [vmem:[%s1118 + $0x10] sm:$0xf]
  %v1124 = vld [vmem:[%s1118 + $0x14] sm:$0xf]
  %v1125 = vld [vmem:[%s1118 + $0x18] sm:$0xf]
  %v1126 = vld [vmem:[%s1118 + $0x1c] sm:$0xf]
  %v1127 = vld [vmem:[%s1118 + $0x20] sm:$0xf]
  %v1128 = vld [vmem:[%s1118 + $0x24] sm:$0xf]
  %v1129 = vld [vmem:[%s1118 + $0x28] sm:$0xf]
  %v1130 = vld [vmem:[%s1118 + $0x2c] sm:$0xf]
  %v1131 = vld [vmem:[%s1118 + $0x30] sm:$0xf]
  %v1132 = vld [vmem:[%s1118 + $0x34] sm:$0xf]
  %v1133 = vld [vmem:[%s1118 + $0x38] sm:$0xf]
  %v1134 = vld [vmem:[%s1118 + $0x3c] sm:$0xf]
  %v1151 = vunpack.c.l.b16 %v1119
  %v1152 = vunpack.c.l.b16 %v1120
  %v1153 = vunpack.c.l.b16 %v1121
  %v1154 = vunpack.c.l.b16 %v1122
  %v1155 = vunpack.c.l.b16 %v1123
  %v1156 = vunpack.c.l.b16 %v1124
  %v1157 = vunpack.c.l.b16 %v1125
  %v1158 = vunpack.c.l.b16 %v1126
  %v1159 = vunpack.c.l.b16 %v1127
  %v1160 = vunpack.c.l.b16 %v1128
  %v1161 = vunpack.c.l.b16 %v1129
  %v1162 = vunpack.c.l.b16 %v1130
  %v1163 = vunpack.c.l.b16 %v1131
  %v1164 = vunpack.c.l.b16 %v1132
  %v1165 = vunpack.c.l.b16 %v1133
  %v1166 = vunpack.c.l.b16 %v1134
  %v1167 = vpack.c.b16 %v1152, %v1151
  %v1168 = vpack.c.b16 %v1154, %v1153
  %v1169 = vpack.c.b16 %v1156, %v1155
  %v1170 = vpack.c.b16 %v1158, %v1157
  %v1171 = vpack.c.b16 %v1160, %v1159
  %v1172 = vpack.c.b16 %v1162, %v1161
  %v1173 = vpack.c.b16 %v1164, %v1163
  %v1174 = vpack.c.b16 %v1166, %v1165
  %1183 = vmatprep.subr.bf16.mxu0 0
  %1184 = vmatpush1.bf16.msra.mxu0 %v1167
  %1185 = vmatprep.subr.bf16.mxu0 0
  %1186 = vmatpush1.bf16.msra.mxu0 %v1168
  %1187 = vmatprep.subr.bf16.mxu0 0
  %1188 = vmatpush1.bf16.msra.mxu0 %v1169
  %1189 = vmatprep.subr.bf16.mxu0 0
  %1190 = vmatpush1.bf16.msra.mxu0 %v1170
  %1191 = vmatprep.subr.bf16.mxu0 0
  %1192 = vmatpush1.bf16.msra.mxu0 %v1171
  %1193 = vmatprep.subr.bf16.mxu0 0
  %1194 = vmatpush1.bf16.msra.mxu0 %v1172
  %1195 = vmatprep.subr.bf16.mxu0 0
  %1196 = vmatpush1.bf16.msra.mxu0 %v1173
  %1197 = vmatprep.subr.bf16.mxu0 0
  %1198 = vmatpush1.bf16.msra.mxu0 %v1174
  %1199 = vmatprep.subr.bf16.mxu0 0
  %1200 = vmatpush1.bf16.msra.mxu0 0
  %1201 = vmatprep.subr.bf16.mxu0 0
  %1202 = vmatpush1.bf16.msra.mxu0 0
  %1203 = vmatprep.subr.bf16.mxu0 0
  %1204 = vmatpush1.bf16.msra.mxu0 0
  %1205 = vmatprep.subr.bf16.mxu0 0
  %1206 = vmatpush1.bf16.msra.mxu0 0
  %1207 = vmatprep.subr.bf16.mxu0 0
  %1208 = vmatpush1.bf16.msra.mxu0 0
  %1209 = vmatprep.subr.bf16.mxu0 0
  %1210 = vmatpush1.bf16.msra.mxu0 0
  %1211 = vmatprep.subr.bf16.mxu0 0
  %1212 = vmatpush1.bf16.msra.mxu0 0
  %1213 = vmatprep.subr.bf16.mxu0 0
  %1214 = vmatpush1.bf16.msra.mxu0 0
  %1215 = vmatprep.mubr.bf16.mxu0 0
  %1216 = vmatmul.mubr.bf16.gmra.mrb[0].mxu0 %v1116
  %v1217 = vpop.f32.mrb[0].mxu0
  %v1218 = vadd.f32 0.0, %v1217
  %v1219 = vpop.f32.mrb[0].mxu0
  %v1220 = vpop.f32.mrb[0].mxu0
  %v1221 = vadd.f32 0.0, %v1220
  %v1222 = vpop.f32.mrb[0].mxu0
  %1223 = vmatprep.mubr.bf16.mxu0 0
  %1224 = vmatmul.mubr.bf16.gmra.mrb[0].mxu0 %v1117
  %v1225 = vpop.f32.mrb[0].mxu0
  %v1226 = vadd.f32 0.0, %v1225
  %v1227 = vpop.f32.mrb[0].mxu0
  %v1228 = vpop.f32.mrb[0].mxu0
  %v1229 = vadd.f32 0.0, %v1228
  %v1230 = vpop.f32.mrb[0].mxu0
  %1231 = vdwg.mxu0
  %v1248 = vunpack.c.l.b16 %v1100
  %v1249 = vunpack.c.l.b16 %v1101
  %v1250 = vunpack.c.l.b16 %v1102
  %v1251 = vunpack.c.l.b16 %v1103
  %v1252 = vunpack.c.l.b16 %v1104
  %v1253 = vunpack.c.l.b16 %v1105
  %v1254 = vunpack.c.l.b16 %v1106
  %v1255 = vunpack.c.l.b16 %v1107
  %v1256 = vunpack.c.l.b16 %v1108
  %v1257 = vunpack.c.l.b16 %v1109
  %v1258 = vunpack.c.l.b16 %v1110
  %v1259 = vunpack.c.l.b16 %v1111
  %v1260 = vunpack.c.l.b16 %v1112
  %v1261 = vunpack.c.l.b16 %v1113
  %v1262 = vunpack.c.l.b16 %v1114
  %v1263 = vunpack.c.l.b16 %v1115
  %v1264 = vpack.c.b16 %v1249, %v1248
  %v1265 = vpack.c.b16 %v1251, %v1250
  %v1266 = vpack.c.b16 %v1253, %v1252
  %v1267 = vpack.c.b16 %v1255, %v1254
  %v1268 = vpack.c.b16 %v1257, %v1256
  %v1269 = vpack.c.b16 %v1259, %v1258
  %v1270 = vpack.c.b16 %v1261, %v1260
  %v1271 = vpack.c.b16 %v1263, %v1262
  %1280 = vmatprep.subr.bf16.mxu0 0
  %1281 = vmatpush1.bf16.msra.mxu0 %v1264
  %1282 = vmatprep.subr.bf16.mxu0 0
  %1283 = vmatpush1.bf16.msra.mxu0 %v1265
  %1284 = vmatprep.subr.bf16.mxu0 0
  %1285 = vmatpush1.bf16.msra.mxu0 %v1266
  %1286 = vmatprep.subr.bf16.mxu0 0
  %1287 = vmatpush1.bf16.msra.mxu0 %v1267
  %1288 = vmatprep.subr.bf16.mxu0 0
  %1289 = vmatpush1.bf16.msra.mxu0 %v1268
  %1290 = vmatprep.subr.bf16.mxu0 0
  %1291 = vmatpush1.bf16.msra.mxu0 %v1269
  %1292 = vmatprep.subr.bf16.mxu0 0
  %1293 = vmatpush1.bf16.msra.mxu0 %v1270
  %1294 = vmatprep.subr.bf16.mxu0 0
  %1295 = vmatpush1.bf16.msra.mxu0 %v1271
  %1296 = vmatprep.subr.bf16.mxu0 0
  %1297 = vmatpush1.bf16.msra.mxu0 0
  %1298 = vmatprep.subr.bf16.mxu0 0
  %1299 = vmatpush1.bf16.msra.mxu0 0
  %1300 = vmatprep.subr.bf16.mxu0 0
  %1301 = vmatpush1.bf16.msra.mxu0 0
  %1302 = vmatprep.subr.bf16.mxu0 0
  %1303 = vmatpush1.bf16.msra.mxu0 0
  %1304 = vmatprep.subr.bf16.mxu0 0
  %1305 = vmatpush1.bf16.msra.mxu0 0
  %1306 = vmatprep.subr.bf16.mxu0 0
  %1307 = vmatpush1.bf16.msra.mxu0 0
  %1308 = vmatprep.subr.bf16.mxu0 0
  %1309 = vmatpush1.bf16.msra.mxu0 0
  %1310 = vmatprep.subr.bf16.mxu0 0
  %1311 = vmatpush1.bf16.msra.mxu0 0
  %1312 = vmatprep.mubr.bf16.mxu0 0
  %1313 = vmatmul.mubr.bf16.gmra.mrb[0].mxu0 %v1098
  %v1314 = vpop.f32.mrb[0].mxu0
  %v1315 = vadd.f32 %v1218, %v1314
  %v1316 = vpop.f32.mrb[0].mxu0
  %v1317 = vpop.f32.mrb[0].mxu0
  %v1318 = vadd.f32 %v1221, %v1317
  %v1319 = vpop.f32.mrb[0].mxu0
  %1320 = vmatprep.mubr.bf16.mxu0 0
  %1321 = vmatmul.mubr.bf16.gmra.mrb[0].mxu0 %v1099
  %v1322 = vpop.f32.mrb[0].mxu0
  %v1323 = vadd.f32 %v1226, %v1322
  %v1324 = vpop.f32.mrb[0].mxu0
  %v1325 = vpop.f32.mrb[0].mxu0
  %v1326 = vadd.f32 %v1229, %v1325
  %v1327 = vpop.f32.mrb[0].mxu0
  %1328 = vdwg.mxu0
  %v1329 = vpack.c.bf16 %v1095, %v1094
  %v1330 = vpack.c.bf16 %v1097, %v1096
  %s1331 = scalar_lea.vmem %s5, 128
  %v1332 = vld [vmem:[%s1331] sm:$0xf]
  %v1333 = vld [vmem:[%s1331 + $0x4] sm:$0xf]
  %v1334 = vld [vmem:[%s1331 + $0x8] sm:$0xf]
  %v1335 = vld [vmem:[%s1331 + $0xc] sm:$0xf]
  %v1336 = vld [vmem:[%s1331 + $0x10] sm:$0xf]
  %v1337 = vld [vmem:[%s1331 + $0x14] sm:$0xf]
  %v1338 = vld [vmem:[%s1331 + $0x18] sm:$0xf]
  %v1339 = vld [vmem:[%s1331 + $0x1c] sm:$0xf]
  %v1340 = vld [vmem:[%s1331 + $0x20] sm:$0xf]
  %v1341 = vld [vmem:[%s1331 + $0x24] sm:$0xf]
  %v1342 = vld [vmem:[%s1331 + $0x28] sm:$0xf]
  %v1343 = vld [vmem:[%s1331 + $0x2c] sm:$0xf]
  %v1344 = vld [vmem:[%s1331 + $0x30] sm:$0xf]
  %v1345 = vld [vmem:[%s1331 + $0x34] sm:$0xf]
  %v1346 = vld [vmem:[%s1331 + $0x38] sm:$0xf]
  %v1347 = vld [vmem:[%s1331 + $0x3c] sm:$0xf]
  %v1364 = vunpack.c.l.b16 %v1332
  %v1365 = vunpack.c.l.b16 %v1333
  %v1366 = vunpack.c.l.b16 %v1334
  %v1367 = vunpack.c.l.b16 %v1335
  %v1368 = vunpack.c.l.b16 %v1336
  %v1369 = vunpack.c.l.b16 %v1337
  %v1370 = vunpack.c.l.b16 %v1338
  %v1371 = vunpack.c.l.b16 %v1339
  %v1372 = vunpack.c.l.b16 %v1340
  %v1373 = vunpack.c.l.b16 %v1341
  %v1374 = vunpack.c.l.b16 %v1342
  %v1375 = vunpack.c.l.b16 %v1343
  %v1376 = vunpack.c.l.b16 %v1344
  %v1377 = vunpack.c.l.b16 %v1345
  %v1378 = vunpack.c.l.b16 %v1346
  %v1379 = vunpack.c.l.b16 %v1347
  %v1380 = vpack.c.b16 %v1365, %v1364
  %v1381 = vpack.c.b16 %v1367, %v1366
  %v1382 = vpack.c.b16 %v1369, %v1368
  %v1383 = vpack.c.b16 %v1371, %v1370
  %v1384 = vpack.c.b16 %v1373, %v1372
  %v1385 = vpack.c.b16 %v1375, %v1374
  %v1386 = vpack.c.b16 %v1377, %v1376
  %v1387 = vpack.c.b16 %v1379, %v1378
  %1396 = vmatprep.subr.bf16.mxu0 0
  %1397 = vmatpush1.bf16.msra.mxu0 %v1380
  %1398 = vmatprep.subr.bf16.mxu0 0
  %1399 = vmatpush1.bf16.msra.mxu0 %v1381
  %1400 = vmatprep.subr.bf16.mxu0 0
  %1401 = vmatpush1.bf16.msra.mxu0 %v1382
  %1402 = vmatprep.subr.bf16.mxu0 0
  %1403 = vmatpush1.bf16.msra.mxu0 %v1383
  %1404 = vmatprep.subr.bf16.mxu0 0
  %1405 = vmatpush1.bf16.msra.mxu0 %v1384
  %1406 = vmatprep.subr.bf16.mxu0 0
  %1407 = vmatpush1.bf16.msra.mxu0 %v1385
  %1408 = vmatprep.subr.bf16.mxu0 0
  %1409 = vmatpush1.bf16.msra.mxu0 %v1386
  %1410 = vmatprep.subr.bf16.mxu0 0
  %1411 = vmatpush1.bf16.msra.mxu0 %v1387
  %1412 = vmatprep.subr.bf16.mxu0 0
  %1413 = vmatpush1.bf16.msra.mxu0 0
  %1414 = vmatprep.subr.bf16.mxu0 0
  %1415 = vmatpush1.bf16.msra.mxu0 0
  %1416 = vmatprep.subr.bf16.mxu0 0
  %1417 = vmatpush1.bf16.msra.mxu0 0
  %1418 = vmatprep.subr.bf16.mxu0 0
  %1419 = vmatpush1.bf16.msra.mxu0 0
  %1420 = vmatprep.subr.bf16.mxu0 0
  %1421 = vmatpush1.bf16.msra.mxu0 0
  %1422 = vmatprep.subr.bf16.mxu0 0
  %1423 = vmatpush1.bf16.msra.mxu0 0
  %1424 = vmatprep.subr.bf16.mxu0 0
  %1425 = vmatpush1.bf16.msra.mxu0 0
  %1426 = vmatprep.subr.bf16.mxu0 0
  %1427 = vmatpush1.bf16.msra.mxu0 0
  %1428 = vmatprep.mubr.bf16.mxu0 0
  %1429 = vmatmul.mubr.bf16.gmra.mrb[0].mxu0 %v1329
  %v1430 = vpop.f32.mrb[0].mxu0
  %v1431 = vadd.f32 0.0, %v1430
  %v1432 = vpop.f32.mrb[0].mxu0
  %v1433 = vpop.f32.mrb[0].mxu0
  %v1434 = vadd.f32 0.0, %v1433
  %v1435 = vpop.f32.mrb[0].mxu0
  %1436 = vmatprep.mubr.bf16.mxu0 0
  %1437 = vmatmul.mubr.bf16.gmra.mrb[0].mxu0 %v1330
  %v1438 = vpop.f32.mrb[0].mxu0
  %v1439 = vadd.f32 0.0, %v1438
  %v1440 = vpop.f32.mrb[0].mxu0
  %v1441 = vpop.f32.mrb[0].mxu0
  %v1442 = vadd.f32 0.0, %v1441
  %v1443 = vpop.f32.mrb[0].mxu0
  %1444 = vdwg.mxu0
  %v1445 = vadd.f32 %v1315, %v1431
  %v1446 = vadd.f32 %v1318, %v1434
  %v1447 = vadd.f32 %v1323, %v1439
  %v1448 = vadd.f32 %v1326, %v1442
  %v1453 = vrot.slane %v1058, 7
  %v1454 = vrot.slane %v1059, 7
  %v1455 = vsel %vm466, %v1453, %v1454
  %v1456 = vrot.slane %v1060, 7
  %v1457 = vsel %vm466, %v1454, %v1456
  %v1458 = vrot.slane %v1061, 7
  %v1459 = vsel %vm466, %v1456, %v1458
  %v1464 = vsel %vm466, 0.0, %v1453
  %v1465 = vmul.f32 %v1464, %v494
  %v1466 = vmul.f32 %v1455, %v499
  %v1467 = vmul.f32 %v1457, %v504
  %v1468 = vmul.f32 %v1459, %v509
  %v1469 = vrot.slane %v1058, 1
  %v1470 = vrot.slane %v1059, 1
  %v1471 = vsel %vm519, %v1469, %v1470
  %v1472 = vrot.slane %v1060, 1
  %v1473 = vsel %vm519, %v1470, %v1472
  %v1474 = vrot.slane %v1061, 1
  %v1475 = vsel %vm519, %v1472, %v1474
  %v1480 = vsel %vm519, %v1474, 0.0
  %v1481 = vmul.f32 %v1471, %v546
  %v1482 = vmul.f32 %v1473, %v550
  %v1483 = vmul.f32 %v1475, %v554
  %v1484 = vmul.f32 %v1480, %v558
  %v1485 = vpack.c.bf16 %v1466, %v1465
  %v1486 = vpack.c.bf16 %v1468, %v1467
  %v1487 = vld [vmem:[%s6] sm:$0xf]
  %v1488 = vld [vmem:[%s6 + $0x4] sm:$0xf]
  %v1489 = vld [vmem:[%s6 + $0x8] sm:$0xf]
  %v1490 = vld [vmem:[%s6 + $0xc] sm:$0xf]
  %v1491 = vld [vmem:[%s6 + $0x10] sm:$0xf]
  %v1492 = vld [vmem:[%s6 + $0x14] sm:$0xf]
  %v1493 = vld [vmem:[%s6 + $0x18] sm:$0xf]
  %v1494 = vld [vmem:[%s6 + $0x1c] sm:$0xf]
  %v1495 = vld [vmem:[%s6 + $0x20] sm:$0xf]
  %v1496 = vld [vmem:[%s6 + $0x24] sm:$0xf]
  %v1497 = vld [vmem:[%s6 + $0x28] sm:$0xf]
  %v1498 = vld [vmem:[%s6 + $0x2c] sm:$0xf]
  %v1499 = vld [vmem:[%s6 + $0x30] sm:$0xf]
  %v1500 = vld [vmem:[%s6 + $0x34] sm:$0xf]
  %v1501 = vld [vmem:[%s6 + $0x38] sm:$0xf]
  %v1502 = vld [vmem:[%s6 + $0x3c] sm:$0xf]
  %v1503 = vpack.c.bf16 %v1059, %v1058
  %v1504 = vpack.c.bf16 %v1061, %v1060
  %s1505 = scalar_lea.vmem %s6, 64
  %v1506 = vld [vmem:[%s1505] sm:$0xf]
  %v1507 = vld [vmem:[%s1505 + $0x4] sm:$0xf]
  %v1508 = vld [vmem:[%s1505 + $0x8] sm:$0xf]
  %v1509 = vld [vmem:[%s1505 + $0xc] sm:$0xf]
  %v1510 = vld [vmem:[%s1505 + $0x10] sm:$0xf]
  %v1511 = vld [vmem:[%s1505 + $0x14] sm:$0xf]
  %v1512 = vld [vmem:[%s1505 + $0x18] sm:$0xf]
  %v1513 = vld [vmem:[%s1505 + $0x1c] sm:$0xf]
  %v1514 = vld [vmem:[%s1505 + $0x20] sm:$0xf]
  %v1515 = vld [vmem:[%s1505 + $0x24] sm:$0xf]
  %v1516 = vld [vmem:[%s1505 + $0x28] sm:$0xf]
  %v1517 = vld [vmem:[%s1505 + $0x2c] sm:$0xf]
  %v1518 = vld [vmem:[%s1505 + $0x30] sm:$0xf]
  %v1519 = vld [vmem:[%s1505 + $0x34] sm:$0xf]
  %v1520 = vld [vmem:[%s1505 + $0x38] sm:$0xf]
  %v1521 = vld [vmem:[%s1505 + $0x3c] sm:$0xf]
  %v1538 = vunpack.c.l.b16 %v1506
  %v1539 = vunpack.c.l.b16 %v1507
  %v1540 = vunpack.c.l.b16 %v1508
  %v1541 = vunpack.c.l.b16 %v1509
  %v1542 = vunpack.c.l.b16 %v1510
  %v1543 = vunpack.c.l.b16 %v1511
  %v1544 = vunpack.c.l.b16 %v1512
  %v1545 = vunpack.c.l.b16 %v1513
  %v1546 = vunpack.c.l.b16 %v1514
  %v1547 = vunpack.c.l.b16 %v1515
  %v1548 = vunpack.c.l.b16 %v1516
  %v1549 = vunpack.c.l.b16 %v1517
  %v1550 = vunpack.c.l.b16 %v1518
  %v1551 = vunpack.c.l.b16 %v1519
  %v1552 = vunpack.c.l.b16 %v1520
  %v1553 = vunpack.c.l.b16 %v1521
  %v1554 = vpack.c.b16 %v1539, %v1538
  %v1555 = vpack.c.b16 %v1541, %v1540
  %v1556 = vpack.c.b16 %v1543, %v1542
  %v1557 = vpack.c.b16 %v1545, %v1544
  %v1558 = vpack.c.b16 %v1547, %v1546
  %v1559 = vpack.c.b16 %v1549, %v1548
  %v1560 = vpack.c.b16 %v1551, %v1550
  %v1561 = vpack.c.b16 %v1553, %v1552
  %1570 = vmatprep.subr.bf16.mxu0 0
  %1571 = vmatpush1.bf16.msra.mxu0 %v1554
  %1572 = vmatprep.subr.bf16.mxu0 0
  %1573 = vmatpush1.bf16.msra.mxu0 %v1555
  %1574 = vmatprep.subr.bf16.mxu0 0
  %1575 = vmatpush1.bf16.msra.mxu0 %v1556
  %1576 = vmatprep.subr.bf16.mxu0 0
  %1577 = vmatpush1.bf16.msra.mxu0 %v1557
  %1578 = vmatprep.subr.bf16.mxu0 0
  %1579 = vmatpush1.bf16.msra.mxu0 %v1558
  %1580 = vmatprep.subr.bf16.mxu0 0
  %1581 = vmatpush1.bf16.msra.mxu0 %v1559
  %1582 = vmatprep.subr.bf16.mxu0 0
  %1583 = vmatpush1.bf16.msra.mxu0 %v1560
  %1584 = vmatprep.subr.bf16.mxu0 0
  %1585 = vmatpush1.bf16.msra.mxu0 %v1561
  %1586 = vmatprep.subr.bf16.mxu0 0
  %1587 = vmatpush1.bf16.msra.mxu0 0
  %1588 = vmatprep.subr.bf16.mxu0 0
  %1589 = vmatpush1.bf16.msra.mxu0 0
  %1590 = vmatprep.subr.bf16.mxu0 0
  %1591 = vmatpush1.bf16.msra.mxu0 0
  %1592 = vmatprep.subr.bf16.mxu0 0
  %1593 = vmatpush1.bf16.msra.mxu0 0
  %1594 = vmatprep.subr.bf16.mxu0 0
  %1595 = vmatpush1.bf16.msra.mxu0 0
  %1596 = vmatprep.subr.bf16.mxu0 0
  %1597 = vmatpush1.bf16.msra.mxu0 0
  %1598 = vmatprep.subr.bf16.mxu0 0
  %1599 = vmatpush1.bf16.msra.mxu0 0
  %1600 = vmatprep.subr.bf16.mxu0 0
  %1601 = vmatpush1.bf16.msra.mxu0 0
  %1602 = vmatprep.mubr.bf16.mxu0 0
  %1603 = vmatmul.mubr.bf16.gmra.mrb[0].mxu0 %v1503
  %v1604 = vpop.f32.mrb[0].mxu0
  %v1605 = vadd.f32 0.0, %v1604
  %v1606 = vpop.f32.mrb[0].mxu0
  %v1607 = vpop.f32.mrb[0].mxu0
  %v1608 = vadd.f32 0.0, %v1607
  %v1609 = vpop.f32.mrb[0].mxu0
  %1610 = vmatprep.mubr.bf16.mxu0 0
  %1611 = vmatmul.mubr.bf16.gmra.mrb[0].mxu0 %v1504
  %v1612 = vpop.f32.mrb[0].mxu0
  %v1613 = vadd.f32 0.0, %v1612
  %v1614 = vpop.f32.mrb[0].mxu0
  %v1615 = vpop.f32.mrb[0].mxu0
  %v1616 = vadd.f32 0.0, %v1615
  %v1617 = vpop.f32.mrb[0].mxu0
  %1618 = vdwg.mxu0
  %v1635 = vunpack.c.l.b16 %v1487
  %v1636 = vunpack.c.l.b16 %v1488
  %v1637 = vunpack.c.l.b16 %v1489
  %v1638 = vunpack.c.l.b16 %v1490
  %v1639 = vunpack.c.l.b16 %v1491
  %v1640 = vunpack.c.l.b16 %v1492
  %v1641 = vunpack.c.l.b16 %v1493
  %v1642 = vunpack.c.l.b16 %v1494
  %v1643 = vunpack.c.l.b16 %v1495
  %v1644 = vunpack.c.l.b16 %v1496
  %v1645 = vunpack.c.l.b16 %v1497
  %v1646 = vunpack.c.l.b16 %v1498
  %v1647 = vunpack.c.l.b16 %v1499
  %v1648 = vunpack.c.l.b16 %v1500
  %v1649 = vunpack.c.l.b16 %v1501
  %v1650 = vunpack.c.l.b16 %v1502
  %v1651 = vpack.c.b16 %v1636, %v1635
  %v1652 = vpack.c.b16 %v1638, %v1637
  %v1653 = vpack.c.b16 %v1640, %v1639
  %v1654 = vpack.c.b16 %v1642, %v1641
  %v1655 = vpack.c.b16 %v1644, %v1643
  %v1656 = vpack.c.b16 %v1646, %v1645
  %v1657 = vpack.c.b16 %v1648, %v1647
  %v1658 = vpack.c.b16 %v1650, %v1649
  %1667 = vmatprep.subr.bf16.mxu0 0
  %1668 = vmatpush1.bf16.msra.mxu0 %v1651
  %1669 = vmatprep.subr.bf16.mxu0 0
  %1670 = vmatpush1.bf16.msra.mxu0 %v1652
  %1671 = vmatprep.subr.bf16.mxu0 0
  %1672 = vmatpush1.bf16.msra.mxu0 %v1653
  %1673 = vmatprep.subr.bf16.mxu0 0
  %1674 = vmatpush1.bf16.msra.mxu0 %v1654
  %1675 = vmatprep.subr.bf16.mxu0 0
  %1676 = vmatpush1.bf16.msra.mxu0 %v1655
  %1677 = vmatprep.subr.bf16.mxu0 0
  %1678 = vmatpush1.bf16.msra.mxu0 %v1656
  %1679 = vmatprep.subr.bf16.mxu0 0
  %1680 = vmatpush1.bf16.msra.mxu0 %v1657
  %1681 = vmatprep.subr.bf16.mxu0 0
  %1682 = vmatpush1.bf16.msra.mxu0 %v1658
  %1683 = vmatprep.subr.bf16.mxu0 0
  %1684 = vmatpush1.bf16.msra.mxu0 0
  %1685 = vmatprep.subr.bf16.mxu0 0
  %1686 = vmatpush1.bf16.msra.mxu0 0
  %1687 = vmatprep.subr.bf16.mxu0 0
  %1688 = vmatpush1.bf16.msra.mxu0 0
  %1689 = vmatprep.subr.bf16.mxu0 0
  %1690 = vmatpush1.bf16.msra.mxu0 0
  %1691 = vmatprep.subr.bf16.mxu0 0
  %1692 = vmatpush1.bf16.msra.mxu0 0
  %1693 = vmatprep.subr.bf16.mxu0 0
  %1694 = vmatpush1.bf16.msra.mxu0 0
  %1695 = vmatprep.subr.bf16.mxu0 0
  %1696 = vmatpush1.bf16.msra.mxu0 0
  %1697 = vmatprep.subr.bf16.mxu0 0
  %1698 = vmatpush1.bf16.msra.mxu0 0
  %1699 = vmatprep.mubr.bf16.mxu0 0
  %1700 = vmatmul.mubr.bf16.gmra.mrb[0].mxu0 %v1485
  %v1701 = vpop.f32.mrb[0].mxu0
  %v1702 = vadd.f32 %v1605, %v1701
  %v1703 = vpop.f32.mrb[0].mxu0
  %v1704 = vpop.f32.mrb[0].mxu0
  %v1705 = vadd.f32 %v1608, %v1704
  %v1706 = vpop.f32.mrb[0].mxu0
  %1707 = vmatprep.mubr.bf16.mxu0 0
  %1708 = vmatmul.mubr.bf16.gmra.mrb[0].mxu0 %v1486
  %v1709 = vpop.f32.mrb[0].mxu0
  %v1710 = vadd.f32 %v1613, %v1709
  %v1711 = vpop.f32.mrb[0].mxu0
  %v1712 = vpop.f32.mrb[0].mxu0
  %v1713 = vadd.f32 %v1616, %v1712
  %v1714 = vpop.f32.mrb[0].mxu0
  %1715 = vdwg.mxu0
  %v1716 = vpack.c.bf16 %v1482, %v1481
  %v1717 = vpack.c.bf16 %v1484, %v1483
  %s1718 = scalar_lea.vmem %s6, 128
  %v1719 = vld [vmem:[%s1718] sm:$0xf]
  %v1720 = vld [vmem:[%s1718 + $0x4] sm:$0xf]
  %v1721 = vld [vmem:[%s1718 + $0x8] sm:$0xf]
  %v1722 = vld [vmem:[%s1718 + $0xc] sm:$0xf]
  %v1723 = vld [vmem:[%s1718 + $0x10] sm:$0xf]
  %v1724 = vld [vmem:[%s1718 + $0x14] sm:$0xf]
  %v1725 = vld [vmem:[%s1718 + $0x18] sm:$0xf]
  %v1726 = vld [vmem:[%s1718 + $0x1c] sm:$0xf]
  %v1727 = vld [vmem:[%s1718 + $0x20] sm:$0xf]
  %v1728 = vld [vmem:[%s1718 + $0x24] sm:$0xf]
  %v1729 = vld [vmem:[%s1718 + $0x28] sm:$0xf]
  %v1730 = vld [vmem:[%s1718 + $0x2c] sm:$0xf]
  %v1731 = vld [vmem:[%s1718 + $0x30] sm:$0xf]
  %v1732 = vld [vmem:[%s1718 + $0x34] sm:$0xf]
  %v1733 = vld [vmem:[%s1718 + $0x38] sm:$0xf]
  %v1734 = vld [vmem:[%s1718 + $0x3c] sm:$0xf]
  %v1751 = vunpack.c.l.b16 %v1719
  %v1752 = vunpack.c.l.b16 %v1720
  %v1753 = vunpack.c.l.b16 %v1721
  %v1754 = vunpack.c.l.b16 %v1722
  %v1755 = vunpack.c.l.b16 %v1723
  %v1756 = vunpack.c.l.b16 %v1724
  %v1757 = vunpack.c.l.b16 %v1725
  %v1758 = vunpack.c.l.b16 %v1726
  %v1759 = vunpack.c.l.b16 %v1727
  %v1760 = vunpack.c.l.b16 %v1728
  %v1761 = vunpack.c.l.b16 %v1729
  %v1762 = vunpack.c.l.b16 %v1730
  %v1763 = vunpack.c.l.b16 %v1731
  %v1764 = vunpack.c.l.b16 %v1732
  %v1765 = vunpack.c.l.b16 %v1733
  %v1766 = vunpack.c.l.b16 %v1734
  %v1767 = vpack.c.b16 %v1752, %v1751
  %v1768 = vpack.c.b16 %v1754, %v1753
  %v1769 = vpack.c.b16 %v1756, %v1755
  %v1770 = vpack.c.b16 %v1758, %v1757
  %v1771 = vpack.c.b16 %v1760, %v1759
  %v1772 = vpack.c.b16 %v1762, %v1761
  %v1773 = vpack.c.b16 %v1764, %v1763
  %v1774 = vpack.c.b16 %v1766, %v1765
  %1783 = vmatprep.subr.bf16.mxu0 0
  %1784 = vmatpush1.bf16.msra.mxu0 %v1767
  %1785 = vmatprep.subr.bf16.mxu0 0
  %1786 = vmatpush1.bf16.msra.mxu0 %v1768
  %1787 = vmatprep.subr.bf16.mxu0 0
  %1788 = vmatpush1.bf16.msra.mxu0 %v1769
  %1789 = vmatprep.subr.bf16.mxu0 0
  %1790 = vmatpush1.bf16.msra.mxu0 %v1770
  %1791 = vmatprep.subr.bf16.mxu0 0
  %1792 = vmatpush1.bf16.msra.mxu0 %v1771
  %1793 = vmatprep.subr.bf16.mxu0 0
  %1794 = vmatpush1.bf16.msra.mxu0 %v1772
  %1795 = vmatprep.subr.bf16.mxu0 0
  %1796 = vmatpush1.bf16.msra.mxu0 %v1773
  %1797 = vmatprep.subr.bf16.mxu0 0
  %1798 = vmatpush1.bf16.msra.mxu0 %v1774
  %1799 = vmatprep.subr.bf16.mxu0 0
  %1800 = vmatpush1.bf16.msra.mxu0 0
  %1801 = vmatprep.subr.bf16.mxu0 0
  %1802 = vmatpush1.bf16.msra.mxu0 0
  %1803 = vmatprep.subr.bf16.mxu0 0
  %1804 = vmatpush1.bf16.msra.mxu0 0
  %1805 = vmatprep.subr.bf16.mxu0 0
  %1806 = vmatpush1.bf16.msra.mxu0 0
  %1807 = vmatprep.subr.bf16.mxu0 0
  %1808 = vmatpush1.bf16.msra.mxu0 0
  %1809 = vmatprep.subr.bf16.mxu0 0
  %1810 = vmatpush1.bf16.msra.mxu0 0
  %1811 = vmatprep.subr.bf16.mxu0 0
  %1812 = vmatpush1.bf16.msra.mxu0 0
  %1813 = vmatprep.subr.bf16.mxu0 0
  %1814 = vmatpush1.bf16.msra.mxu0 0
  %1815 = vmatprep.mubr.bf16.mxu0 0
  %1816 = vmatmul.mubr.bf16.gmra.mrb[0].mxu0 %v1716
  %v1817 = vpop.f32.mrb[0].mxu0
  %v1818 = vadd.f32 0.0, %v1817
  %v1819 = vpop.f32.mrb[0].mxu0
  %v1820 = vpop.f32.mrb[0].mxu0
  %v1821 = vadd.f32 0.0, %v1820
  %v1822 = vpop.f32.mrb[0].mxu0
  %1823 = vmatprep.mubr.bf16.mxu0 0
  %1824 = vmatmul.mubr.bf16.gmra.mrb[0].mxu0 %v1717
  %v1825 = vpop.f32.mrb[0].mxu0
  %v1826 = vadd.f32 0.0, %v1825
  %v1827 = vpop.f32.mrb[0].mxu0
  %v1828 = vpop.f32.mrb[0].mxu0
  %v1829 = vadd.f32 0.0, %v1828
  %v1830 = vpop.f32.mrb[0].mxu0
  %1831 = vdwg.mxu0
  %v1832 = vadd.f32 %v1702, %v1818
  %v1833 = vadd.f32 %v1705, %v1821
  %v1834 = vadd.f32 %v1710, %v1826
  %v1835 = vadd.f32 %v1713, %v1829
  %v1836 = vadd.f32 %v1445, %v1832
  %v1837 = vadd.f32 %v1446, %v1833
  %v1838 = vadd.f32 %v1447, %v1834
  %v1839 = vadd.f32 %v1448, %v1835
  %v1840 = vlaneseq
  %v1841 = vshrl.u32 %v1840, 7
  %v1842 = vsub.s32 2, %v1841
  %v1843 = vrot.slane %v39, %v1842
  %v1844 = vadd.f32 %v1836, %v1843
  %v1845 = vadd.f32 %v1837, %v1843
  %v1846 = vadd.f32 %v1838, %v1843
  %v1847 = vadd.f32 %v1839, %v1843
  %vm1848 = vcmp.ge.f32.partialorder %v1844, 0.0
  %vm1849 = vcmp.ge.f32.partialorder %v1845, 0.0
  %vm1850 = vcmp.ge.f32.partialorder %v1846, 0.0
  %vm1851 = vcmp.ge.f32.partialorder %v1847, 0.0
  %v1852 = vmul.f32 %v1844, 0.2
  %v1853 = vmul.f32 %v1845, 0.2
  %v1854 = vmul.f32 %v1846, 0.2
  %v1855 = vmul.f32 %v1847, 0.2
  %v1856 = vsel %vm1848, %v1844, %v1852
  %v1857 = vsel %vm1849, %v1845, %v1853
  %v1858 = vsel %vm1850, %v1846, %v1854
  %v1859 = vsel %vm1851, %v1847, %v1855
  %v1864 = vrot.slane %v1856, 7
  %v1865 = vrot.slane %v1857, 7
  %v1866 = vsel %vm466, %v1864, %v1865
  %v1867 = vrot.slane %v1858, 7
  %v1868 = vsel %vm466, %v1865, %v1867
  %v1869 = vrot.slane %v1859, 7
  %v1870 = vsel %vm466, %v1867, %v1869
  %v1875 = vsel %vm466, 0.0, %v1864
  %v1876 = vmul.f32 %v1875, %v494
  %v1877 = vmul.f32 %v1866, %v499
  %v1878 = vmul.f32 %v1868, %v504
  %v1879 = vmul.f32 %v1870, %v509
  %v1880 = vrot.slane %v1856, 1
  %v1881 = vrot.slane %v1857, 1
  %v1882 = vsel %vm519, %v1880, %v1881
  %v1883 = vrot.slane %v1858, 1
  %v1884 = vsel %vm519, %v1881, %v1883
  %v1885 = vrot.slane %v1859, 1
  %v1886 = vsel %vm519, %v1883, %v1885
  %v1891 = vsel %vm519, %v1885, 0.0
  %v1892 = vmul.f32 %v1882, %v546
  %v1893 = vmul.f32 %v1884, %v550
  %v1894 = vmul.f32 %v1886, %v554
  %v1895 = vmul.f32 %v1891, %v558
  %v1896 = vpack.c.bf16 %v1877, %v1876
  %v1897 = vpack.c.bf16 %v1879, %v1878
  %v1898 = vld [vmem:[%s7] sm:$0xf]
  %v1899 = vld [vmem:[%s7 + $0x4] sm:$0xf]
  %v1900 = vld [vmem:[%s7 + $0x8] sm:$0xf]
  %v1901 = vld [vmem:[%s7 + $0xc] sm:$0xf]
  %v1902 = vld [vmem:[%s7 + $0x10] sm:$0xf]
  %v1903 = vld [vmem:[%s7 + $0x14] sm:$0xf]
  %v1904 = vld [vmem:[%s7 + $0x18] sm:$0xf]
  %v1905 = vld [vmem:[%s7 + $0x1c] sm:$0xf]
  %v1906 = vld [vmem:[%s7 + $0x20] sm:$0xf]
  %v1907 = vld [vmem:[%s7 + $0x24] sm:$0xf]
  %v1908 = vld [vmem:[%s7 + $0x28] sm:$0xf]
  %v1909 = vld [vmem:[%s7 + $0x2c] sm:$0xf]
  %v1910 = vld [vmem:[%s7 + $0x30] sm:$0xf]
  %v1911 = vld [vmem:[%s7 + $0x34] sm:$0xf]
  %v1912 = vld [vmem:[%s7 + $0x38] sm:$0xf]
  %v1913 = vld [vmem:[%s7 + $0x3c] sm:$0xf]
  %v1914 = vpack.c.bf16 %v1857, %v1856
  %v1915 = vpack.c.bf16 %v1859, %v1858
  %s1916 = scalar_lea.vmem %s7, 64
  %v1917 = vld [vmem:[%s1916] sm:$0xf]
  %v1918 = vld [vmem:[%s1916 + $0x4] sm:$0xf]
  %v1919 = vld [vmem:[%s1916 + $0x8] sm:$0xf]
  %v1920 = vld [vmem:[%s1916 + $0xc] sm:$0xf]
  %v1921 = vld [vmem:[%s1916 + $0x10] sm:$0xf]
  %v1922 = vld [vmem:[%s1916 + $0x14] sm:$0xf]
  %v1923 = vld [vmem:[%s1916 + $0x18] sm:$0xf]
  %v1924 = vld [vmem:[%s1916 + $0x1c] sm:$0xf]
  %v1925 = vld [vmem:[%s1916 + $0x20] sm:$0xf]
  %v1926 = vld [vmem:[%s1916 + $0x24] sm:$0xf]
  %v1927 = vld [vmem:[%s1916 + $0x28] sm:$0xf]
  %v1928 = vld [vmem:[%s1916 + $0x2c] sm:$0xf]
  %v1929 = vld [vmem:[%s1916 + $0x30] sm:$0xf]
  %v1930 = vld [vmem:[%s1916 + $0x34] sm:$0xf]
  %v1931 = vld [vmem:[%s1916 + $0x38] sm:$0xf]
  %v1932 = vld [vmem:[%s1916 + $0x3c] sm:$0xf]
  %v1949 = vunpack.c.l.b16 %v1917
  %v1950 = vunpack.c.l.b16 %v1918
  %v1951 = vunpack.c.l.b16 %v1919
  %v1952 = vunpack.c.l.b16 %v1920
  %v1953 = vunpack.c.l.b16 %v1921
  %v1954 = vunpack.c.l.b16 %v1922
  %v1955 = vunpack.c.l.b16 %v1923
  %v1956 = vunpack.c.l.b16 %v1924
  %v1957 = vunpack.c.l.b16 %v1925
  %v1958 = vunpack.c.l.b16 %v1926
  %v1959 = vunpack.c.l.b16 %v1927
  %v1960 = vunpack.c.l.b16 %v1928
  %v1961 = vunpack.c.l.b16 %v1929
  %v1962 = vunpack.c.l.b16 %v1930
  %v1963 = vunpack.c.l.b16 %v1931
  %v1964 = vunpack.c.l.b16 %v1932
  %v1965 = vpack.c.b16 %v1950, %v1949
  %v1966 = vpack.c.b16 %v1952, %v1951
  %v1967 = vpack.c.b16 %v1954, %v1953
  %v1968 = vpack.c.b16 %v1956, %v1955
  %v1969 = vpack.c.b16 %v1958, %v1957
  %v1970 = vpack.c.b16 %v1960, %v1959
  %v1971 = vpack.c.b16 %v1962, %v1961
  %v1972 = vpack.c.b16 %v1964, %v1963
  %1981 = vmatprep.subr.bf16.mxu0 0
  %1982 = vmatpush1.bf16.msra.mxu0 %v1965
  %1983 = vmatprep.subr.bf16.mxu0 0
  %1984 = vmatpush1.bf16.msra.mxu0 %v1966
  %1985 = vmatprep.subr.bf16.mxu0 0
  %1986 = vmatpush1.bf16.msra.mxu0 %v1967
  %1987 = vmatprep.subr.bf16.mxu0 0
  %1988 = vmatpush1.bf16.msra.mxu0 %v1968
  %1989 = vmatprep.subr.bf16.mxu0 0
  %1990 = vmatpush1.bf16.msra.mxu0 %v1969
  %1991 = vmatprep.subr.bf16.mxu0 0
  %1992 = vmatpush1.bf16.msra.mxu0 %v1970
  %1993 = vmatprep.subr.bf16.mxu0 0
  %1994 = vmatpush1.bf16.msra.mxu0 %v1971
  %1995 = vmatprep.subr.bf16.mxu0 0
  %1996 = vmatpush1.bf16.msra.mxu0 %v1972
  %1997 = vmatprep.subr.bf16.mxu0 0
  %1998 = vmatpush1.bf16.msra.mxu0 0
  %1999 = vmatprep.subr.bf16.mxu0 0
  %2000 = vmatpush1.bf16.msra.mxu0 0
  %2001 = vmatprep.subr.bf16.mxu0 0
  %2002 = vmatpush1.bf16.msra.mxu0 0
  %2003 = vmatprep.subr.bf16.mxu0 0
  %2004 = vmatpush1.bf16.msra.mxu0 0
  %2005 = vmatprep.subr.bf16.mxu0 0
  %2006 = vmatpush1.bf16.msra.mxu0 0
  %2007 = vmatprep.subr.bf16.mxu0 0
  %2008 = vmatpush1.bf16.msra.mxu0 0
  %2009 = vmatprep.subr.bf16.mxu0 0
  %2010 = vmatpush1.bf16.msra.mxu0 0
  %2011 = vmatprep.subr.bf16.mxu0 0
  %2012 = vmatpush1.bf16.msra.mxu0 0
  %2013 = vmatprep.mubr.bf16.mxu0 0
  %2014 = vmatmul.mubr.bf16.gmra.mrb[0].mxu0 %v1914
  %v2015 = vpop.f32.mrb[0].mxu0
  %v2016 = vadd.f32 0.0, %v2015
  %v2017 = vpop.f32.mrb[0].mxu0
  %v2018 = vpop.f32.mrb[0].mxu0
  %v2019 = vadd.f32 0.0, %v2018
  %v2020 = vpop.f32.mrb[0].mxu0
  %2021 = vmatprep.mubr.bf16.mxu0 0
  %2022 = vmatmul.mubr.bf16.gmra.mrb[0].mxu0 %v1915
  %v2023 = vpop.f32.mrb[0].mxu0
  %v2024 = vadd.f32 0.0, %v2023
  %v2025 = vpop.f32.mrb[0].mxu0
  %v2026 = vpop.f32.mrb[0].mxu0
  %v2027 = vadd.f32 0.0, %v2026
  %v2028 = vpop.f32.mrb[0].mxu0
  %2029 = vdwg.mxu0
  %v2046 = vunpack.c.l.b16 %v1898
  %v2047 = vunpack.c.l.b16 %v1899
  %v2048 = vunpack.c.l.b16 %v1900
  %v2049 = vunpack.c.l.b16 %v1901
  %v2050 = vunpack.c.l.b16 %v1902
  %v2051 = vunpack.c.l.b16 %v1903
  %v2052 = vunpack.c.l.b16 %v1904
  %v2053 = vunpack.c.l.b16 %v1905
  %v2054 = vunpack.c.l.b16 %v1906
  %v2055 = vunpack.c.l.b16 %v1907
  %v2056 = vunpack.c.l.b16 %v1908
  %v2057 = vunpack.c.l.b16 %v1909
  %v2058 = vunpack.c.l.b16 %v1910
  %v2059 = vunpack.c.l.b16 %v1911
  %v2060 = vunpack.c.l.b16 %v1912
  %v2061 = vunpack.c.l.b16 %v1913
  %v2062 = vpack.c.b16 %v2047, %v2046
  %v2063 = vpack.c.b16 %v2049, %v2048
  %v2064 = vpack.c.b16 %v2051, %v2050
  %v2065 = vpack.c.b16 %v2053, %v2052
  %v2066 = vpack.c.b16 %v2055, %v2054
  %v2067 = vpack.c.b16 %v2057, %v2056
  %v2068 = vpack.c.b16 %v2059, %v2058
  %v2069 = vpack.c.b16 %v2061, %v2060
  %2078 = vmatprep.subr.bf16.mxu0 0
  %2079 = vmatpush1.bf16.msra.mxu0 %v2062
  %2080 = vmatprep.subr.bf16.mxu0 0
  %2081 = vmatpush1.bf16.msra.mxu0 %v2063
  %2082 = vmatprep.subr.bf16.mxu0 0
  %2083 = vmatpush1.bf16.msra.mxu0 %v2064
  %2084 = vmatprep.subr.bf16.mxu0 0
  %2085 = vmatpush1.bf16.msra.mxu0 %v2065
  %2086 = vmatprep.subr.bf16.mxu0 0
  %2087 = vmatpush1.bf16.msra.mxu0 %v2066
  %2088 = vmatprep.subr.bf16.mxu0 0
  %2089 = vmatpush1.bf16.msra.mxu0 %v2067
  %2090 = vmatprep.subr.bf16.mxu0 0
  %2091 = vmatpush1.bf16.msra.mxu0 %v2068
  %2092 = vmatprep.subr.bf16.mxu0 0
  %2093 = vmatpush1.bf16.msra.mxu0 %v2069
  %2094 = vmatprep.subr.bf16.mxu0 0
  %2095 = vmatpush1.bf16.msra.mxu0 0
  %2096 = vmatprep.subr.bf16.mxu0 0
  %2097 = vmatpush1.bf16.msra.mxu0 0
  %2098 = vmatprep.subr.bf16.mxu0 0
  %2099 = vmatpush1.bf16.msra.mxu0 0
  %2100 = vmatprep.subr.bf16.mxu0 0
  %2101 = vmatpush1.bf16.msra.mxu0 0
  %2102 = vmatprep.subr.bf16.mxu0 0
  %2103 = vmatpush1.bf16.msra.mxu0 0
  %2104 = vmatprep.subr.bf16.mxu0 0
  %2105 = vmatpush1.bf16.msra.mxu0 0
  %2106 = vmatprep.subr.bf16.mxu0 0
  %2107 = vmatpush1.bf16.msra.mxu0 0
  %2108 = vmatprep.subr.bf16.mxu0 0
  %2109 = vmatpush1.bf16.msra.mxu0 0
  %2110 = vmatprep.mubr.bf16.mxu0 0
  %2111 = vmatmul.mubr.bf16.gmra.mrb[0].mxu0 %v1896
  %v2112 = vpop.f32.mrb[0].mxu0
  %v2113 = vadd.f32 %v2016, %v2112
  %v2114 = vpop.f32.mrb[0].mxu0
  %v2115 = vpop.f32.mrb[0].mxu0
  %v2116 = vadd.f32 %v2019, %v2115
  %v2117 = vpop.f32.mrb[0].mxu0
  %2118 = vmatprep.mubr.bf16.mxu0 0
  %2119 = vmatmul.mubr.bf16.gmra.mrb[0].mxu0 %v1897
  %v2120 = vpop.f32.mrb[0].mxu0
  %v2121 = vadd.f32 %v2024, %v2120
  %v2122 = vpop.f32.mrb[0].mxu0
  %v2123 = vpop.f32.mrb[0].mxu0
  %v2124 = vadd.f32 %v2027, %v2123
  %v2125 = vpop.f32.mrb[0].mxu0
  %2126 = vdwg.mxu0
  %v2127 = vpack.c.bf16 %v1893, %v1892
  %v2128 = vpack.c.bf16 %v1895, %v1894
  %s2129 = scalar_lea.vmem %s7, 128
  %v2130 = vld [vmem:[%s2129] sm:$0xf]
  %v2131 = vld [vmem:[%s2129 + $0x4] sm:$0xf]
  %v2132 = vld [vmem:[%s2129 + $0x8] sm:$0xf]
  %v2133 = vld [vmem:[%s2129 + $0xc] sm:$0xf]
  %v2134 = vld [vmem:[%s2129 + $0x10] sm:$0xf]
  %v2135 = vld [vmem:[%s2129 + $0x14] sm:$0xf]
  %v2136 = vld [vmem:[%s2129 + $0x18] sm:$0xf]
  %v2137 = vld [vmem:[%s2129 + $0x1c] sm:$0xf]
  %v2138 = vld [vmem:[%s2129 + $0x20] sm:$0xf]
  %v2139 = vld [vmem:[%s2129 + $0x24] sm:$0xf]
  %v2140 = vld [vmem:[%s2129 + $0x28] sm:$0xf]
  %v2141 = vld [vmem:[%s2129 + $0x2c] sm:$0xf]
  %v2142 = vld [vmem:[%s2129 + $0x30] sm:$0xf]
  %v2143 = vld [vmem:[%s2129 + $0x34] sm:$0xf]
  %v2144 = vld [vmem:[%s2129 + $0x38] sm:$0xf]
  %v2145 = vld [vmem:[%s2129 + $0x3c] sm:$0xf]
  %v2162 = vunpack.c.l.b16 %v2130
  %v2163 = vunpack.c.l.b16 %v2131
  %v2164 = vunpack.c.l.b16 %v2132
  %v2165 = vunpack.c.l.b16 %v2133
  %v2166 = vunpack.c.l.b16 %v2134
  %v2167 = vunpack.c.l.b16 %v2135
  %v2168 = vunpack.c.l.b16 %v2136
  %v2169 = vunpack.c.l.b16 %v2137
  %v2170 = vunpack.c.l.b16 %v2138
  %v2171 = vunpack.c.l.b16 %v2139
  %v2172 = vunpack.c.l.b16 %v2140
  %v2173 = vunpack.c.l.b16 %v2141
  %v2174 = vunpack.c.l.b16 %v2142
  %v2175 = vunpack.c.l.b16 %v2143
  %v2176 = vunpack.c.l.b16 %v2144
  %v2177 = vunpack.c.l.b16 %v2145
  %v2178 = vpack.c.b16 %v2163, %v2162
  %v2179 = vpack.c.b16 %v2165, %v2164
  %v2180 = vpack.c.b16 %v2167, %v2166
  %v2181 = vpack.c.b16 %v2169, %v2168
  %v2182 = vpack.c.b16 %v2171, %v2170
  %v2183 = vpack.c.b16 %v2173, %v2172
  %v2184 = vpack.c.b16 %v2175, %v2174
  %v2185 = vpack.c.b16 %v2177, %v2176
  %2194 = vmatprep.subr.bf16.mxu0 0
  %2195 = vmatpush1.bf16.msra.mxu0 %v2178
  %2196 = vmatprep.subr.bf16.mxu0 0
  %2197 = vmatpush1.bf16.msra.mxu0 %v2179
  %2198 = vmatprep.subr.bf16.mxu0 0
  %2199 = vmatpush1.bf16.msra.mxu0 %v2180
  %2200 = vmatprep.subr.bf16.mxu0 0
  %2201 = vmatpush1.bf16.msra.mxu0 %v2181
  %2202 = vmatprep.subr.bf16.mxu0 0
  %2203 = vmatpush1.bf16.msra.mxu0 %v2182
  %2204 = vmatprep.subr.bf16.mxu0 0
  %2205 = vmatpush1.bf16.msra.mxu0 %v2183
  %2206 = vmatprep.subr.bf16.mxu0 0
  %2207 = vmatpush1.bf16.msra.mxu0 %v2184
  %2208 = vmatprep.subr.bf16.mxu0 0
  %2209 = vmatpush1.bf16.msra.mxu0 %v2185
  %2210 = vmatprep.subr.bf16.mxu0 0
  %2211 = vmatpush1.bf16.msra.mxu0 0
  %2212 = vmatprep.subr.bf16.mxu0 0
  %2213 = vmatpush1.bf16.msra.mxu0 0
  %2214 = vmatprep.subr.bf16.mxu0 0
  %2215 = vmatpush1.bf16.msra.mxu0 0
  %2216 = vmatprep.subr.bf16.mxu0 0
  %2217 = vmatpush1.bf16.msra.mxu0 0
  %2218 = vmatprep.subr.bf16.mxu0 0
  %2219 = vmatpush1.bf16.msra.mxu0 0
  %2220 = vmatprep.subr.bf16.mxu0 0
  %2221 = vmatpush1.bf16.msra.mxu0 0
  %2222 = vmatprep.subr.bf16.mxu0 0
  %2223 = vmatpush1.bf16.msra.mxu0 0
  %2224 = vmatprep.subr.bf16.mxu0 0
  %2225 = vmatpush1.bf16.msra.mxu0 0
  %2226 = vmatprep.mubr.bf16.mxu0 0
  %2227 = vmatmul.mubr.bf16.gmra.mrb[0].mxu0 %v2127
  %v2228 = vpop.f32.mrb[0].mxu0
  %v2229 = vadd.f32 0.0, %v2228
  %v2230 = vpop.f32.mrb[0].mxu0
  %v2231 = vpop.f32.mrb[0].mxu0
  %v2232 = vadd.f32 0.0, %v2231
  %v2233 = vpop.f32.mrb[0].mxu0
  %2234 = vmatprep.mubr.bf16.mxu0 0
  %2235 = vmatmul.mubr.bf16.gmra.mrb[0].mxu0 %v2128
  %v2236 = vpop.f32.mrb[0].mxu0
  %v2237 = vadd.f32 0.0, %v2236
  %v2238 = vpop.f32.mrb[0].mxu0
  %v2239 = vpop.f32.mrb[0].mxu0
  %v2240 = vadd.f32 0.0, %v2239
  %v2241 = vpop.f32.mrb[0].mxu0
  %2242 = vdwg.mxu0
  %v2243 = vadd.f32 %v2113, %v2229
  %v2244 = vadd.f32 %v2116, %v2232
  %v2245 = vadd.f32 %v2121, %v2237
  %v2246 = vadd.f32 %v2124, %v2240
  %v2247 = vlaneseq
  %v2248 = vshrl.u32 %v2247, 7
  %v2249 = vsub.s32 3, %v2248
  %v2250 = vrot.slane %v39, %v2249
  %v2251 = vadd.f32 %v2243, %v2250
  %v2252 = vadd.f32 %v2244, %v2250
  %v2253 = vadd.f32 %v2245, %v2250
  %v2254 = vadd.f32 %v2246, %v2250
  %vm2255 = vcmp.ge.f32.partialorder %v2251, 0.0
  %vm2256 = vcmp.ge.f32.partialorder %v2252, 0.0
  %vm2257 = vcmp.ge.f32.partialorder %v2253, 0.0
  %vm2258 = vcmp.ge.f32.partialorder %v2254, 0.0
  %v2259 = vmul.f32 %v2251, 0.2
  %v2260 = vmul.f32 %v2252, 0.2
  %v2261 = vmul.f32 %v2253, 0.2
  %v2262 = vmul.f32 %v2254, 0.2
  %v2263 = vsel %vm2255, %v2251, %v2259
  %v2264 = vsel %vm2256, %v2252, %v2260
  %v2265 = vsel %vm2257, %v2253, %v2261
  %v2266 = vsel %vm2258, %v2254, %v2262
  %v2267 = vld [vmem:[%s8] sm:$0xf]
  %v2268 = vld [vmem:[%s8 + $0x4] sm:$0xf]
  %v2269 = vld [vmem:[%s8 + $0x8] sm:$0xf]
  %v2270 = vld [vmem:[%s8 + $0xc] sm:$0xf]
  %v2271 = vld [vmem:[%s8 + $0x10] sm:$0xf]
  %v2272 = vld [vmem:[%s8 + $0x14] sm:$0xf]
  %v2273 = vld [vmem:[%s8 + $0x18] sm:$0xf]
  %v2274 = vld [vmem:[%s8 + $0x1c] sm:$0xf]
  %v2275 = vld [vmem:[%s8 + $0x20] sm:$0xf]
  %v2276 = vld [vmem:[%s8 + $0x24] sm:$0xf]
  %v2277 = vld [vmem:[%s8 + $0x28] sm:$0xf]
  %v2278 = vld [vmem:[%s8 + $0x2c] sm:$0xf]
  %v2279 = vld [vmem:[%s8 + $0x30] sm:$0xf]
  %v2280 = vld [vmem:[%s8 + $0x34] sm:$0xf]
  %v2281 = vld [vmem:[%s8 + $0x38] sm:$0xf]
  %v2282 = vld [vmem:[%s8 + $0x3c] sm:$0xf]
  %s2283 = scalar_lea.vmem %s8, 64
  %v2284 = vld [vmem:[%s2283] sm:$0xf]
  %v2285 = vld [vmem:[%s2283 + $0x4] sm:$0xf]
  %v2286 = vld [vmem:[%s2283 + $0x8] sm:$0xf]
  %v2287 = vld [vmem:[%s2283 + $0xc] sm:$0xf]
  %v2288 = vld [vmem:[%s2283 + $0x10] sm:$0xf]
  %v2289 = vld [vmem:[%s2283 + $0x14] sm:$0xf]
  %v2290 = vld [vmem:[%s2283 + $0x18] sm:$0xf]
  %v2291 = vld [vmem:[%s2283 + $0x1c] sm:$0xf]
  %v2292 = vld [vmem:[%s2283 + $0x20] sm:$0xf]
  %v2293 = vld [vmem:[%s2283 + $0x24] sm:$0xf]
  %v2294 = vld [vmem:[%s2283 + $0x28] sm:$0xf]
  %v2295 = vld [vmem:[%s2283 + $0x2c] sm:$0xf]
  %v2296 = vld [vmem:[%s2283 + $0x30] sm:$0xf]
  %v2297 = vld [vmem:[%s2283 + $0x34] sm:$0xf]
  %v2298 = vld [vmem:[%s2283 + $0x38] sm:$0xf]
  %v2299 = vld [vmem:[%s2283 + $0x3c] sm:$0xf]
  %v2316 = vunpack.c.l.b16 %v2284
  %v2317 = vunpack.c.l.b16 %v2285
  %v2318 = vunpack.c.l.b16 %v2286
  %v2319 = vunpack.c.l.b16 %v2287
  %v2320 = vunpack.c.l.b16 %v2288
  %v2321 = vunpack.c.l.b16 %v2289
  %v2322 = vunpack.c.l.b16 %v2290
  %v2323 = vunpack.c.l.b16 %v2291
  %v2324 = vunpack.c.l.b16 %v2292
  %v2325 = vunpack.c.l.b16 %v2293
  %v2326 = vunpack.c.l.b16 %v2294
  %v2327 = vunpack.c.l.b16 %v2295
  %v2328 = vunpack.c.l.b16 %v2296
  %v2329 = vunpack.c.l.b16 %v2297
  %v2330 = vunpack.c.l.b16 %v2298
  %v2331 = vunpack.c.l.b16 %v2299
  %v2332 = vpack.c.b16 %v2317, %v2316
  %v2333 = vpack.c.b16 %v2319, %v2318
  %v2334 = vpack.c.b16 %v2321, %v2320
  %v2335 = vpack.c.b16 %v2323, %v2322
  %v2336 = vpack.c.b16 %v2325, %v2324
  %v2337 = vpack.c.b16 %v2327, %v2326
  %v2338 = vpack.c.b16 %v2329, %v2328
  %v2339 = vpack.c.b16 %v2331, %v2330
  %2348 = vmatprep.subr.bf16.mxu0 0
  %2349 = vmatpush1.bf16.msra.mxu0 %v2332
  %2350 = vmatprep.subr.bf16.mxu0 0
  %2351 = vmatpush1.bf16.msra.mxu0 %v2333
  %2352 = vmatprep.subr.bf16.mxu0 0
  %2353 = vmatpush1.bf16.msra.mxu0 %v2334
  %2354 = vmatprep.subr.bf16.mxu0 0
  %2355 = vmatpush1.bf16.msra.mxu0 %v2335
  %2356 = vmatprep.subr.bf16.mxu0 0
  %2357 = vmatpush1.bf16.msra.mxu0 %v2336
  %2358 = vmatprep.subr.bf16.mxu0 0
  %2359 = vmatpush1.bf16.msra.mxu0 %v2337
  %2360 = vmatprep.subr.bf16.mxu0 0
  %2361 = vmatpush1.bf16.msra.mxu0 %v2338
  %2362 = vmatprep.subr.bf16.mxu0 0
  %2363 = vmatpush1.bf16.msra.mxu0 %v2339
  %2364 = vmatprep.subr.bf16.mxu0 0
  %2365 = vmatpush1.bf16.msra.mxu0 0
  %2366 = vmatprep.subr.bf16.mxu0 0
  %2367 = vmatpush1.bf16.msra.mxu0 0
  %2368 = vmatprep.subr.bf16.mxu0 0
  %2369 = vmatpush1.bf16.msra.mxu0 0
  %2370 = vmatprep.subr.bf16.mxu0 0
  %2371 = vmatpush1.bf16.msra.mxu0 0
  %2372 = vmatprep.subr.bf16.mxu0 0
  %2373 = vmatpush1.bf16.msra.mxu0 0
  %2374 = vmatprep.subr.bf16.mxu0 0
  %2375 = vmatpush1.bf16.msra.mxu0 0
  %2376 = vmatprep.subr.bf16.mxu0 0
  %2377 = vmatpush1.bf16.msra.mxu0 0
  %2378 = vmatprep.subr.bf16.mxu0 0
  %2379 = vmatpush1.bf16.msra.mxu0 0
  %2380 = vmatprep.mubr.bf16.mxu0 0
  %2381 = vmatmul.mubr.bf16.gmra.mrb[0].mxu0 %v1503
  %v2382 = vpop.f32.mrb[0].mxu0
  %v2383 = vadd.f32 0.0, %v2382
  %v2384 = vpop.f32.mrb[0].mxu0
  %v2385 = vpop.f32.mrb[0].mxu0
  %v2386 = vadd.f32 0.0, %v2385
  %v2387 = vpop.f32.mrb[0].mxu0
  %2388 = vmatprep.mubr.bf16.mxu0 0
  %2389 = vmatmul.mubr.bf16.gmra.mrb[0].mxu0 %v1504
  %v2390 = vpop.f32.mrb[0].mxu0
  %v2391 = vadd.f32 0.0, %v2390
  %v2392 = vpop.f32.mrb[0].mxu0
  %v2393 = vpop.f32.mrb[0].mxu0
  %v2394 = vadd.f32 0.0, %v2393
  %v2395 = vpop.f32.mrb[0].mxu0
  %2396 = vdwg.mxu0
  %v2413 = vunpack.c.l.b16 %v2267
  %v2414 = vunpack.c.l.b16 %v2268
  %v2415 = vunpack.c.l.b16 %v2269
  %v2416 = vunpack.c.l.b16 %v2270
  %v2417 = vunpack.c.l.b16 %v2271
  %v2418 = vunpack.c.l.b16 %v2272
  %v2419 = vunpack.c.l.b16 %v2273
  %v2420 = vunpack.c.l.b16 %v2274
  %v2421 = vunpack.c.l.b16 %v2275
  %v2422 = vunpack.c.l.b16 %v2276
  %v2423 = vunpack.c.l.b16 %v2277
  %v2424 = vunpack.c.l.b16 %v2278
  %v2425 = vunpack.c.l.b16 %v2279
  %v2426 = vunpack.c.l.b16 %v2280
  %v2427 = vunpack.c.l.b16 %v2281
  %v2428 = vunpack.c.l.b16 %v2282
  %v2429 = vpack.c.b16 %v2414, %v2413
  %v2430 = vpack.c.b16 %v2416, %v2415
  %v2431 = vpack.c.b16 %v2418, %v2417
  %v2432 = vpack.c.b16 %v2420, %v2419
  %v2433 = vpack.c.b16 %v2422, %v2421
  %v2434 = vpack.c.b16 %v2424, %v2423
  %v2435 = vpack.c.b16 %v2426, %v2425
  %v2436 = vpack.c.b16 %v2428, %v2427
  %2445 = vmatprep.subr.bf16.mxu0 0
  %2446 = vmatpush1.bf16.msra.mxu0 %v2429
  %2447 = vmatprep.subr.bf16.mxu0 0
  %2448 = vmatpush1.bf16.msra.mxu0 %v2430
  %2449 = vmatprep.subr.bf16.mxu0 0
  %2450 = vmatpush1.bf16.msra.mxu0 %v2431
  %2451 = vmatprep.subr.bf16.mxu0 0
  %2452 = vmatpush1.bf16.msra.mxu0 %v2432
  %2453 = vmatprep.subr.bf16.mxu0 0
  %2454 = vmatpush1.bf16.msra.mxu0 %v2433
  %2455 = vmatprep.subr.bf16.mxu0 0
  %2456 = vmatpush1.bf16.msra.mxu0 %v2434
  %2457 = vmatprep.subr.bf16.mxu0 0
  %2458 = vmatpush1.bf16.msra.mxu0 %v2435
  %2459 = vmatprep.subr.bf16.mxu0 0
  %2460 = vmatpush1.bf16.msra.mxu0 %v2436
  %2461 = vmatprep.subr.bf16.mxu0 0
  %2462 = vmatpush1.bf16.msra.mxu0 0
  %2463 = vmatprep.subr.bf16.mxu0 0
  %2464 = vmatpush1.bf16.msra.mxu0 0
  %2465 = vmatprep.subr.bf16.mxu0 0
  %2466 = vmatpush1.bf16.msra.mxu0 0
  %2467 = vmatprep.subr.bf16.mxu0 0
  %2468 = vmatpush1.bf16.msra.mxu0 0
  %2469 = vmatprep.subr.bf16.mxu0 0
  %2470 = vmatpush1.bf16.msra.mxu0 0
  %2471 = vmatprep.subr.bf16.mxu0 0
  %2472 = vmatpush1.bf16.msra.mxu0 0
  %2473 = vmatprep.subr.bf16.mxu0 0
  %2474 = vmatpush1.bf16.msra.mxu0 0
  %2475 = vmatprep.subr.bf16.mxu0 0
  %2476 = vmatpush1.bf16.msra.mxu0 0
  %2477 = vmatprep.mubr.bf16.mxu0 0
  %2478 = vmatmul.mubr.bf16.gmra.mrb[0].mxu0 %v1116
  %v2479 = vpop.f32.mrb[0].mxu0
  %v2480 = vadd.f32 %v2383, %v2479
  %v2481 = vpop.f32.mrb[0].mxu0
  %v2482 = vpop.f32.mrb[0].mxu0
  %v2483 = vadd.f32 %v2386, %v2482
  %v2484 = vpop.f32.mrb[0].mxu0
  %2485 = vmatprep.mubr.bf16.mxu0 0
  %2486 = vmatmul.mubr.bf16.gmra.mrb[0].mxu0 %v1117
  %v2487 = vpop.f32.mrb[0].mxu0
  %v2488 = vadd.f32 %v2391, %v2487
  %v2489 = vpop.f32.mrb[0].mxu0
  %v2490 = vpop.f32.mrb[0].mxu0
  %v2491 = vadd.f32 %v2394, %v2490
  %v2492 = vpop.f32.mrb[0].mxu0
  %2493 = vdwg.mxu0
  %v2494 = vlaneseq
  %v2495 = vshrl.u32 %v2494, 7
  %v2496 = vsub.s32 4, %v2495
  %v2497 = vrot.slane %v39, %v2496
  %v2498 = vadd.f32 %v2480, %v2497
  %v2499 = vadd.f32 %v2483, %v2497
  %v2500 = vadd.f32 %v2488, %v2497
  %v2501 = vadd.f32 %v2491, %v2497
  %v2502 = vadd.f32 %v2263, %v2498
  %v2503 = vadd.f32 %v2264, %v2499
  %v2504 = vadd.f32 %v2265, %v2500
  %v2505 = vadd.f32 %v2266, %v2501
  %v2506 = vpack.c.bf16 %v2503, %v2502
  %v2507 = vpack.c.bf16 %v2505, %v2504
  %v2510 = vunpack.c.l.b16 %v2506
  %v2511 = vunpack.c.h.b16 %v2506
  %v2512 = vunpack.c.l.b16 %v2507
  %v2513 = vunpack.c.h.b16 %v2507
  %v2514 = vpack.c.b16 %v2510, %v2510
  %v2515 = vpack.c.b16 %v2511, %v2511
  %v2516 = vpack.c.b16 %v2512, %v2512
  %v2517 = vpack.c.b16 %v2513, %v2513
  %2522 = vst [vmem:[%s11] sm:$0xf] %v2514
  %2523 = vst [vmem:[%s11 + $0x4] sm:$0xf] %v2515
  %2524 = vst [vmem:[%s11 + $0x8] sm:$0xf] %v2516
  %2525 = vst [vmem:[%s11 + $0xc] sm:$0xf] %v2517
  // Predicated region
  $region46: #{decoder_forward.2} parent=0 // pred_check
    _
  $region47: #{decoder_forward.2} parent=0 // pred_check_branch
    %2527 = sbr.rel (0) target = $region49
  $region48: #{decoder_forward.2} parent=0 // pred_region
    _
  $region49: #{decoder_forward.2} parent=0 // pred_fallthru
    _
  // Predicated region
  $region50: #{decoder_forward.2} parent=0 // pred_check
    _
  $region51: #{decoder_forward.2} parent=0 // pred_check_branch
    %2529 = sbr.rel (0) target = $region53
  $region52: #{decoder_forward.2} parent=0 // pred_region
    _
  $region53: #{decoder_forward.2} parent=0 // pred_fallthru
    _

// kernel: decoder_forward.3
$region0: #{decoder_forward.3}
  #allocation0 [shape = 'u32[]', space=smem, size = 0x4, offset = 0x4, fixed_abs, tag = 'smem constant byte address 0x4 - core index']
  #allocation1 [shape = 'u32[144,128]{1,0:T(1,128)}', space=vmem, size = 0x12000, scoped, tag = 'internal scratch']
  %s0 = inlined_call_operand.vmem [shape: bf16[32,128], index: 0, kind: input, shape index: {}]
  %s1 = inlined_call_operand.vmem [shape: bf16[64,256], index: 1, kind: input, shape index: {}]
  %s2 = inlined_call_operand.vmem [shape: bf16[2,128,128], index: 2, kind: input, shape index: {}]
  %s3 = inlined_call_operand.vmem [shape: f32[2,64,32], index: 3, kind: input, shape index: {}]
  %s4 = inlined_call_operand.vmem [shape: bf16[3,256,128], index: 4, kind: input, shape index: {}]
  %s5 = inlined_call_operand.vmem [shape: bf16[3,128,128], index: 5, kind: input, shape index: {}]
  %s6 = inlined_call_operand.vmem [shape: bf16[3,128,128], index: 6, kind: input, shape index: {}]
  %s7 = inlined_call_operand.vmem [shape: bf16[3,128,128], index: 7, kind: input, shape index: {}]
  %s8 = inlined_call_operand.vmem [shape: bf16[2,128,128], index: 8, kind: input, shape index: {}]
  %s9 = inlined_call_operand.vmem [shape: f32[5,128], index: 9, kind: input, shape index: {}]
  %s10 = inlined_call_operand.vmem [shape: f32[64,2], index: 10, kind: input, shape index: {}]
  %s11 = inlined_call_operand.vmem [shape: bf16[64,128], index: 11, kind: output, shape index: {}]
  %s12 = sld [smem:[#allocation0]]
  $region54: #{decoder_forward.3} parent=0
    _
  %s14 = ssub.s32 1, %s12
  %s15 = scalar_select 0, %s14, %s12
  // Predicated region
  $region2: #{decoder_forward.3} parent=0 // pred_check
    _
  $region3: #{decoder_forward.3} parent=0 // pred_check_branch
    %17 = sbr.rel (0) target = $region5
  $region4: #{decoder_forward.3} parent=0 // pred_region
    _
  $region5: #{decoder_forward.3} parent=0 // pred_fallthru
    _
  // Predicated region
  $region6: #{decoder_forward.3} parent=0 // pred_check
    _
  $region7: #{decoder_forward.3} parent=0 // pred_check_branch
    %19 = sbr.rel (0) target = $region9
  $region8: #{decoder_forward.3} parent=0 // pred_region
    _
  $region9: #{decoder_forward.3} parent=0 // pred_fallthru
    _
  // Predicated region
  $region10: #{decoder_forward.3} parent=0 // pred_check
    _
  $region11: #{decoder_forward.3} parent=0 // pred_check_branch
    %21 = sbr.rel (0) target = $region13
  $region12: #{decoder_forward.3} parent=0 // pred_region
    _
  $region13: #{decoder_forward.3} parent=0 // pred_fallthru
    _
  // Predicated region
  $region14: #{decoder_forward.3} parent=0 // pred_check
    _
  $region15: #{decoder_forward.3} parent=0 // pred_check_branch
    %23 = sbr.rel (0) target = $region17
  $region16: #{decoder_forward.3} parent=0 // pred_region
    _
  $region17: #{decoder_forward.3} parent=0 // pred_fallthru
    _
  // Predicated region
  $region18: #{decoder_forward.3} parent=0 // pred_check
    _
  $region19: #{decoder_forward.3} parent=0 // pred_check_branch
    %25 = sbr.rel (0) target = $region21
  $region20: #{decoder_forward.3} parent=0 // pred_region
    _
  $region21: #{decoder_forward.3} parent=0 // pred_fallthru
    _
  // Predicated region
  $region22: #{decoder_forward.3} parent=0 // pred_check
    _
  $region23: #{decoder_forward.3} parent=0 // pred_check_branch
    %27 = sbr.rel (0) target = $region25
  $region24: #{decoder_forward.3} parent=0 // pred_region
    _
  $region25: #{decoder_forward.3} parent=0 // pred_fallthru
    _
  // Predicated region
  $region26: #{decoder_forward.3} parent=0 // pred_check
    _
  $region27: #{decoder_forward.3} parent=0 // pred_check_branch
    %29 = sbr.rel (0) target = $region29
  $region28: #{decoder_forward.3} parent=0 // pred_region
    _
  $region29: #{decoder_forward.3} parent=0 // pred_fallthru
    _
  // Predicated region
  $region30: #{decoder_forward.3} parent=0 // pred_check
    _
  $region31: #{decoder_forward.3} parent=0 // pred_check_branch
    %31 = sbr.rel (0) target = $region33
  $region32: #{decoder_forward.3} parent=0 // pred_region
    _
  $region33: #{decoder_forward.3} parent=0 // pred_fallthru
    _
  // Predicated region
  $region34: #{decoder_forward.3} parent=0 // pred_check
    _
  $region35: #{decoder_forward.3} parent=0 // pred_check_branch
    %33 = sbr.rel (0) target = $region37
  $region36: #{decoder_forward.3} parent=0 // pred_region
    _
  $region37: #{decoder_forward.3} parent=0 // pred_fallthru
    _
  // Predicated region
  $region38: #{decoder_forward.3} parent=0 // pred_check
    _
  $region39: #{decoder_forward.3} parent=0 // pred_check_branch
    %35 = sbr.rel (0) target = $region41
  $region40: #{decoder_forward.3} parent=0 // pred_region
    _
  $region41: #{decoder_forward.3} parent=0 // pred_fallthru
    _
  // Predicated region
  $region42: #{decoder_forward.3} parent=0 // pred_check
    _
  $region43: #{decoder_forward.3} parent=0 // pred_check_branch
    %37 = sbr.rel (0) target = $region45
  $region44: #{decoder_forward.3} parent=0 // pred_region
    _
  $region45: #{decoder_forward.3} parent=0 // pred_fallthru
    _
  %v39 = vld [vmem:[%s9] sm:$0x1f]
  %v40 = vld [vmem:[%s10] sm:$0xff]
  %v41 = vld [vmem:[%s10 + $0x8] sm:$0xff]
  %v42 = vld [vmem:[%s10 + $0x10] sm:$0xff]
  %v43 = vld [vmem:[%s10 + $0x18] sm:$0xff]
  %v44 = vld [vmem:[%s10 + $0x20] sm:$0xff]
  %v45 = vld [vmem:[%s10 + $0x28] sm:$0xff]
  %v46 = vld [vmem:[%s10 + $0x30] sm:$0xff]
  %v47 = vld [vmem:[%s10 + $0x38] sm:$0xff]
  %v48 = vld [vmem:[%s0] sm:$0xf]
  %v49 = vld [vmem:[%s0 + $0x4] sm:$0xf]
  %v50 = vld [vmem:[%s0 + $0x8] sm:$0xf]
  %v51 = vld [vmem:[%s0 + $0xc] sm:$0xf]
  %v52 = vld [vmem:[%s2] sm:$0xf]
  %v53 = vld [vmem:[%s2 + $0x4] sm:$0xf]
  %v54 = vld [vmem:[%s2 + $0x8] sm:$0xf]
  %v55 = vld [vmem:[%s2 + $0xc] sm:$0xf]
  %v56 = vld [vmem:[%s2 + $0x10] sm:$0xf]
  %v57 = vld [vmem:[%s2 + $0x14] sm:$0xf]
  %v58 = vld [vmem:[%s2 + $0x18] sm:$0xf]
  %v59 = vld [vmem:[%s2 + $0x1c] sm:$0xf]
  %v60 = vld [vmem:[%s2 + $0x20] sm:$0xf]
  %v61 = vld [vmem:[%s2 + $0x24] sm:$0xf]
  %v62 = vld [vmem:[%s2 + $0x28] sm:$0xf]
  %v63 = vld [vmem:[%s2 + $0x2c] sm:$0xf]
  %v64 = vld [vmem:[%s2 + $0x30] sm:$0xf]
  %v65 = vld [vmem:[%s2 + $0x34] sm:$0xf]
  %v66 = vld [vmem:[%s2 + $0x38] sm:$0xf]
  %v67 = vld [vmem:[%s2 + $0x3c] sm:$0xf]
  %v72 = vunpack.c.l.b16 %v48
  %v73 = vunpack.c.l.b16 %v49
  %v74 = vunpack.c.l.b16 %v50
  %v75 = vunpack.c.l.b16 %v51
  %v76 = vpack.c.b16 %v73, %v72
  %v77 = vpack.c.b16 %v75, %v74
  %v96 = vunpack.c.l.b16 %v52
  %v97 = vunpack.c.l.b16 %v53
  %v98 = vunpack.c.l.b16 %v54
  %v99 = vunpack.c.l.b16 %v55
  %v100 = vunpack.c.l.b16 %v56
  %v101 = vunpack.c.l.b16 %v57
  %v102 = vunpack.c.l.b16 %v58
  %v103 = vunpack.c.l.b16 %v59
  %v104 = vunpack.c.l.b16 %v60
  %v105 = vunpack.c.l.b16 %v61
  %v106 = vunpack.c.l.b16 %v62
  %v107 = vunpack.c.l.b16 %v63
  %v108 = vunpack.c.l.b16 %v64
  %v109 = vunpack.c.l.b16 %v65
  %v110 = vunpack.c.l.b16 %v66
  %v111 = vunpack.c.l.b16 %v67
  %v112 = vpack.c.b16 %v97, %v96
  %v113 = vpack.c.b16 %v99, %v98
  %v114 = vpack.c.b16 %v101, %v100
  %v115 = vpack.c.b16 %v103, %v102
  %v116 = vpack.c.b16 %v105, %v104
  %v117 = vpack.c.b16 %v107, %v106
  %v118 = vpack.c.b16 %v109, %v108
  %v119 = vpack.c.b16 %v111, %v110
  %128 = vmatprep.subr.bf16.mxu0 0
  %129 = vmatpush1.bf16.msra.mxu0 %v112
  %130 = vmatprep.subr.bf16.mxu0 0
  %131 = vmatpush1.bf16.msra.mxu0 %v113
  %132 = vmatprep.subr.bf16.mxu0 0
  %133 = vmatpush1.bf16.msra.mxu0 %v114
  %134 = vmatprep.subr.bf16.mxu0 0
  %135 = vmatpush1.bf16.msra.mxu0 %v115
  %136 = vmatprep.subr.bf16.mxu0 0
  %137 = vmatpush1.bf16.msra.mxu0 %v116
  %138 = vmatprep.subr.bf16.mxu0 0
  %139 = vmatpush1.bf16.msra.mxu0 %v117
  %140 = vmatprep.subr.bf16.mxu0 0
  %141 = vmatpush1.bf16.msra.mxu0 %v118
  %142 = vmatprep.subr.bf16.mxu0 0
  %143 = vmatpush1.bf16.msra.mxu0 %v119
  %144 = vmatprep.subr.bf16.mxu0 0
  %145 = vmatpush1.bf16.msra.mxu0 0
  %146 = vmatprep.subr.bf16.mxu0 0
  %147 = vmatpush1.bf16.msra.mxu0 0
  %148 = vmatprep.subr.bf16.mxu0 0
  %149 = vmatpush1.bf16.msra.mxu0 0
  %150 = vmatprep.subr.bf16.mxu0 0
  %151 = vmatpush1.bf16.msra.mxu0 0
  %152 = vmatprep.subr.bf16.mxu0 0
  %153 = vmatpush1.bf16.msra.mxu0 0
  %154 = vmatprep.subr.bf16.mxu0 0
  %155 = vmatpush1.bf16.msra.mxu0 0
  %156 = vmatprep.subr.bf16.mxu0 0
  %157 = vmatpush1.bf16.msra.mxu0 0
  %158 = vmatprep.subr.bf16.mxu0 0
  %159 = vmatpush1.bf16.msra.mxu0 0
  %160 = vmatprep.mubr.bf16.mxu0 0
  %161 = vmatmul.mubr.bf16.gmra.mrb[0].mxu0 %v76
  %v162 = vpop.f32.mrb[0].mxu0
  %v163 = vadd.f32 0.0, %v162
  %v164 = vpop.f32.mrb[0].mxu0
  %v165 = vpop.f32.mrb[0].mxu0
  %v166 = vadd.f32 0.0, %v165
  %v167 = vpop.f32.mrb[0].mxu0
  %168 = vmatprep.mubr.bf16.mxu0 0
  %169 = vmatmul.mubr.bf16.gmra.mrb[0].mxu0 %v77
  %v170 = vpop.f32.mrb[0].mxu0
  %v171 = vadd.f32 0.0, %v170
  %v172 = vpop.f32.mrb[0].mxu0
  %v173 = vpop.f32.mrb[0].mxu0
  %v174 = vadd.f32 0.0, %v173
  %v175 = vpop.f32.mrb[0].mxu0
  %176 = vdwg.mxu0
  %s177 = scalar_lea.vmem %s2, 64
  %v178 = vld [vmem:[%s177] sm:$0xf]
  %v179 = vld [vmem:[%s177 + $0x4] sm:$0xf]
  %v180 = vld [vmem:[%s177 + $0x8] sm:$0xf]
  %v181 = vld [vmem:[%s177 + $0xc] sm:$0xf]
  %v182 = vld [vmem:[%s177 + $0x10] sm:$0xf]
  %v183 = vld [vmem:[%s177 + $0x14] sm:$0xf]
  %v184 = vld [vmem:[%s177 + $0x18] sm:$0xf]
  %v185 = vld [vmem:[%s177 + $0x1c] sm:$0xf]
  %v186 = vld [vmem:[%s177 + $0x20] sm:$0xf]
  %v187 = vld [vmem:[%s177 + $0x24] sm:$0xf]
  %v188 = vld [vmem:[%s177 + $0x28] sm:$0xf]
  %v189 = vld [vmem:[%s177 + $0x2c] sm:$0xf]
  %v190 = vld [vmem:[%s177 + $0x30] sm:$0xf]
  %v191 = vld [vmem:[%s177 + $0x34] sm:$0xf]
  %v192 = vld [vmem:[%s177 + $0x38] sm:$0xf]
  %v193 = vld [vmem:[%s177 + $0x3c] sm:$0xf]
  %v210 = vunpack.c.l.b16 %v178
  %v211 = vunpack.c.l.b16 %v179
  %v212 = vunpack.c.l.b16 %v180
  %v213 = vunpack.c.l.b16 %v181
  %v214 = vunpack.c.l.b16 %v182
  %v215 = vunpack.c.l.b16 %v183
  %v216 = vunpack.c.l.b16 %v184
  %v217 = vunpack.c.l.b16 %v185
  %v218 = vunpack.c.l.b16 %v186
  %v219 = vunpack.c.l.b16 %v187
  %v220 = vunpack.c.l.b16 %v188
  %v221 = vunpack.c.l.b16 %v189
  %v222 = vunpack.c.l.b16 %v190
  %v223 = vunpack.c.l.b16 %v191
  %v224 = vunpack.c.l.b16 %v192
  %v225 = vunpack.c.l.b16 %v193
  %v226 = vpack.c.b16 %v211, %v210
  %v227 = vpack.c.b16 %v213, %v212
  %v228 = vpack.c.b16 %v215, %v214
  %v229 = vpack.c.b16 %v217, %v216
  %v230 = vpack.c.b16 %v219, %v218
  %v231 = vpack.c.b16 %v221, %v220
  %v232 = vpack.c.b16 %v223, %v222
  %v233 = vpack.c.b16 %v225, %v224
  %242 = vmatprep.subr.bf16.mxu0 0
  %243 = vmatpush1.bf16.msra.mxu0 %v226
  %244 = vmatprep.subr.bf16.mxu0 0
  %245 = vmatpush1.bf16.msra.mxu0 %v227
  %246 = vmatprep.subr.bf16.mxu0 0
  %247 = vmatpush1.bf16.msra.mxu0 %v228
  %248 = vmatprep.subr.bf16.mxu0 0
  %249 = vmatpush1.bf16.msra.mxu0 %v229
  %250 = vmatprep.subr.bf16.mxu0 0
  %251 = vmatpush1.bf16.msra.mxu0 %v230
  %252 = vmatprep.subr.bf16.mxu0 0
  %253 = vmatpush1.bf16.msra.mxu0 %v231
  %254 = vmatprep.subr.bf16.mxu0 0
  %255 = vmatpush1.bf16.msra.mxu0 %v232
  %256 = vmatprep.subr.bf16.mxu0 0
  %257 = vmatpush1.bf16.msra.mxu0 %v233
  %258 = vmatprep.subr.bf16.mxu0 0
  %259 = vmatpush1.bf16.msra.mxu0 0
  %260 = vmatprep.subr.bf16.mxu0 0
  %261 = vmatpush1.bf16.msra.mxu0 0
  %262 = vmatprep.subr.bf16.mxu0 0
  %263 = vmatpush1.bf16.msra.mxu0 0
  %264 = vmatprep.subr.bf16.mxu0 0
  %265 = vmatpush1.bf16.msra.mxu0 0
  %266 = vmatprep.subr.bf16.mxu0 0
  %267 = vmatpush1.bf16.msra.mxu0 0
  %268 = vmatprep.subr.bf16.mxu0 0
  %269 = vmatpush1.bf16.msra.mxu0 0
  %270 = vmatprep.subr.bf16.mxu0 0
  %271 = vmatpush1.bf16.msra.mxu0 0
  %272 = vmatprep.subr.bf16.mxu0 0
  %273 = vmatpush1.bf16.msra.mxu0 0
  %274 = vmatprep.mubr.bf16.mxu0 0
  %275 = vmatmul.mubr.bf16.gmra.mrb[0].mxu0 %v76
  %v276 = vpop.f32.mrb[0].mxu0
  %v277 = vadd.f32 0.0, %v276
  %v278 = vpop.f32.mrb[0].mxu0
  %v279 = vpop.f32.mrb[0].mxu0
  %v280 = vadd.f32 0.0, %v279
  %v281 = vpop.f32.mrb[0].mxu0
  %282 = vmatprep.mubr.bf16.mxu0 0
  %283 = vmatmul.mubr.bf16.gmra.mrb[0].mxu0 %v77
  %v284 = vpop.f32.mrb[0].mxu0
  %v285 = vadd.f32 0.0, %v284
  %v286 = vpop.f32.mrb[0].mxu0
  %v287 = vpop.f32.mrb[0].mxu0
  %v288 = vadd.f32 0.0, %v287
  %v289 = vpop.f32.mrb[0].mxu0
  %290 = vdwg.mxu0
  %v291 = vld [vmem:[%s3] sm:$0xff]
  %v292 = vld [vmem:[%s3 + $0x8] sm:$0xff]
  %v293 = vld [vmem:[%s3 + $0x10] sm:$0xff]
  %v294 = vld [vmem:[%s3 + $0x18] sm:$0xff]
  %v295 = vld [vmem:[%s3 + $0x20] sm:$0xff]
  %v296 = vld [vmem:[%s3 + $0x28] sm:$0xff]
  %v297 = vld [vmem:[%s3 + $0x30] sm:$0xff]
  %v298 = vld [vmem:[%s3 + $0x38] sm:$0xff]
  %s299 = scalar_lea.vmem %s3, 64
  %v300 = vld [vmem:[%s299] sm:$0xff]
  %v301 = vld [vmem:[%s299 + $0x8] sm:$0xff]
  %v302 = vld [vmem:[%s299 + $0x10] sm:$0xff]
  %v303 = vld [vmem:[%s299 + $0x18] sm:$0xff]
  %v304 = vld [vmem:[%s299 + $0x20] sm:$0xff]
  %v305 = vld [vmem:[%s299 + $0x28] sm:$0xff]
  %v306 = vld [vmem:[%s299 + $0x30] sm:$0xff]
  %v307 = vld [vmem:[%s299 + $0x38] sm:$0xff]
  %vm308 = vcmask 261120
  %v310 = vsel %vm308, %v300, 0
  %v313 = vsel %vm308, %v301, 0
  %v316 = vsel %vm308, %v302, 0
  %v319 = vsel %vm308, %v303, 0
  %v322 = vsel %vm308, %v304, 0
  %v325 = vsel %vm308, %v305, 0
  %v328 = vsel %vm308, %v306, 0
  %v331 = vsel %vm308, %v307, 0
  %333 = vmatprep.subr.mxu0 0.0
  %334 = vmatpush1.msra.mxu0 %v277
  %335 = vmatprep.subr.mxu0 0.0
  %336 = vmatpush1.msra.mxu0 %v280
  %337 = vmatprep.subr.mxu0 0.0
  %338 = vmatpush1.msra.mxu0 %v285
  %339 = vmatprep.subr.mxu0 0.0
  %340 = vmatpush1.msra.mxu0 %v288
  %341 = vmatprep.subr.mxu0 0.0
  %342 = vmatpush1.msra.mxu0 0.0
  %343 = vmatprep.subr.mxu0 0.0
  %344 = vmatpush1.msra.mxu0 0.0
  %345 = vmatprep.subr.mxu0 0.0
  %346 = vmatpush1.msra.mxu0 0.0
  %347 = vmatprep.subr.mxu0 0.0
  %348 = vmatpush1.msra.mxu0 0.0
  %349 = vmatprep.subr.mxu0 0.0
  %350 = vmatpush1.msra.mxu0 0.0
  %351 = vmatprep.subr.mxu0 0.0
  %352 = vmatpush1.msra.mxu0 0.0
  %353 = vmatprep.subr.mxu0 0.0
  %354 = vmatpush1.msra.mxu0 0.0
  %355 = vmatprep.subr.mxu0 0.0
  %356 = vmatpush1.msra.mxu0 0.0
  %357 = vmatprep.subr.mxu0 0.0
  %358 = vmatpush1.msra.mxu0 0.0
  %359 = vmatprep.subr.mxu0 0.0
  %360 = vmatpush1.msra.mxu0 0.0
  %361 = vmatprep.subr.mxu0 0.0
  %362 = vmatpush1.msra.mxu0 0.0
  %363 = vmatprep.subr.mxu0 0.0
  %364 = vmatpush1.msra.mxu0 0.0
  %365 = vmatprep.subr.mxu0 0.0
  %366 = vmatpush1.msra.mxu0 0.0
  %367 = vmatprep.subr.mxu0 0.0
  %368 = vmatpush1.msra.mxu0 0.0
  %369 = vmatprep.subr.mxu0 0.0
  %370 = vmatpush1.msra.mxu0 0.0
  %371 = vmatprep.subr.mxu0 0.0
  %372 = vmatpush1.msra.mxu0 0.0
  %373 = vmatprep.subr.mxu0 0.0
  %374 = vmatpush1.msra.mxu0 0.0
  %375 = vmatprep.subr.mxu0 0.0
  %376 = vmatpush1.msra.mxu0 0.0
  %377 = vmatprep.subr.mxu0 0.0
  %378 = vmatpush1.msra.mxu0 0.0
  %379 = vmatprep.subr.mxu0 0.0
  %380 = vmatpush1.msra.mxu0 0.0
  %381 = vmatprep.subr.mxu0 0.0
  %382 = vmatpush1.msra.mxu0 0.0
  %383 = vmatprep.subr.mxu0 0.0
  %384 = vmatpush1.msra.mxu0 0.0
  %385 = vmatprep.subr.mxu0 0.0
  %386 = vmatpush1.msra.mxu0 0.0
  %387 = vmatprep.subr.mxu0 0.0
  %388 = vmatpush1.msra.mxu0 0.0
  %389 = vmatprep.subr.mxu0 0.0
  %390 = vmatpush1.msra.mxu0 0.0
  %391 = vmatprep.subr.mxu0 0.0
  %392 = vmatpush1.msra.mxu0 0.0
  %393 = vmatprep.subr.mxu0 0.0
  %394 = vmatpush1.msra.mxu0 0.0
  %395 = vmatprep.subr.mxu0 0.0
  %396 = vmatpush1.msra.mxu0 0.0
  %397 = vmatprep.mubr.f32.mxu0 0.0
  %398 = vmatmul.mubr.f32.gmra.mrb[0].mxu0 %v310
  %v399 = vpop.f32.mrb[0].mxu0
  %v400 = vadd.f32 0.0, %v399
  %v401 = vpop.f32.mrb[0].mxu0
  %402 = vmatprep.mubr.f32.mxu0 0.0
  %403 = vmatmul.mubr.f32.gmra.mrb[0].mxu0 %v313
  %v404 = vpop.f32.mrb[0].mxu0
  %v405 = vadd.f32 0.0, %v404
  %v406 = vpop.f32.mrb[0].mxu0
  %407 = vmatprep.mubr.f32.mxu0 0.0
  %408 = vmatmul.mubr.f32.gmra.mrb[0].mxu0 %v316
  %v409 = vpop.f32.mrb[0].mxu0
  %v410 = vadd.f32 0.0, %v409
  %v411 = vpop.f32.mrb[0].mxu0
  %412 = vmatprep.mubr.f32.mxu0 0.0
  %413 = vmatmul.mubr.f32.gmra.mrb[0].mxu0 %v319
  %v414 = vpop.f32.mrb[0].mxu0
  %v415 = vadd.f32 0.0, %v414
  %v416 = vpop.f32.mrb[0].mxu0
  %417 = vmatprep.mubr.f32.mxu0 0.0
  %418 = vmatmul.mubr.f32.gmra.mrb[0].mxu0 %v322
  %v419 = vpop.f32.mrb[0].mxu0
  %v420 = vadd.f32 0.0, %v419
  %v421 = vpop.f32.mrb[0].mxu0
  %422 = vmatprep.mubr.f32.mxu0 0.0
  %423 = vmatmul.mubr.f32.gmra.mrb[0].mxu0 %v325
  %v424 = vpop.f32.mrb[0].mxu0
  %v425 = vadd.f32 0.0, %v424
  %v426 = vpop.f32.mrb[0].mxu0
  %427 = vmatprep.mubr.f32.mxu0 0.0
  %428 = vmatmul.mubr.f32.gmra.mrb[0].mxu0 %v328
  %v429 = vpop.f32.mrb[0].mxu0
  %v430 = vadd.f32 0.0, %v429
  %v431 = vpop.f32.mrb[0].mxu0
  %432 = vmatprep.mubr.f32.mxu0 0.0
  %433 = vmatmul.mubr.f32.gmra.mrb[0].mxu0 %v331
  %v434 = vpop.f32.mrb[0].mxu0
  %v435 = vadd.f32 0.0, %v434
  %v436 = vpop.f32.mrb[0].mxu0
  %437 = vdwg.mxu0
  %v439 = vsel %vm308, %v291, 0
  %v442 = vsel %vm308, %v292, 0
  %v445 = vsel %vm308, %v293, 0
  %v448 = vsel %vm308, %v294, 0
  %v451 = vsel %vm308, %v295, 0
  %v454 = vsel %vm308, %v296, 0
  %v457 = vsel %vm308, %v297, 0
  %v460 = vsel %vm308, %v298, 0
  %462 = vmatprep.subr.mxu0 0.0
  %463 = vmatpush1.msra.mxu0 %v163
  %464 = vmatprep.subr.mxu0 0.0
  %465 = vmatpush1.msra.mxu0 %v166
  %466 = vmatprep.subr.mxu0 0.0
  %467 = vmatpush1.msra.mxu0 %v171
  %468 = vmatprep.subr.mxu0 0.0
  %469 = vmatpush1.msra.mxu0 %v174
  %470 = vmatprep.subr.mxu0 0.0
  %471 = vmatpush1.msra.mxu0 0.0
  %472 = vmatprep.subr.mxu0 0.0
  %473 = vmatpush1.msra.mxu0 0.0
  %474 = vmatprep.subr.mxu0 0.0
  %475 = vmatpush1.msra.mxu0 0.0
  %476 = vmatprep.subr.mxu0 0.0
  %477 = vmatpush1.msra.mxu0 0.0
  %478 = vmatprep.subr.mxu0 0.0
  %479 = vmatpush1.msra.mxu0 0.0
  %480 = vmatprep.subr.mxu0 0.0
  %481 = vmatpush1.msra.mxu0 0.0
  %482 = vmatprep.subr.mxu0 0.0
  %483 = vmatpush1.msra.mxu0 0.0
  %484 = vmatprep.subr.mxu0 0.0
  %485 = vmatpush1.msra.mxu0 0.0
  %486 = vmatprep.subr.mxu0 0.0
  %487 = vmatpush1.msra.mxu0 0.0
  %488 = vmatprep.subr.mxu0 0.0
  %489 = vmatpush1.msra.mxu0 0.0
  %490 = vmatprep.subr.mxu0 0.0
  %491 = vmatpush1.msra.mxu0 0.0
  %492 = vmatprep.subr.mxu0 0.0
  %493 = vmatpush1.msra.mxu0 0.0
  %494 = vmatprep.subr.mxu0 0.0
  %495 = vmatpush1.msra.mxu0 0.0
  %496 = vmatprep.subr.mxu0 0.0
  %497 = vmatpush1.msra.mxu0 0.0
  %498 = vmatprep.subr.mxu0 0.0
  %499 = vmatpush1.msra.mxu0 0.0
  %500 = vmatprep.subr.mxu0 0.0
  %501 = vmatpush1.msra.mxu0 0.0
  %502 = vmatprep.subr.mxu0 0.0
  %503 = vmatpush1.msra.mxu0 0.0
  %504 = vmatprep.subr.mxu0 0.0
  %505 = vmatpush1.msra.mxu0 0.0
  %506 = vmatprep.subr.mxu0 0.0
  %507 = vmatpush1.msra.mxu0 0.0
  %508 = vmatprep.subr.mxu0 0.0
  %509 = vmatpush1.msra.mxu0 0.0
  %510 = vmatprep.subr.mxu0 0.0
  %511 = vmatpush1.msra.mxu0 0.0
  %512 = vmatprep.subr.mxu0 0.0
  %513 = vmatpush1.msra.mxu0 0.0
  %514 = vmatprep.subr.mxu0 0.0
  %515 = vmatpush1.msra.mxu0 0.0
  %516 = vmatprep.subr.mxu0 0.0
  %517 = vmatpush1.msra.mxu0 0.0
  %518 = vmatprep.subr.mxu0 0.0
  %519 = vmatpush1.msra.mxu0 0.0
  %520 = vmatprep.subr.mxu0 0.0
  %521 = vmatpush1.msra.mxu0 0.0
  %522 = vmatprep.subr.mxu0 0.0
  %523 = vmatpush1.msra.mxu0 0.0
  %524 = vmatprep.subr.mxu0 0.0
  %525 = vmatpush1.msra.mxu0 0.0
  %526 = vmatprep.mubr.f32.mxu0 0.0
  %527 = vmatmul.mubr.f32.gmra.mrb[0].mxu0 %v439
  %v528 = vpop.f32.mrb[0].mxu0
  %v529 = vadd.f32 %v400, %v528
  %v530 = vpop.f32.mrb[0].mxu0
  %531 = vmatprep.mubr.f32.mxu0 0.0
  %532 = vmatmul.mubr.f32.gmra.mrb[0].mxu0 %v442
  %v533 = vpop.f32.mrb[0].mxu0
  %v534 = vadd.f32 %v405, %v533
  %v535 = vpop.f32.mrb[0].mxu0
  %536 = vmatprep.mubr.f32.mxu0 0.0
  %537 = vmatmul.mubr.f32.gmra.mrb[0].mxu0 %v445
  %v538 = vpop.f32.mrb[0].mxu0
  %v539 = vadd.f32 %v410, %v538
  %v540 = vpop.f32.mrb[0].mxu0
  %541 = vmatprep.mubr.f32.mxu0 0.0
  %542 = vmatmul.mubr.f32.gmra.mrb[0].mxu0 %v448
  %v543 = vpop.f32.mrb[0].mxu0
  %v544 = vadd.f32 %v415, %v543
  %v545 = vpop.f32.mrb[0].mxu0
  %546 = vmatprep.mubr.f32.mxu0 0.0
  %547 = vmatmul.mubr.f32.gmra.mrb[0].mxu0 %v451
  %v548 = vpop.f32.mrb[0].mxu0
  %v549 = vadd.f32 %v420, %v548
  %v550 = vpop.f32.mrb[0].mxu0
  %551 = vmatprep.mubr.f32.mxu0 0.0
  %552 = vmatmul.mubr.f32.gmra.mrb[0].mxu0 %v454
  %v553 = vpop.f32.mrb[0].mxu0
  %v554 = vadd.f32 %v425, %v553
  %v555 = vpop.f32.mrb[0].mxu0
  %556 = vmatprep.mubr.f32.mxu0 0.0
  %557 = vmatmul.mubr.f32.gmra.mrb[0].mxu0 %v457
  %v558 = vpop.f32.mrb[0].mxu0
  %v559 = vadd.f32 %v430, %v558
  %v560 = vpop.f32.mrb[0].mxu0
  %561 = vmatprep.mubr.f32.mxu0 0.0
  %562 = vmatmul.mubr.f32.gmra.mrb[0].mxu0 %v460
  %v563 = vpop.f32.mrb[0].mxu0
  %v564 = vadd.f32 %v435, %v563
  %v565 = vpop.f32.mrb[0].mxu0
  %566 = vdwg.mxu0
  %v567 = vlaneseq
  %v568 = vshrl.u32 %v567, 7
  %v569 = vsub.s32 0, %v568
  %v570 = vrot.slane %v39, %v569
  %v571 = vadd.f32 %v529, %v570
  %v572 = vadd.f32 %v534, %v570
  %v573 = vadd.f32 %v539, %v570
  %v574 = vadd.f32 %v544, %v570
  %v575 = vadd.f32 %v549, %v570
  %v576 = vadd.f32 %v554, %v570
  %v577 = vadd.f32 %v559, %v570
  %v578 = vadd.f32 %v564, %v570
  %v579 = vld [vmem:[%s1] sm:$0xff]
  %v580 = vld [vmem:[%s1 + $0x8] sm:$0xff]
  %v581 = vld [vmem:[%s1 + $0x10] sm:$0xff]
  %v582 = vld [vmem:[%s1 + $0x18] sm:$0xff]
  %v583 = vld [vmem:[%s1 + $0x20] sm:$0xff]
  %v584 = vld [vmem:[%s1 + $0x28] sm:$0xff]
  %v585 = vld [vmem:[%s1 + $0x30] sm:$0xff]
  %v586 = vld [vmem:[%s1 + $0x38] sm:$0xff]
  %v587 = vunpack.c.l.bf16 %v579
  %v588 = vunpack.c.h.bf16 %v579
  %v589 = vunpack.c.l.bf16 %v580
  %v590 = vunpack.c.h.bf16 %v580
  %v591 = vunpack.c.l.bf16 %v581
  %v592 = vunpack.c.h.bf16 %v581
  %v593 = vunpack.c.l.bf16 %v582
  %v594 = vunpack.c.h.bf16 %v582
  %v595 = vunpack.c.l.bf16 %v583
  %v596 = vunpack.c.h.bf16 %v583
  %v597 = vunpack.c.l.bf16 %v584
  %v598 = vunpack.c.h.bf16 %v584
  %v599 = vunpack.c.l.bf16 %v585
  %v600 = vunpack.c.h.bf16 %v585
  %v601 = vunpack.c.l.bf16 %v586
  %v602 = vunpack.c.h.bf16 %v586
  %vm619 = vcmask 1040384
  %v620 = vrot.slane %v587, 7
  %v621 = vrot.slane %v588, 7
  %v622 = vrot.slane %v589, 7
  %v623 = vsel %vm619, %v620, %v622
  %v624 = vrot.slane %v590, 7
  %v625 = vsel %vm619, %v621, %v624
  %v626 = vrot.slane %v591, 7
  %v627 = vsel %vm619, %v622, %v626
  %v628 = vrot.slane %v592, 7
  %v629 = vsel %vm619, %v624, %v628
  %v630 = vrot.slane %v593, 7
  %v631 = vsel %vm619, %v626, %v630
  %v632 = vrot.slane %v594, 7
  %v633 = vsel %vm619, %v628, %v632
  %v634 = vrot.slane %v595, 7
  %v635 = vsel %vm619, %v630, %v634
  %v636 = vrot.slane %v596, 7
  %v637 = vsel %vm619, %v632, %v636
  %v638 = vrot.slane %v597, 7
  %v639 = vsel %vm619, %v634, %v638
  %v640 = vrot.slane %v598, 7
  %v641 = vsel %vm619, %v636, %v640
  %v642 = vrot.slane %v599, 7
  %v643 = vsel %vm619, %v638, %v642
  %v644 = vrot.slane %v600, 7
  %v645 = vsel %vm619, %v640, %v644
  %v646 = vrot.slane %v601, 7
  %v647 = vsel %vm619, %v642, %v646
  %v648 = vrot.slane %v602, 7
  %v649 = vsel %vm619, %v644, %v648
  %v666 = vsel %vm619, 0.0, %v620
  %v667 = vsel %vm619, 0.0, %v621
  %669 = vset.pattern.permute.xlu0 0
  %670 = vperm.xlu0 %669, %v40
  %v671 = vpop.permute.xlu0 %670
  %674 = vset.pattern.permute.xlu0 0
  %675 = vperm.xlu0 %674, %v41
  %v676 = vpop.permute.xlu0 %675
  %679 = vset.pattern.permute.xlu0 0
  %680 = vperm.xlu0 %679, %v42
  %v681 = vpop.permute.xlu0 %680
  %684 = vset.pattern.permute.xlu0 0
  %685 = vperm.xlu0 %684, %v43
  %v686 = vpop.permute.xlu0 %685
  %689 = vset.pattern.permute.xlu0 0
  %690 = vperm.xlu0 %689, %v44
  %v691 = vpop.permute.xlu0 %690
  %694 = vset.pattern.permute.xlu0 0
  %695 = vperm.xlu0 %694, %v45
  %v696 = vpop.permute.xlu0 %695
  %699 = vset.pattern.permute.xlu0 0
  %700 = vperm.xlu0 %699, %v46
  %v701 = vpop.permute.xlu0 %700
  %704 = vset.pattern.permute.xlu0 0
  %705 = vperm.xlu0 %704, %v47
  %v706 = vpop.permute.xlu0 %705
  %v708 = vmul.f32 %v666, %v671
  %v709 = vmul.f32 %v667, %v671
  %v710 = vmul.f32 %v623, %v676
  %v711 = vmul.f32 %v625, %v676
  %v712 = vmul.f32 %v627, %v681
  %v713 = vmul.f32 %v629, %v681
  %v714 = vmul.f32 %v631, %v686
  %v715 = vmul.f32 %v633, %v686
  %v716 = vmul.f32 %v635, %v691
  %v717 = vmul.f32 %v637, %v691
  %v718 = vmul.f32 %v639, %v696
  %v719 = vmul.f32 %v641, %v696
  %v720 = vmul.f32 %v643, %v701
  %v721 = vmul.f32 %v645, %v701
  %v722 = vmul.f32 %v647, %v706
  %v723 = vmul.f32 %v649, %v706
  %vm724 = vcmask 1046528
  %v725 = vrot.slane %v587, 1
  %v726 = vrot.slane %v589, 1
  %v727 = vsel %vm724, %v725, %v726
  %v728 = vrot.slane %v588, 1
  %v729 = vrot.slane %v590, 1
  %v730 = vsel %vm724, %v728, %v729
  %v731 = vrot.slane %v591, 1
  %v732 = vsel %vm724, %v726, %v731
  %v733 = vrot.slane %v592, 1
  %v734 = vsel %vm724, %v729, %v733
  %v735 = vrot.slane %v593, 1
  %v736 = vsel %vm724, %v731, %v735
  %v737 = vrot.slane %v594, 1
  %v738 = vsel %vm724, %v733, %v737
  %v739 = vrot.slane %v595, 1
  %v740 = vsel %vm724, %v735, %v739
  %v741 = vrot.slane %v596, 1
  %v742 = vsel %vm724, %v737, %v741
  %v743 = vrot.slane %v597, 1
  %v744 = vsel %vm724, %v739, %v743
  %v745 = vrot.slane %v598, 1
  %v746 = vsel %vm724, %v741, %v745
  %v747 = vrot.slane %v599, 1
  %v748 = vsel %vm724, %v743, %v747
  %v749 = vrot.slane %v600, 1
  %v750 = vsel %vm724, %v745, %v749
  %v751 = vrot.slane %v601, 1
  %v752 = vsel %vm724, %v747, %v751
  %v753 = vrot.slane %v602, 1
  %v754 = vsel %vm724, %v749, %v753
  %v771 = vsel %vm724, %v751, 0.0
  %v772 = vsel %vm724, %v753, 0.0
  %773 = vset.pattern.permute.xlu0 1
  %774 = vperm.xlu0 %773, %v40
  %v775 = vpop.permute.xlu0 %774
  %777 = vset.pattern.permute.xlu0 1
  %778 = vperm.xlu0 %777, %v41
  %v779 = vpop.permute.xlu0 %778
  %781 = vset.pattern.permute.xlu0 1
  %782 = vperm.xlu0 %781, %v42
  %v783 = vpop.permute.xlu0 %782
  %785 = vset.pattern.permute.xlu0 1
  %786 = vperm.xlu0 %785, %v43
  %v787 = vpop.permute.xlu0 %786
  %789 = vset.pattern.permute.xlu0 1
  %790 = vperm.xlu0 %789, %v44
  %v791 = vpop.permute.xlu0 %790
  %793 = vset.pattern.permute.xlu0 1
  %794 = vperm.xlu0 %793, %v45
  %v795 = vpop.permute.xlu0 %794
  %797 = vset.pattern.permute.xlu0 1
  %798 = vperm.xlu0 %797, %v46
  %v799 = vpop.permute.xlu0 %798
  %801 = vset.pattern.permute.xlu0 1
  %802 = vperm.xlu0 %801, %v47
  %v803 = vpop.permute.xlu0 %802
  %v805 = vmul.f32 %v727, %v775
  %v806 = vmul.f32 %v730, %v775
  %v807 = vmul.f32 %v732, %v779
  %v808 = vmul.f32 %v734, %v779
  %v809 = vmul.f32 %v736, %v783
  %v810 = vmul.f32 %v738, %v783
  %v811 = vmul.f32 %v740, %v787
  %v812 = vmul.f32 %v742, %v787
  %v813 = vmul.f32 %v744, %v791
  %v814 = vmul.f32 %v746, %v791
  %v815 = vmul.f32 %v748, %v795
  %v816 = vmul.f32 %v750, %v795
  %v817 = vmul.f32 %v752, %v799
  %v818 = vmul.f32 %v754, %v799
  %v819 = vmul.f32 %v771, %v803
  %v820 = vmul.f32 %v772, %v803
  %v821 = vpack.c.bf16 %v710, %v708
  %v822 = vpack.c.bf16 %v711, %v709
  %v823 = vpack.c.bf16 %v714, %v712
  %v824 = vpack.c.bf16 %v715, %v713
  %v825 = vpack.c.bf16 %v718, %v716
  %v826 = vpack.c.bf16 %v719, %v717
  %v827 = vpack.c.bf16 %v722, %v720
  %v828 = vpack.c.bf16 %v723, %v721
  %v829 = vld [vmem:[%s4] sm:$0xf]
  %v830 = vld [vmem:[%s4 + $0x4] sm:$0xf]
  %v831 = vld [vmem:[%s4 + $0x8] sm:$0xf]
  %v832 = vld [vmem:[%s4 + $0xc] sm:$0xf]
  %v833 = vld [vmem:[%s4 + $0x10] sm:$0xf]
  %v834 = vld [vmem:[%s4 + $0x14] sm:$0xf]
  %v835 = vld [vmem:[%s4 + $0x18] sm:$0xf]
  %v836 = vld [vmem:[%s4 + $0x1c] sm:$0xf]
  %v837 = vld [vmem:[%s4 + $0x20] sm:$0xf]
  %v838 = vld [vmem:[%s4 + $0x24] sm:$0xf]
  %v839 = vld [vmem:[%s4 + $0x28] sm:$0xf]
  %v840 = vld [vmem:[%s4 + $0x2c] sm:$0xf]
  %v841 = vld [vmem:[%s4 + $0x30] sm:$0xf]
  %v842 = vld [vmem:[%s4 + $0x34] sm:$0xf]
  %v843 = vld [vmem:[%s4 + $0x38] sm:$0xf]
  %v844 = vld [vmem:[%s4 + $0x3c] sm:$0xf]
  %v845 = vld [vmem:[%s4 + $0x40] sm:$0xf]
  %v846 = vld [vmem:[%s4 + $0x44] sm:$0xf]
  %v847 = vld [vmem:[%s4 + $0x48] sm:$0xf]
  %v848 = vld [vmem:[%s4 + $0x4c] sm:$0xf]
  %v849 = vld [vmem:[%s4 + $0x50] sm:$0xf]
  %v850 = vld [vmem:[%s4 + $0x54] sm:$0xf]
  %v851 = vld [vmem:[%s4 + $0x58] sm:$0xf]
  %v852 = vld [vmem:[%s4 + $0x5c] sm:$0xf]
  %v853 = vld [vmem:[%s4 + $0x60] sm:$0xf]
  %v854 = vld [vmem:[%s4 + $0x64] sm:$0xf]
  %v855 = vld [vmem:[%s4 + $0x68] sm:$0xf]
  %v856 = vld [vmem:[%s4 + $0x6c] sm:$0xf]
  %v857 = vld [vmem:[%s4 + $0x70] sm:$0xf]
  %v858 = vld [vmem:[%s4 + $0x74] sm:$0xf]
  %v859 = vld [vmem:[%s4 + $0x78] sm:$0xf]
  %v860 = vld [vmem:[%s4 + $0x7c] sm:$0xf]
  %s861 = scalar_lea.vmem %s4, 128
  %v862 = vld [vmem:[%s861] sm:$0xf]
  %v863 = vld [vmem:[%s861 + $0x4] sm:$0xf]
  %v864 = vld [vmem:[%s861 + $0x8] sm:$0xf]
  %v865 = vld [vmem:[%s861 + $0xc] sm:$0xf]
  %v866 = vld [vmem:[%s861 + $0x10] sm:$0xf]
  %v867 = vld [vmem:[%s861 + $0x14] sm:$0xf]
  %v868 = vld [vmem:[%s861 + $0x18] sm:$0xf]
  %v869 = vld [vmem:[%s861 + $0x1c] sm:$0xf]
  %v870 = vld [vmem:[%s861 + $0x20] sm:$0xf]
  %v871 = vld [vmem:[%s861 + $0x24] sm:$0xf]
  %v872 = vld [vmem:[%s861 + $0x28] sm:$0xf]
  %v873 = vld [vmem:[%s861 + $0x2c] sm:$0xf]
  %v874 = vld [vmem:[%s861 + $0x30] sm:$0xf]
  %v875 = vld [vmem:[%s861 + $0x34] sm:$0xf]
  %v876 = vld [vmem:[%s861 + $0x38] sm:$0xf]
  %v877 = vld [vmem:[%s861 + $0x3c] sm:$0xf]
  %v878 = vld [vmem:[%s861 + $0x40] sm:$0xf]
  %v879 = vld [vmem:[%s861 + $0x44] sm:$0xf]
  %v880 = vld [vmem:[%s861 + $0x48] sm:$0xf]
  %v881 = vld [vmem:[%s861 + $0x4c] sm:$0xf]
  %v882 = vld [vmem:[%s861 + $0x50] sm:$0xf]
  %v883 = vld [vmem:[%s861 + $0x54] sm:$0xf]
  %v884 = vld [vmem:[%s861 + $0x58] sm:$0xf]
  %v885 = vld [vmem:[%s861 + $0x5c] sm:$0xf]
  %v886 = vld [vmem:[%s861 + $0x60] sm:$0xf]
  %v887 = vld [vmem:[%s861 + $0x64] sm:$0xf]
  %v888 = vld [vmem:[%s861 + $0x68] sm:$0xf]
  %v889 = vld [vmem:[%s861 + $0x6c] sm:$0xf]
  %v890 = vld [vmem:[%s861 + $0x70] sm:$0xf]
  %v891 = vld [vmem:[%s861 + $0x74] sm:$0xf]
  %v892 = vld [vmem:[%s861 + $0x78] sm:$0xf]
  %v893 = vld [vmem:[%s861 + $0x7c] sm:$0xf]
  %v902 = vunpack.c.l.b16 %v579
  %v903 = vunpack.c.h.b16 %v579
  %v904 = vunpack.c.l.b16 %v580
  %v905 = vunpack.c.h.b16 %v580
  %v906 = vunpack.c.l.b16 %v581
  %v907 = vunpack.c.h.b16 %v581
  %v908 = vunpack.c.l.b16 %v582
  %v909 = vunpack.c.h.b16 %v582
  %v910 = vunpack.c.l.b16 %v583
  %v911 = vunpack.c.h.b16 %v583
  %v912 = vunpack.c.l.b16 %v584
  %v913 = vunpack.c.h.b16 %v584
  %v914 = vunpack.c.l.b16 %v585
  %v915 = vunpack.c.h.b16 %v585
  %v916 = vunpack.c.l.b16 %v586
  %v917 = vunpack.c.h.b16 %v586
  %v918 = vpack.c.b16 %v904, %v902
  %v919 = vpack.c.b16 %v905, %v903
  %v920 = vpack.c.b16 %v908, %v906
  %v921 = vpack.c.b16 %v909, %v907
  %v922 = vpack.c.b16 %v912, %v910
  %v923 = vpack.c.b16 %v913, %v911
  %v924 = vpack.c.b16 %v916, %v914
  %v925 = vpack.c.b16 %v917, %v915
  %v966 = vunpack.c.l.b16 %v862
  %v967 = vunpack.c.l.b16 %v863
  %v968 = vunpack.c.l.b16 %v864
  %v969 = vunpack.c.l.b16 %v865
  %v970 = vunpack.c.l.b16 %v866
  %v971 = vunpack.c.l.b16 %v867
  %v972 = vunpack.c.l.b16 %v868
  %v973 = vunpack.c.l.b16 %v869
  %v974 = vunpack.c.l.b16 %v870
  %v975 = vunpack.c.l.b16 %v871
  %v976 = vunpack.c.l.b16 %v872
  %v977 = vunpack.c.l.b16 %v873
  %v978 = vunpack.c.l.b16 %v874
  %v979 = vunpack.c.l.b16 %v875
  %v980 = vunpack.c.l.b16 %v876
  %v981 = vunpack.c.l.b16 %v877
  %v982 = vunpack.c.l.b16 %v878
  %v983 = vunpack.c.l.b16 %v879
  %v984 = vunpack.c.l.b16 %v880
  %v985 = vunpack.c.l.b16 %v881
  %v986 = vunpack.c.l.b16 %v882
  %v987 = vunpack.c.l.b16 %v883
  %v988 = vunpack.c.l.b16 %v884
  %v989 = vunpack.c.l.b16 %v885
  %v990 = vunpack.c.l.b16 %v886
  %v991 = vunpack.c.l.b16 %v887
  %v992 = vunpack.c.l.b16 %v888
  %v993 = vunpack.c.l.b16 %v889
  %v994 = vunpack.c.l.b16 %v890
  %v995 = vunpack.c.l.b16 %v891
  %v996 = vunpack.c.l.b16 %v892
  %v997 = vunpack.c.l.b16 %v893
  %v998 = vpack.c.b16 %v967, %v966
  %v999 = vpack.c.b16 %v969, %v968
  %v1000 = vpack.c.b16 %v971, %v970
  %v1001 = vpack.c.b16 %v973, %v972
  %v1002 = vpack.c.b16 %v975, %v974
  %v1003 = vpack.c.b16 %v977, %v976
  %v1004 = vpack.c.b16 %v979, %v978
  %v1005 = vpack.c.b16 %v981, %v980
  %v1006 = vpack.c.b16 %v983, %v982
  %v1007 = vpack.c.b16 %v985, %v984
  %v1008 = vpack.c.b16 %v987, %v986
  %v1009 = vpack.c.b16 %v989, %v988
  %v1010 = vpack.c.b16 %v991, %v990
  %v1011 = vpack.c.b16 %v993, %v992
  %v1012 = vpack.c.b16 %v995, %v994
  %v1013 = vpack.c.b16 %v997, %v996
  %1030 = vmatprep.subr.bf16.mxu0 0
  %1031 = vmatpush1.bf16.msra.mxu0 %v998
  %1032 = vmatprep.subr.bf16.mxu0 0
  %1033 = vmatpush1.bf16.msra.mxu0 %v999
  %1034 = vmatprep.subr.bf16.mxu0 0
  %1035 = vmatpush1.bf16.msra.mxu0 %v1000
  %1036 = vmatprep.subr.bf16.mxu0 0
  %1037 = vmatpush1.bf16.msra.mxu0 %v1001
  %1038 = vmatprep.subr.bf16.mxu0 0
  %1039 = vmatpush1.bf16.msra.mxu0 %v1002
  %1040 = vmatprep.subr.bf16.mxu0 0
  %1041 = vmatpush1.bf16.msra.mxu0 %v1003
  %1042 = vmatprep.subr.bf16.mxu0 0
  %1043 = vmatpush1.bf16.msra.mxu0 %v1004
  %1044 = vmatprep.subr.bf16.mxu0 0
  %1045 = vmatpush1.bf16.msra.mxu0 %v1005
  %1046 = vmatprep.subr.bf16.mxu0 0
  %1047 = vmatpush1.bf16.msra.mxu0 %v1006
  %1048 = vmatprep.subr.bf16.mxu0 0
  %1049 = vmatpush1.bf16.msra.mxu0 %v1007
  %1050 = vmatprep.subr.bf16.mxu0 0
  %1051 = vmatpush1.bf16.msra.mxu0 %v1008
  %1052 = vmatprep.subr.bf16.mxu0 0
  %1053 = vmatpush1.bf16.msra.mxu0 %v1009
  %1054 = vmatprep.subr.bf16.mxu0 0
  %1055 = vmatpush1.bf16.msra.mxu0 %v1010
  %1056 = vmatprep.subr.bf16.mxu0 0
  %1057 = vmatpush1.bf16.msra.mxu0 %v1011
  %1058 = vmatprep.subr.bf16.mxu0 0
  %1059 = vmatpush1.bf16.msra.mxu0 %v1012
  %1060 = vmatprep.subr.bf16.mxu0 0
  %1061 = vmatpush1.bf16.msra.mxu0 %v1013
  %1062 = vmatprep.mubr.bf16.mxu0 %v919
  %1063 = vmatmul.mubr.bf16.gmra.mrb[0].mxu0 %v918
  %v1064 = vpop.f32.mrb[0].mxu0
  %v1065 = vadd.f32 0.0, %v1064
  %v1066 = vpop.f32.mrb[0].mxu0
  %v1067 = vpop.f32.mrb[0].mxu0
  %v1068 = vadd.f32 0.0, %v1067
  %v1069 = vpop.f32.mrb[0].mxu0
  %1070 = vmatprep.mubr.bf16.mxu0 %v921
  %1071 = vmatmul.mubr.bf16.gmra.mrb[0].mxu0 %v920
  %v1072 = vpop.f32.mrb[0].mxu0
  %v1073 = vadd.f32 0.0, %v1072
  %v1074 = vpop.f32.mrb[0].mxu0
  %v1075 = vpop.f32.mrb[0].mxu0
  %v1076 = vadd.f32 0.0, %v1075
  %v1077 = vpop.f32.mrb[0].mxu0
  %1078 = vmatprep.mubr.bf16.mxu0 %v923
  %1079 = vmatmul.mubr.bf16.gmra.mrb[0].mxu0 %v922
  %v1080 = vpop.f32.mrb[0].mxu0
  %v1081 = vadd.f32 0.0, %v1080
  %v1082 = vpop.f32.mrb[0].mxu0
  %v1083 = vpop.f32.mrb[0].mxu0
  %v1084 = vadd.f32 0.0, %v1083
  %v1085 = vpop.f32.mrb[0].mxu0
  %1086 = vmatprep.mubr.bf16.mxu0 %v925
  %1087 = vmatmul.mubr.bf16.gmra.mrb[0].mxu0 %v924
  %v1088 = vpop.f32.mrb[0].mxu0
  %v1089 = vadd.f32 0.0, %v1088
  %v1090 = vpop.f32.mrb[0].mxu0
  %v1091 = vpop.f32.mrb[0].mxu0
  %v1092 = vadd.f32 0.0, %v1091
  %v1093 = vpop.f32.mrb[0].mxu0
  %1094 = vdwg.mxu0
  %v1127 = vunpack.c.l.b16 %v829
  %v1128 = vunpack.c.l.b16 %v830
  %v1129 = vunpack.c.l.b16 %v831
  %v1130 = vunpack.c.l.b16 %v832
  %v1131 = vunpack.c.l.b16 %v833
  %v1132 = vunpack.c.l.b16 %v834
  %v1133 = vunpack.c.l.b16 %v835
  %v1134 = vunpack.c.l.b16 %v836
  %v1135 = vunpack.c.l.b16 %v837
  %v1136 = vunpack.c.l.b16 %v838
  %v1137 = vunpack.c.l.b16 %v839
  %v1138 = vunpack.c.l.b16 %v840
  %v1139 = vunpack.c.l.b16 %v841
  %v1140 = vunpack.c.l.b16 %v842
  %v1141 = vunpack.c.l.b16 %v843
  %v1142 = vunpack.c.l.b16 %v844
  %v1143 = vunpack.c.l.b16 %v845
  %v1144 = vunpack.c.l.b16 %v846
  %v1145 = vunpack.c.l.b16 %v847
  %v1146 = vunpack.c.l.b16 %v848
  %v1147 = vunpack.c.l.b16 %v849
  %v1148 = vunpack.c.l.b16 %v850
  %v1149 = vunpack.c.l.b16 %v851
  %v1150 = vunpack.c.l.b16 %v852
  %v1151 = vunpack.c.l.b16 %v853
  %v1152 = vunpack.c.l.b16 %v854
  %v1153 = vunpack.c.l.b16 %v855
  %v1154 = vunpack.c.l.b16 %v856
  %v1155 = vunpack.c.l.b16 %v857
  %v1156 = vunpack.c.l.b16 %v858
  %v1157 = vunpack.c.l.b16 %v859
  %v1158 = vunpack.c.l.b16 %v860
  %v1159 = vpack.c.b16 %v1128, %v1127
  %v1160 = vpack.c.b16 %v1130, %v1129
  %v1161 = vpack.c.b16 %v1132, %v1131
  %v1162 = vpack.c.b16 %v1134, %v1133
  %v1163 = vpack.c.b16 %v1136, %v1135
  %v1164 = vpack.c.b16 %v1138, %v1137
  %v1165 = vpack.c.b16 %v1140, %v1139
  %v1166 = vpack.c.b16 %v1142, %v1141
  %v1167 = vpack.c.b16 %v1144, %v1143
  %v1168 = vpack.c.b16 %v1146, %v1145
  %v1169 = vpack.c.b16 %v1148, %v1147
  %v1170 = vpack.c.b16 %v1150, %v1149
  %v1171 = vpack.c.b16 %v1152, %v1151
  %v1172 = vpack.c.b16 %v1154, %v1153
  %v1173 = vpack.c.b16 %v1156, %v1155
  %v1174 = vpack.c.b16 %v1158, %v1157
  %1191 = vmatprep.subr.bf16.mxu0 0
  %1192 = vmatpush1.bf16.msra.mxu0 %v1159
  %1193 = vmatprep.subr.bf16.mxu0 0
  %1194 = vmatpush1.bf16.msra.mxu0 %v1160
  %1195 = vmatprep.subr.bf16.mxu0 0
  %1196 = vmatpush1.bf16.msra.mxu0 %v1161
  %1197 = vmatprep.subr.bf16.mxu0 0
  %1198 = vmatpush1.bf16.msra.mxu0 %v1162
  %1199 = vmatprep.subr.bf16.mxu0 0
  %1200 = vmatpush1.bf16.msra.mxu0 %v1163
  %1201 = vmatprep.subr.bf16.mxu0 0
  %1202 = vmatpush1.bf16.msra.mxu0 %v1164
  %1203 = vmatprep.subr.bf16.mxu0 0
  %1204 = vmatpush1.bf16.msra.mxu0 %v1165
  %1205 = vmatprep.subr.bf16.mxu0 0
  %1206 = vmatpush1.bf16.msra.mxu0 %v1166
  %1207 = vmatprep.subr.bf16.mxu0 0
  %1208 = vmatpush1.bf16.msra.mxu0 %v1167
  %1209 = vmatprep.subr.bf16.mxu0 0
  %1210 = vmatpush1.bf16.msra.mxu0 %v1168
  %1211 = vmatprep.subr.bf16.mxu0 0
  %1212 = vmatpush1.bf16.msra.mxu0 %v1169
  %1213 = vmatprep.subr.bf16.mxu0 0
  %1214 = vmatpush1.bf16.msra.mxu0 %v1170
  %1215 = vmatprep.subr.bf16.mxu0 0
  %1216 = vmatpush1.bf16.msra.mxu0 %v1171
  %1217 = vmatprep.subr.bf16.mxu0 0
  %1218 = vmatpush1.bf16.msra.mxu0 %v1172
  %1219 = vmatprep.subr.bf16.mxu0 0
  %1220 = vmatpush1.bf16.msra.mxu0 %v1173
  %1221 = vmatprep.subr.bf16.mxu0 0
  %1222 = vmatpush1.bf16.msra.mxu0 %v1174
  %1223 = vmatprep.mubr.bf16.mxu0 %v822
  %1224 = vmatmul.mubr.bf16.gmra.mrb[0].mxu0 %v821
  %v1225 = vpop.f32.mrb[0].mxu0
  %v1226 = vadd.f32 %v1065, %v1225
  %v1227 = vpop.f32.mrb[0].mxu0
  %v1228 = vpop.f32.mrb[0].mxu0
  %v1229 = vadd.f32 %v1068, %v1228
  %v1230 = vpop.f32.mrb[0].mxu0
  %1231 = vmatprep.mubr.bf16.mxu0 %v824
  %1232 = vmatmul.mubr.bf16.gmra.mrb[0].mxu0 %v823
  %v1233 = vpop.f32.mrb[0].mxu0
  %v1234 = vadd.f32 %v1073, %v1233
  %v1235 = vpop.f32.mrb[0].mxu0
  %v1236 = vpop.f32.mrb[0].mxu0
  %v1237 = vadd.f32 %v1076, %v1236
  %v1238 = vpop.f32.mrb[0].mxu0
  %1239 = vmatprep.mubr.bf16.mxu0 %v826
  %1240 = vmatmul.mubr.bf16.gmra.mrb[0].mxu0 %v825
  %v1241 = vpop.f32.mrb[0].mxu0
  %v1242 = vadd.f32 %v1081, %v1241
  %v1243 = vpop.f32.mrb[0].mxu0
  %v1244 = vpop.f32.mrb[0].mxu0
  %v1245 = vadd.f32 %v1084, %v1244
  %v1246 = vpop.f32.mrb[0].mxu0
  %1247 = vmatprep.mubr.bf16.mxu0 %v828
  %1248 = vmatmul.mubr.bf16.gmra.mrb[0].mxu0 %v827
  %v1249 = vpop.f32.mrb[0].mxu0
  %v1250 = vadd.f32 %v1089, %v1249
  %v1251 = vpop.f32.mrb[0].mxu0
  %v1252 = vpop.f32.mrb[0].mxu0
  %v1253 = vadd.f32 %v1092, %v1252
  %v1254 = vpop.f32.mrb[0].mxu0
  %1255 = vdwg.mxu0
  %v1256 = vpack.c.bf16 %v807, %v805
  %v1257 = vpack.c.bf16 %v808, %v806
  %v1258 = vpack.c.bf16 %v811, %v809
  %v1259 = vpack.c.bf16 %v812, %v810
  %v1260 = vpack.c.bf16 %v815, %v813
  %v1261 = vpack.c.bf16 %v816, %v814
  %v1262 = vpack.c.bf16 %v819, %v817
  %v1263 = vpack.c.bf16 %v820, %v818
  %s1264 = scalar_lea.vmem %s4, 256
  %v1265 = vld [vmem:[%s1264] sm:$0xf]
  %v1266 = vld [vmem:[%s1264 + $0x4] sm:$0xf]
  %v1267 = vld [vmem:[%s1264 + $0x8] sm:$0xf]
  %v1268 = vld [vmem:[%s1264 + $0xc] sm:$0xf]
  %v1269 = vld [vmem:[%s1264 + $0x10] sm:$0xf]
  %v1270 = vld [vmem:[%s1264 + $0x14] sm:$0xf]
  %v1271 = vld [vmem:[%s1264 + $0x18] sm:$0xf]
  %v1272 = vld [vmem:[%s1264 + $0x1c] sm:$0xf]
  %v1273 = vld [vmem:[%s1264 + $0x20] sm:$0xf]
  %v1274 = vld [vmem:[%s1264 + $0x24] sm:$0xf]
  %v1275 = vld [vmem:[%s1264 + $0x28] sm:$0xf]
  %v1276 = vld [vmem:[%s1264 + $0x2c] sm:$0xf]
  %v1277 = vld [vmem:[%s1264 + $0x30] sm:$0xf]
  %v1278 = vld [vmem:[%s1264 + $0x34] sm:$0xf]
  %v1279 = vld [vmem:[%s1264 + $0x38] sm:$0xf]
  %v1280 = vld [vmem:[%s1264 + $0x3c] sm:$0xf]
  %v1281 = vld [vmem:[%s1264 + $0x40] sm:$0xf]
  %v1282 = vld [vmem:[%s1264 + $0x44] sm:$0xf]
  %v1283 = vld [vmem:[%s1264 + $0x48] sm:$0xf]
  %v1284 = vld [vmem:[%s1264 + $0x4c] sm:$0xf]
  %v1285 = vld [vmem:[%s1264 + $0x50] sm:$0xf]
  %v1286 = vld [vmem:[%s1264 + $0x54] sm:$0xf]
  %v1287 = vld [vmem:[%s1264 + $0x58] sm:$0xf]
  %v1288 = vld [vmem:[%s1264 + $0x5c] sm:$0xf]
  %v1289 = vld [vmem:[%s1264 + $0x60] sm:$0xf]
  %v1290 = vld [vmem:[%s1264 + $0x64] sm:$0xf]
  %v1291 = vld [vmem:[%s1264 + $0x68] sm:$0xf]
  %v1292 = vld [vmem:[%s1264 + $0x6c] sm:$0xf]
  %v1293 = vld [vmem:[%s1264 + $0x70] sm:$0xf]
  %v1294 = vld [vmem:[%s1264 + $0x74] sm:$0xf]
  %v1295 = vld [vmem:[%s1264 + $0x78] sm:$0xf]
  %v1296 = vld [vmem:[%s1264 + $0x7c] sm:$0xf]
  %v1329 = vunpack.c.l.b16 %v1265
  %v1330 = vunpack.c.l.b16 %v1266
  %v1331 = vunpack.c.l.b16 %v1267
  %v1332 = vunpack.c.l.b16 %v1268
  %v1333 = vunpack.c.l.b16 %v1269
  %v1334 = vunpack.c.l.b16 %v1270
  %v1335 = vunpack.c.l.b16 %v1271
  %v1336 = vunpack.c.l.b16 %v1272
  %v1337 = vunpack.c.l.b16 %v1273
  %v1338 = vunpack.c.l.b16 %v1274
  %v1339 = vunpack.c.l.b16 %v1275
  %v1340 = vunpack.c.l.b16 %v1276
  %v1341 = vunpack.c.l.b16 %v1277
  %v1342 = vunpack.c.l.b16 %v1278
  %v1343 = vunpack.c.l.b16 %v1279
  %v1344 = vunpack.c.l.b16 %v1280
  %v1345 = vunpack.c.l.b16 %v1281
  %v1346 = vunpack.c.l.b16 %v1282
  %v1347 = vunpack.c.l.b16 %v1283
  %v1348 = vunpack.c.l.b16 %v1284
  %v1349 = vunpack.c.l.b16 %v1285
  %v1350 = vunpack.c.l.b16 %v1286
  %v1351 = vunpack.c.l.b16 %v1287
  %v1352 = vunpack.c.l.b16 %v1288
  %v1353 = vunpack.c.l.b16 %v1289
  %v1354 = vunpack.c.l.b16 %v1290
  %v1355 = vunpack.c.l.b16 %v1291
  %v1356 = vunpack.c.l.b16 %v1292
  %v1357 = vunpack.c.l.b16 %v1293
  %v1358 = vunpack.c.l.b16 %v1294
  %v1359 = vunpack.c.l.b16 %v1295
  %v1360 = vunpack.c.l.b16 %v1296
  %v1361 = vpack.c.b16 %v1330, %v1329
  %v1362 = vpack.c.b16 %v1332, %v1331
  %v1363 = vpack.c.b16 %v1334, %v1333
  %v1364 = vpack.c.b16 %v1336, %v1335
  %v1365 = vpack.c.b16 %v1338, %v1337
  %v1366 = vpack.c.b16 %v1340, %v1339
  %v1367 = vpack.c.b16 %v1342, %v1341
  %v1368 = vpack.c.b16 %v1344, %v1343
  %v1369 = vpack.c.b16 %v1346, %v1345
  %v1370 = vpack.c.b16 %v1348, %v1347
  %v1371 = vpack.c.b16 %v1350, %v1349
  %v1372 = vpack.c.b16 %v1352, %v1351
  %v1373 = vpack.c.b16 %v1354, %v1353
  %v1374 = vpack.c.b16 %v1356, %v1355
  %v1375 = vpack.c.b16 %v1358, %v1357
  %v1376 = vpack.c.b16 %v1360, %v1359
  %1393 = vmatprep.subr.bf16.mxu0 0
  %1394 = vmatpush1.bf16.msra.mxu0 %v1361
  %1395 = vmatprep.subr.bf16.mxu0 0
  %1396 = vmatpush1.bf16.msra.mxu0 %v1362
  %1397 = vmatprep.subr.bf16.mxu0 0
  %1398 = vmatpush1.bf16.msra.mxu0 %v1363
  %1399 = vmatprep.subr.bf16.mxu0 0
  %1400 = vmatpush1.bf16.msra.mxu0 %v1364
  %1401 = vmatprep.subr.bf16.mxu0 0
  %1402 = vmatpush1.bf16.msra.mxu0 %v1365
  %1403 = vmatprep.subr.bf16.mxu0 0
  %1404 = vmatpush1.bf16.msra.mxu0 %v1366
  %1405 = vmatprep.subr.bf16.mxu0 0
  %1406 = vmatpush1.bf16.msra.mxu0 %v1367
  %1407 = vmatprep.subr.bf16.mxu0 0
  %1408 = vmatpush1.bf16.msra.mxu0 %v1368
  %1409 = vmatprep.subr.bf16.mxu0 0
  %1410 = vmatpush1.bf16.msra.mxu0 %v1369
  %1411 = vmatprep.subr.bf16.mxu0 0
  %1412 = vmatpush1.bf16.msra.mxu0 %v1370
  %1413 = vmatprep.subr.bf16.mxu0 0
  %1414 = vmatpush1.bf16.msra.mxu0 %v1371
  %1415 = vmatprep.subr.bf16.mxu0 0
  %1416 = vmatpush1.bf16.msra.mxu0 %v1372
  %1417 = vmatprep.subr.bf16.mxu0 0
  %1418 = vmatpush1.bf16.msra.mxu0 %v1373
  %1419 = vmatprep.subr.bf16.mxu0 0
  %1420 = vmatpush1.bf16.msra.mxu0 %v1374
  %1421 = vmatprep.subr.bf16.mxu0 0
  %1422 = vmatpush1.bf16.msra.mxu0 %v1375
  %1423 = vmatprep.subr.bf16.mxu0 0
  %1424 = vmatpush1.bf16.msra.mxu0 %v1376
  %1425 = vmatprep.mubr.bf16.mxu0 %v1257
  %1426 = vmatmul.mubr.bf16.gmra.mrb[0].mxu0 %v1256
  %v1427 = vpop.f32.mrb[0].mxu0
  %v1428 = vadd.f32 0.0, %v1427
  %v1429 = vpop.f32.mrb[0].mxu0
  %v1430 = vpop.f32.mrb[0].mxu0
  %v1431 = vadd.f32 0.0, %v1430
  %v1432 = vpop.f32.mrb[0].mxu0
  %1433 = vmatprep.mubr.bf16.mxu0 %v1259
  %1434 = vmatmul.mubr.bf16.gmra.mrb[0].mxu0 %v1258
  %v1435 = vpop.f32.mrb[0].mxu0
  %v1436 = vadd.f32 0.0, %v1435
  %v1437 = vpop.f32.mrb[0].mxu0
  %v1438 = vpop.f32.mrb[0].mxu0
  %v1439 = vadd.f32 0.0, %v1438
  %v1440 = vpop.f32.mrb[0].mxu0
  %1441 = vmatprep.mubr.bf16.mxu0 %v1261
  %1442 = vmatmul.mubr.bf16.gmra.mrb[0].mxu0 %v1260
  %v1443 = vpop.f32.mrb[0].mxu0
  %v1444 = vadd.f32 0.0, %v1443
  %v1445 = vpop.f32.mrb[0].mxu0
  %v1446 = vpop.f32.mrb[0].mxu0
  %v1447 = vadd.f32 0.0, %v1446
  %v1448 = vpop.f32.mrb[0].mxu0
  %1449 = vmatprep.mubr.bf16.mxu0 %v1263
  %1450 = vmatmul.mubr.bf16.gmra.mrb[0].mxu0 %v1262
  %v1451 = vpop.f32.mrb[0].mxu0
  %v1452 = vadd.f32 0.0, %v1451
  %v1453 = vpop.f32.mrb[0].mxu0
  %v1454 = vpop.f32.mrb[0].mxu0
  %v1455 = vadd.f32 0.0, %v1454
  %v1456 = vpop.f32.mrb[0].mxu0
  %1457 = vdwg.mxu0
  %v1458 = vadd.f32 %v1226, %v1428
  %v1459 = vadd.f32 %v1229, %v1431
  %v1460 = vadd.f32 %v1234, %v1436
  %v1461 = vadd.f32 %v1237, %v1439
  %v1462 = vadd.f32 %v1242, %v1444
  %v1463 = vadd.f32 %v1245, %v1447
  %v1464 = vadd.f32 %v1250, %v1452
  %v1465 = vadd.f32 %v1253, %v1455
  %v1466 = vlaneseq
  %v1467 = vshrl.u32 %v1466, 7
  %v1468 = vsub.s32 1, %v1467
  %v1469 = vrot.slane %v39, %v1468
  %v1470 = vadd.f32 %v1458, %v1469
  %v1471 = vadd.f32 %v1459, %v1469
  %v1472 = vadd.f32 %v1460, %v1469
  %v1473 = vadd.f32 %v1461, %v1469
  %v1474 = vadd.f32 %v1462, %v1469
  %v1475 = vadd.f32 %v1463, %v1469
  %v1476 = vadd.f32 %v1464, %v1469
  %v1477 = vadd.f32 %v1465, %v1469
  %v1486 = vrot.slane %v571, 7
  %v1487 = vrot.slane %v572, 7
  %v1488 = vsel %vm619, %v1486, %v1487
  %v1489 = vrot.slane %v573, 7
  %v1490 = vsel %vm619, %v1487, %v1489
  %v1491 = vrot.slane %v574, 7
  %v1492 = vsel %vm619, %v1489, %v1491
  %v1493 = vrot.slane %v575, 7
  %v1494 = vsel %vm619, %v1491, %v1493
  %v1495 = vrot.slane %v576, 7
  %v1496 = vsel %vm619, %v1493, %v1495
  %v1497 = vrot.slane %v577, 7
  %v1498 = vsel %vm619, %v1495, %v1497
  %v1499 = vrot.slane %v578, 7
  %v1500 = vsel %vm619, %v1497, %v1499
  %v1509 = vsel %vm619, 0.0, %v1486
  %v1510 = vmul.f32 %v1509, %v671
  %v1511 = vmul.f32 %v1488, %v676
  %v1512 = vmul.f32 %v1490, %v681
  %v1513 = vmul.f32 %v1492, %v686
  %v1514 = vmul.f32 %v1494, %v691
  %v1515 = vmul.f32 %v1496, %v696
  %v1516 = vmul.f32 %v1498, %v701
  %v1517 = vmul.f32 %v1500, %v706
  %v1518 = vrot.slane %v571, 1
  %v1519 = vrot.slane %v572, 1
  %v1520 = vsel %vm724, %v1518, %v1519
  %v1521 = vrot.slane %v573, 1
  %v1522 = vsel %vm724, %v1519, %v1521
  %v1523 = vrot.slane %v574, 1
  %v1524 = vsel %vm724, %v1521, %v1523
  %v1525 = vrot.slane %v575, 1
  %v1526 = vsel %vm724, %v1523, %v1525
  %v1527 = vrot.slane %v576, 1
  %v1528 = vsel %vm724, %v1525, %v1527
  %v1529 = vrot.slane %v577, 1
  %v1530 = vsel %vm724, %v1527, %v1529
  %v1531 = vrot.slane %v578, 1
  %v1532 = vsel %vm724, %v1529, %v1531
  %v1541 = vsel %vm724, %v1531, 0.0
  %v1542 = vmul.f32 %v1520, %v775
  %v1543 = vmul.f32 %v1522, %v779
  %v1544 = vmul.f32 %v1524, %v783
  %v1545 = vmul.f32 %v1526, %v787
  %v1546 = vmul.f32 %v1528, %v791
  %v1547 = vmul.f32 %v1530, %v795
  %v1548 = vmul.f32 %v1532, %v799
  %v1549 = vmul.f32 %v1541, %v803
  %v1550 = vpack.c.bf16 %v1511, %v1510
  %v1551 = vpack.c.bf16 %v1513, %v1512
  %v1552 = vpack.c.bf16 %v1515, %v1514
  %v1553 = vpack.c.bf16 %v1517, %v1516
  %v1554 = vld [vmem:[%s5] sm:$0xf]
  %v1555 = vld [vmem:[%s5 + $0x4] sm:$0xf]
  %v1556 = vld [vmem:[%s5 + $0x8] sm:$0xf]
  %v1557 = vld [vmem:[%s5 + $0xc] sm:$0xf]
  %v1558 = vld [vmem:[%s5 + $0x10] sm:$0xf]
  %v1559 = vld [vmem:[%s5 + $0x14] sm:$0xf]
  %v1560 = vld [vmem:[%s5 + $0x18] sm:$0xf]
  %v1561 = vld [vmem:[%s5 + $0x1c] sm:$0xf]
  %v1562 = vld [vmem:[%s5 + $0x20] sm:$0xf]
  %v1563 = vld [vmem:[%s5 + $0x24] sm:$0xf]
  %v1564 = vld [vmem:[%s5 + $0x28] sm:$0xf]
  %v1565 = vld [vmem:[%s5 + $0x2c] sm:$0xf]
  %v1566 = vld [vmem:[%s5 + $0x30] sm:$0xf]
  %v1567 = vld [vmem:[%s5 + $0x34] sm:$0xf]
  %v1568 = vld [vmem:[%s5 + $0x38] sm:$0xf]
  %v1569 = vld [vmem:[%s5 + $0x3c] sm:$0xf]
  %v1570 = vpack.c.bf16 %v572, %v571
  %v1571 = vpack.c.bf16 %v574, %v573
  %v1572 = vpack.c.bf16 %v576, %v575
  %v1573 = vpack.c.bf16 %v578, %v577
  %s1574 = scalar_lea.vmem %s5, 64
  %v1575 = vld [vmem:[%s1574] sm:$0xf]
  %v1576 = vld [vmem:[%s1574 + $0x4] sm:$0xf]
  %v1577 = vld [vmem:[%s1574 + $0x8] sm:$0xf]
  %v1578 = vld [vmem:[%s1574 + $0xc] sm:$0xf]
  %v1579 = vld [vmem:[%s1574 + $0x10] sm:$0xf]
  %v1580 = vld [vmem:[%s1574 + $0x14] sm:$0xf]
  %v1581 = vld [vmem:[%s1574 + $0x18] sm:$0xf]
  %v1582 = vld [vmem:[%s1574 + $0x1c] sm:$0xf]
  %v1583 = vld [vmem:[%s1574 + $0x20] sm:$0xf]
  %v1584 = vld [vmem:[%s1574 + $0x24] sm:$0xf]
  %v1585 = vld [vmem:[%s1574 + $0x28] sm:$0xf]
  %v1586 = vld [vmem:[%s1574 + $0x2c] sm:$0xf]
  %v1587 = vld [vmem:[%s1574 + $0x30] sm:$0xf]
  %v1588 = vld [vmem:[%s1574 + $0x34] sm:$0xf]
  %v1589 = vld [vmem:[%s1574 + $0x38] sm:$0xf]
  %v1590 = vld [vmem:[%s1574 + $0x3c] sm:$0xf]
  %v1607 = vunpack.c.l.b16 %v1575
  %v1608 = vunpack.c.l.b16 %v1576
  %v1609 = vunpack.c.l.b16 %v1577
  %v1610 = vunpack.c.l.b16 %v1578
  %v1611 = vunpack.c.l.b16 %v1579
  %v1612 = vunpack.c.l.b16 %v1580
  %v1613 = vunpack.c.l.b16 %v1581
  %v1614 = vunpack.c.l.b16 %v1582
  %v1615 = vunpack.c.l.b16 %v1583
  %v1616 = vunpack.c.l.b16 %v1584
  %v1617 = vunpack.c.l.b16 %v1585
  %v1618 = vunpack.c.l.b16 %v1586
  %v1619 = vunpack.c.l.b16 %v1587
  %v1620 = vunpack.c.l.b16 %v1588
  %v1621 = vunpack.c.l.b16 %v1589
  %v1622 = vunpack.c.l.b16 %v1590
  %v1623 = vpack.c.b16 %v1608, %v1607
  %v1624 = vpack.c.b16 %v1610, %v1609
  %v1625 = vpack.c.b16 %v1612, %v1611
  %v1626 = vpack.c.b16 %v1614, %v1613
  %v1627 = vpack.c.b16 %v1616, %v1615
  %v1628 = vpack.c.b16 %v1618, %v1617
  %v1629 = vpack.c.b16 %v1620, %v1619
  %v1630 = vpack.c.b16 %v1622, %v1621
  %1639 = vmatprep.subr.bf16.mxu0 0
  %1640 = vmatpush1.bf16.msra.mxu0 %v1623
  %1641 = vmatprep.subr.bf16.mxu0 0
  %1642 = vmatpush1.bf16.msra.mxu0 %v1624
  %1643 = vmatprep.subr.bf16.mxu0 0
  %1644 = vmatpush1.bf16.msra.mxu0 %v1625
  %1645 = vmatprep.subr.bf16.mxu0 0
  %1646 = vmatpush1.bf16.msra.mxu0 %v1626
  %1647 = vmatprep.subr.bf16.mxu0 0
  %1648 = vmatpush1.bf16.msra.mxu0 %v1627
  %1649 = vmatprep.subr.bf16.mxu0 0
  %1650 = vmatpush1.bf16.msra.mxu0 %v1628
  %1651 = vmatprep.subr.bf16.mxu0 0
  %1652 = vmatpush1.bf16.msra.mxu0 %v1629
  %1653 = vmatprep.subr.bf16.mxu0 0
  %1654 = vmatpush1.bf16.msra.mxu0 %v1630
  %1655 = vmatprep.subr.bf16.mxu0 0
  %1656 = vmatpush1.bf16.msra.mxu0 0
  %1657 = vmatprep.subr.bf16.mxu0 0
  %1658 = vmatpush1.bf16.msra.mxu0 0
  %1659 = vmatprep.subr.bf16.mxu0 0
  %1660 = vmatpush1.bf16.msra.mxu0 0
  %1661 = vmatprep.subr.bf16.mxu0 0
  %1662 = vmatpush1.bf16.msra.mxu0 0
  %1663 = vmatprep.subr.bf16.mxu0 0
  %1664 = vmatpush1.bf16.msra.mxu0 0
  %1665 = vmatprep.subr.bf16.mxu0 0
  %1666 = vmatpush1.bf16.msra.mxu0 0
  %1667 = vmatprep.subr.bf16.mxu0 0
  %1668 = vmatpush1.bf16.msra.mxu0 0
  %1669 = vmatprep.subr.bf16.mxu0 0
  %1670 = vmatpush1.bf16.msra.mxu0 0
  %1671 = vmatprep.mubr.bf16.mxu0 0
  %1672 = vmatmul.mubr.bf16.gmra.mrb[0].mxu0 %v1570
  %v1673 = vpop.f32.mrb[0].mxu0
  %v1674 = vadd.f32 0.0, %v1673
  %v1675 = vpop.f32.mrb[0].mxu0
  %v1676 = vpop.f32.mrb[0].mxu0
  %v1677 = vadd.f32 0.0, %v1676
  %v1678 = vpop.f32.mrb[0].mxu0
  %1679 = vmatprep.mubr.bf16.mxu0 0
  %1680 = vmatmul.mubr.bf16.gmra.mrb[0].mxu0 %v1571
  %v1681 = vpop.f32.mrb[0].mxu0
  %v1682 = vadd.f32 0.0, %v1681
  %v1683 = vpop.f32.mrb[0].mxu0
  %v1684 = vpop.f32.mrb[0].mxu0
  %v1685 = vadd.f32 0.0, %v1684
  %v1686 = vpop.f32.mrb[0].mxu0
  %1687 = vmatprep.mubr.bf16.mxu0 0
  %1688 = vmatmul.mubr.bf16.gmra.mrb[0].mxu0 %v1572
  %v1689 = vpop.f32.mrb[0].mxu0
  %v1690 = vadd.f32 0.0, %v1689
  %v1691 = vpop.f32.mrb[0].mxu0
  %v1692 = vpop.f32.mrb[0].mxu0
  %v1693 = vadd.f32 0.0, %v1692
  %v1694 = vpop.f32.mrb[0].mxu0
  %1695 = vmatprep.mubr.bf16.mxu0 0
  %1696 = vmatmul.mubr.bf16.gmra.mrb[0].mxu0 %v1573
  %v1697 = vpop.f32.mrb[0].mxu0
  %v1698 = vadd.f32 0.0, %v1697
  %v1699 = vpop.f32.mrb[0].mxu0
  %v1700 = vpop.f32.mrb[0].mxu0
  %v1701 = vadd.f32 0.0, %v1700
  %v1702 = vpop.f32.mrb[0].mxu0
  %1703 = vdwg.mxu0
  %v1720 = vunpack.c.l.b16 %v1554
  %v1721 = vunpack.c.l.b16 %v1555
  %v1722 = vunpack.c.l.b16 %v1556
  %v1723 = vunpack.c.l.b16 %v1557
  %v1724 = vunpack.c.l.b16 %v1558
  %v1725 = vunpack.c.l.b16 %v1559
  %v1726 = vunpack.c.l.b16 %v1560
  %v1727 = vunpack.c.l.b16 %v1561
  %v1728 = vunpack.c.l.b16 %v1562
  %v1729 = vunpack.c.l.b16 %v1563
  %v1730 = vunpack.c.l.b16 %v1564
  %v1731 = vunpack.c.l.b16 %v1565
  %v1732 = vunpack.c.l.b16 %v1566
  %v1733 = vunpack.c.l.b16 %v1567
  %v1734 = vunpack.c.l.b16 %v1568
  %v1735 = vunpack.c.l.b16 %v1569
  %v1736 = vpack.c.b16 %v1721, %v1720
  %v1737 = vpack.c.b16 %v1723, %v1722
  %v1738 = vpack.c.b16 %v1725, %v1724
  %v1739 = vpack.c.b16 %v1727, %v1726
  %v1740 = vpack.c.b16 %v1729, %v1728
  %v1741 = vpack.c.b16 %v1731, %v1730
  %v1742 = vpack.c.b16 %v1733, %v1732
  %v1743 = vpack.c.b16 %v1735, %v1734
  %1752 = vmatprep.subr.bf16.mxu0 0
  %1753 = vmatpush1.bf16.msra.mxu0 %v1736
  %1754 = vmatprep.subr.bf16.mxu0 0
  %1755 = vmatpush1.bf16.msra.mxu0 %v1737
  %1756 = vmatprep.subr.bf16.mxu0 0
  %1757 = vmatpush1.bf16.msra.mxu0 %v1738
  %1758 = vmatprep.subr.bf16.mxu0 0
  %1759 = vmatpush1.bf16.msra.mxu0 %v1739
  %1760 = vmatprep.subr.bf16.mxu0 0
  %1761 = vmatpush1.bf16.msra.mxu0 %v1740
  %1762 = vmatprep.subr.bf16.mxu0 0
  %1763 = vmatpush1.bf16.msra.mxu0 %v1741
  %1764 = vmatprep.subr.bf16.mxu0 0
  %1765 = vmatpush1.bf16.msra.mxu0 %v1742
  %1766 = vmatprep.subr.bf16.mxu0 0
  %1767 = vmatpush1.bf16.msra.mxu0 %v1743
  %1768 = vmatprep.subr.bf16.mxu0 0
  %1769 = vmatpush1.bf16.msra.mxu0 0
  %1770 = vmatprep.subr.bf16.mxu0 0
  %1771 = vmatpush1.bf16.msra.mxu0 0
  %1772 = vmatprep.subr.bf16.mxu0 0
  %1773 = vmatpush1.bf16.msra.mxu0 0
  %1774 = vmatprep.subr.bf16.mxu0 0
  %1775 = vmatpush1.bf16.msra.mxu0 0
  %1776 = vmatprep.subr.bf16.mxu0 0
  %1777 = vmatpush1.bf16.msra.mxu0 0
  %1778 = vmatprep.subr.bf16.mxu0 0
  %1779 = vmatpush1.bf16.msra.mxu0 0
  %1780 = vmatprep.subr.bf16.mxu0 0
  %1781 = vmatpush1.bf16.msra.mxu0 0
  %1782 = vmatprep.subr.bf16.mxu0 0
  %1783 = vmatpush1.bf16.msra.mxu0 0
  %1784 = vmatprep.mubr.bf16.mxu0 0
  %1785 = vmatmul.mubr.bf16.gmra.mrb[0].mxu0 %v1550
  %v1786 = vpop.f32.mrb[0].mxu0
  %v1787 = vadd.f32 %v1674, %v1786
  %v1788 = vpop.f32.mrb[0].mxu0
  %v1789 = vpop.f32.mrb[0].mxu0
  %v1790 = vadd.f32 %v1677, %v1789
  %v1791 = vpop.f32.mrb[0].mxu0
  %1792 = vmatprep.mubr.bf16.mxu0 0
  %1793 = vmatmul.mubr.bf16.gmra.mrb[0].mxu0 %v1551
  %v1794 = vpop.f32.mrb[0].mxu0
  %v1795 = vadd.f32 %v1682, %v1794
  %v1796 = vpop.f32.mrb[0].mxu0
  %v1797 = vpop.f32.mrb[0].mxu0
  %v1798 = vadd.f32 %v1685, %v1797
  %v1799 = vpop.f32.mrb[0].mxu0
  %1800 = vmatprep.mubr.bf16.mxu0 0
  %1801 = vmatmul.mubr.bf16.gmra.mrb[0].mxu0 %v1552
  %v1802 = vpop.f32.mrb[0].mxu0
  %v1803 = vadd.f32 %v1690, %v1802
  %v1804 = vpop.f32.mrb[0].mxu0
  %v1805 = vpop.f32.mrb[0].mxu0
  %v1806 = vadd.f32 %v1693, %v1805
  %v1807 = vpop.f32.mrb[0].mxu0
  %1808 = vmatprep.mubr.bf16.mxu0 0
  %1809 = vmatmul.mubr.bf16.gmra.mrb[0].mxu0 %v1553
  %v1810 = vpop.f32.mrb[0].mxu0
  %v1811 = vadd.f32 %v1698, %v1810
  %v1812 = vpop.f32.mrb[0].mxu0
  %v1813 = vpop.f32.mrb[0].mxu0
  %v1814 = vadd.f32 %v1701, %v1813
  %v1815 = vpop.f32.mrb[0].mxu0
  %1816 = vdwg.mxu0
  %v1817 = vpack.c.bf16 %v1543, %v1542
  %v1818 = vpack.c.bf16 %v1545, %v1544
  %v1819 = vpack.c.bf16 %v1547, %v1546
  %v1820 = vpack.c.bf16 %v1549, %v1548
  %s1821 = scalar_lea.vmem %s5, 128
  %v1822 = vld [vmem:[%s1821] sm:$0xf]
  %v1823 = vld [vmem:[%s1821 + $0x4] sm:$0xf]
  %v1824 = vld [vmem:[%s1821 + $0x8] sm:$0xf]
  %v1825 = vld [vmem:[%s1821 + $0xc] sm:$0xf]
  %v1826 = vld [vmem:[%s1821 + $0x10] sm:$0xf]
  %v1827 = vld [vmem:[%s1821 + $0x14] sm:$0xf]
  %v1828 = vld [vmem:[%s1821 + $0x18] sm:$0xf]
  %v1829 = vld [vmem:[%s1821 + $0x1c] sm:$0xf]
  %v1830 = vld [vmem:[%s1821 + $0x20] sm:$0xf]
  %v1831 = vld [vmem:[%s1821 + $0x24] sm:$0xf]
  %v1832 = vld [vmem:[%s1821 + $0x28] sm:$0xf]
  %v1833 = vld [vmem:[%s1821 + $0x2c] sm:$0xf]
  %v1834 = vld [vmem:[%s1821 + $0x30] sm:$0xf]
  %v1835 = vld [vmem:[%s1821 + $0x34] sm:$0xf]
  %v1836 = vld [vmem:[%s1821 + $0x38] sm:$0xf]
  %v1837 = vld [vmem:[%s1821 + $0x3c] sm:$0xf]
  %v1854 = vunpack.c.l.b16 %v1822
  %v1855 = vunpack.c.l.b16 %v1823
  %v1856 = vunpack.c.l.b16 %v1824
  %v1857 = vunpack.c.l.b16 %v1825
  %v1858 = vunpack.c.l.b16 %v1826
  %v1859 = vunpack.c.l.b16 %v1827
  %v1860 = vunpack.c.l.b16 %v1828
  %v1861 = vunpack.c.l.b16 %v1829
  %v1862 = vunpack.c.l.b16 %v1830
  %v1863 = vunpack.c.l.b16 %v1831
  %v1864 = vunpack.c.l.b16 %v1832
  %v1865 = vunpack.c.l.b16 %v1833
  %v1866 = vunpack.c.l.b16 %v1834
  %v1867 = vunpack.c.l.b16 %v1835
  %v1868 = vunpack.c.l.b16 %v1836
  %v1869 = vunpack.c.l.b16 %v1837
  %v1870 = vpack.c.b16 %v1855, %v1854
  %v1871 = vpack.c.b16 %v1857, %v1856
  %v1872 = vpack.c.b16 %v1859, %v1858
  %v1873 = vpack.c.b16 %v1861, %v1860
  %v1874 = vpack.c.b16 %v1863, %v1862
  %v1875 = vpack.c.b16 %v1865, %v1864
  %v1876 = vpack.c.b16 %v1867, %v1866
  %v1877 = vpack.c.b16 %v1869, %v1868
  %1886 = vmatprep.subr.bf16.mxu0 0
  %1887 = vmatpush1.bf16.msra.mxu0 %v1870
  %1888 = vmatprep.subr.bf16.mxu0 0
  %1889 = vmatpush1.bf16.msra.mxu0 %v1871
  %1890 = vmatprep.subr.bf16.mxu0 0
  %1891 = vmatpush1.bf16.msra.mxu0 %v1872
  %1892 = vmatprep.subr.bf16.mxu0 0
  %1893 = vmatpush1.bf16.msra.mxu0 %v1873
  %1894 = vmatprep.subr.bf16.mxu0 0
  %1895 = vmatpush1.bf16.msra.mxu0 %v1874
  %1896 = vmatprep.subr.bf16.mxu0 0
  %1897 = vmatpush1.bf16.msra.mxu0 %v1875
  %1898 = vmatprep.subr.bf16.mxu0 0
  %1899 = vmatpush1.bf16.msra.mxu0 %v1876
  %1900 = vmatprep.subr.bf16.mxu0 0
  %1901 = vmatpush1.bf16.msra.mxu0 %v1877
  %1902 = vmatprep.subr.bf16.mxu0 0
  %1903 = vmatpush1.bf16.msra.mxu0 0
  %1904 = vmatprep.subr.bf16.mxu0 0
  %1905 = vmatpush1.bf16.msra.mxu0 0
  %1906 = vmatprep.subr.bf16.mxu0 0
  %1907 = vmatpush1.bf16.msra.mxu0 0
  %1908 = vmatprep.subr.bf16.mxu0 0
  %1909 = vmatpush1.bf16.msra.mxu0 0
  %1910 = vmatprep.subr.bf16.mxu0 0
  %1911 = vmatpush1.bf16.msra.mxu0 0
  %1912 = vmatprep.subr.bf16.mxu0 0
  %1913 = vmatpush1.bf16.msra.mxu0 0
  %1914 = vmatprep.subr.bf16.mxu0 0
  %1915 = vmatpush1.bf16.msra.mxu0 0
  %1916 = vmatprep.subr.bf16.mxu0 0
  %1917 = vmatpush1.bf16.msra.mxu0 0
  %1918 = vmatprep.mubr.bf16.mxu0 0
  %1919 = vmatmul.mubr.bf16.gmra.mrb[0].mxu0 %v1817
  %v1920 = vpop.f32.mrb[0].mxu0
  %v1921 = vadd.f32 0.0, %v1920
  %v1922 = vpop.f32.mrb[0].mxu0
  %v1923 = vpop.f32.mrb[0].mxu0
  %v1924 = vadd.f32 0.0, %v1923
  %v1925 = vpop.f32.mrb[0].mxu0
  %1926 = vmatprep.mubr.bf16.mxu0 0
  %1927 = vmatmul.mubr.bf16.gmra.mrb[0].mxu0 %v1818
  %v1928 = vpop.f32.mrb[0].mxu0
  %v1929 = vadd.f32 0.0, %v1928
  %v1930 = vpop.f32.mrb[0].mxu0
  %v1931 = vpop.f32.mrb[0].mxu0
  %v1932 = vadd.f32 0.0, %v1931
  %v1933 = vpop.f32.mrb[0].mxu0
  %1934 = vmatprep.mubr.bf16.mxu0 0
  %1935 = vmatmul.mubr.bf16.gmra.mrb[0].mxu0 %v1819
  %v1936 = vpop.f32.mrb[0].mxu0
  %v1937 = vadd.f32 0.0, %v1936
  %v1938 = vpop.f32.mrb[0].mxu0
  %v1939 = vpop.f32.mrb[0].mxu0
  %v1940 = vadd.f32 0.0, %v1939
  %v1941 = vpop.f32.mrb[0].mxu0
  %1942 = vmatprep.mubr.bf16.mxu0 0
  %1943 = vmatmul.mubr.bf16.gmra.mrb[0].mxu0 %v1820
  %v1944 = vpop.f32.mrb[0].mxu0
  %v1945 = vadd.f32 0.0, %v1944
  %v1946 = vpop.f32.mrb[0].mxu0
  %v1947 = vpop.f32.mrb[0].mxu0
  %v1948 = vadd.f32 0.0, %v1947
  %v1949 = vpop.f32.mrb[0].mxu0
  %1950 = vdwg.mxu0
  %v1951 = vadd.f32 %v1787, %v1921
  %v1952 = vadd.f32 %v1790, %v1924
  %v1953 = vadd.f32 %v1795, %v1929
  %v1954 = vadd.f32 %v1798, %v1932
  %v1955 = vadd.f32 %v1803, %v1937
  %v1956 = vadd.f32 %v1806, %v1940
  %v1957 = vadd.f32 %v1811, %v1945
  %v1958 = vadd.f32 %v1814, %v1948
  %v1967 = vrot.slane %v1470, 7
  %v1968 = vrot.slane %v1471, 7
  %v1969 = vsel %vm619, %v1967, %v1968
  %v1970 = vrot.slane %v1472, 7
  %v1971 = vsel %vm619, %v1968, %v1970
  %v1972 = vrot.slane %v1473, 7
  %v1973 = vsel %vm619, %v1970, %v1972
  %v1974 = vrot.slane %v1474, 7
  %v1975 = vsel %vm619, %v1972, %v1974
  %v1976 = vrot.slane %v1475, 7
  %v1977 = vsel %vm619, %v1974, %v1976
  %v1978 = vrot.slane %v1476, 7
  %v1979 = vsel %vm619, %v1976, %v1978
  %v1980 = vrot.slane %v1477, 7
  %v1981 = vsel %vm619, %v1978, %v1980
  %v1990 = vsel %vm619, 0.0, %v1967
  %v1991 = vmul.f32 %v1990, %v671
  %v1992 = vmul.f32 %v1969, %v676
  %v1993 = vmul.f32 %v1971, %v681
  %v1994 = vmul.f32 %v1973, %v686
  %v1995 = vmul.f32 %v1975, %v691
  %v1996 = vmul.f32 %v1977, %v696
  %v1997 = vmul.f32 %v1979, %v701
  %v1998 = vmul.f32 %v1981, %v706
  %v1999 = vrot.slane %v1470, 1
  %v2000 = vrot.slane %v1471, 1
  %v2001 = vsel %vm724, %v1999, %v2000
  %v2002 = vrot.slane %v1472, 1
  %v2003 = vsel %vm724, %v2000, %v2002
  %v2004 = vrot.slane %v1473, 1
  %v2005 = vsel %vm724, %v2002, %v2004
  %v2006 = vrot.slane %v1474, 1
  %v2007 = vsel %vm724, %v2004, %v2006
  %v2008 = vrot.slane %v1475, 1
  %v2009 = vsel %vm724, %v2006, %v2008
  %v2010 = vrot.slane %v1476, 1
  %v2011 = vsel %vm724, %v2008, %v2010
  %v2012 = vrot.slane %v1477, 1
  %v2013 = vsel %vm724, %v2010, %v2012
  %v2022 = vsel %vm724, %v2012, 0.0
  %v2023 = vmul.f32 %v2001, %v775
  %v2024 = vmul.f32 %v2003, %v779
  %v2025 = vmul.f32 %v2005, %v783
  %v2026 = vmul.f32 %v2007, %v787
  %v2027 = vmul.f32 %v2009, %v791
  %v2028 = vmul.f32 %v2011, %v795
  %v2029 = vmul.f32 %v2013, %v799
  %v2030 = vmul.f32 %v2022, %v803
  %v2031 = vpack.c.bf16 %v1992, %v1991
  %v2032 = vpack.c.bf16 %v1994, %v1993
  %v2033 = vpack.c.bf16 %v1996, %v1995
  %v2034 = vpack.c.bf16 %v1998, %v1997
  %v2035 = vld [vmem:[%s6] sm:$0xf]
  %v2036 = vld [vmem:[%s6 + $0x4] sm:$0xf]
  %v2037 = vld [vmem:[%s6 + $0x8] sm:$0xf]
  %v2038 = vld [vmem:[%s6 + $0xc] sm:$0xf]
  %v2039 = vld [vmem:[%s6 + $0x10] sm:$0xf]
  %v2040 = vld [vmem:[%s6 + $0x14] sm:$0xf]
  %v2041 = vld [vmem:[%s6 + $0x18] sm:$0xf]
  %v2042 = vld [vmem:[%s6 + $0x1c] sm:$0xf]
  %v2043 = vld [vmem:[%s6 + $0x20] sm:$0xf]
  %v2044 = vld [vmem:[%s6 + $0x24] sm:$0xf]
  %v2045 = vld [vmem:[%s6 + $0x28] sm:$0xf]
  %v2046 = vld [vmem:[%s6 + $0x2c] sm:$0xf]
  %v2047 = vld [vmem:[%s6 + $0x30] sm:$0xf]
  %v2048 = vld [vmem:[%s6 + $0x34] sm:$0xf]
  %v2049 = vld [vmem:[%s6 + $0x38] sm:$0xf]
  %v2050 = vld [vmem:[%s6 + $0x3c] sm:$0xf]
  %v2051 = vpack.c.bf16 %v1471, %v1470
  %v2052 = vpack.c.bf16 %v1473, %v1472
  %v2053 = vpack.c.bf16 %v1475, %v1474
  %v2054 = vpack.c.bf16 %v1477, %v1476
  %s2055 = scalar_lea.vmem %s6, 64
  %v2056 = vld [vmem:[%s2055] sm:$0xf]
  %v2057 = vld [vmem:[%s2055 + $0x4] sm:$0xf]
  %v2058 = vld [vmem:[%s2055 + $0x8] sm:$0xf]
  %v2059 = vld [vmem:[%s2055 + $0xc] sm:$0xf]
  %v2060 = vld [vmem:[%s2055 + $0x10] sm:$0xf]
  %v2061 = vld [vmem:[%s2055 + $0x14] sm:$0xf]
  %v2062 = vld [vmem:[%s2055 + $0x18] sm:$0xf]
  %v2063 = vld [vmem:[%s2055 + $0x1c] sm:$0xf]
  %v2064 = vld [vmem:[%s2055 + $0x20] sm:$0xf]
  %v2065 = vld [vmem:[%s2055 + $0x24] sm:$0xf]
  %v2066 = vld [vmem:[%s2055 + $0x28] sm:$0xf]
  %v2067 = vld [vmem:[%s2055 + $0x2c] sm:$0xf]
  %v2068 = vld [vmem:[%s2055 + $0x30] sm:$0xf]
  %v2069 = vld [vmem:[%s2055 + $0x34] sm:$0xf]
  %v2070 = vld [vmem:[%s2055 + $0x38] sm:$0xf]
  %v2071 = vld [vmem:[%s2055 + $0x3c] sm:$0xf]
  %v2088 = vunpack.c.l.b16 %v2056
  %v2089 = vunpack.c.l.b16 %v2057
  %v2090 = vunpack.c.l.b16 %v2058
  %v2091 = vunpack.c.l.b16 %v2059
  %v2092 = vunpack.c.l.b16 %v2060
  %v2093 = vunpack.c.l.b16 %v2061
  %v2094 = vunpack.c.l.b16 %v2062
  %v2095 = vunpack.c.l.b16 %v2063
  %v2096 = vunpack.c.l.b16 %v2064
  %v2097 = vunpack.c.l.b16 %v2065
  %v2098 = vunpack.c.l.b16 %v2066
  %v2099 = vunpack.c.l.b16 %v2067
  %v2100 = vunpack.c.l.b16 %v2068
  %v2101 = vunpack.c.l.b16 %v2069
  %v2102 = vunpack.c.l.b16 %v2070
  %v2103 = vunpack.c.l.b16 %v2071
  %v2104 = vpack.c.b16 %v2089, %v2088
  %v2105 = vpack.c.b16 %v2091, %v2090
  %v2106 = vpack.c.b16 %v2093, %v2092
  %v2107 = vpack.c.b16 %v2095, %v2094
  %v2108 = vpack.c.b16 %v2097, %v2096
  %v2109 = vpack.c.b16 %v2099, %v2098
  %v2110 = vpack.c.b16 %v2101, %v2100
  %v2111 = vpack.c.b16 %v2103, %v2102
  %2120 = vmatprep.subr.bf16.mxu0 0
  %2121 = vmatpush1.bf16.msra.mxu0 %v2104
  %2122 = vmatprep.subr.bf16.mxu0 0
  %2123 = vmatpush1.bf16.msra.mxu0 %v2105
  %2124 = vmatprep.subr.bf16.mxu0 0
  %2125 = vmatpush1.bf16.msra.mxu0 %v2106
  %2126 = vmatprep.subr.bf16.mxu0 0
  %2127 = vmatpush1.bf16.msra.mxu0 %v2107
  %2128 = vmatprep.subr.bf16.mxu0 0
  %2129 = vmatpush1.bf16.msra.mxu0 %v2108
  %2130 = vmatprep.subr.bf16.mxu0 0
  %2131 = vmatpush1.bf16.msra.mxu0 %v2109
  %2132 = vmatprep.subr.bf16.mxu0 0
  %2133 = vmatpush1.bf16.msra.mxu0 %v2110
  %2134 = vmatprep.subr.bf16.mxu0 0
  %2135 = vmatpush1.bf16.msra.mxu0 %v2111
  %2136 = vmatprep.subr.bf16.mxu0 0
  %2137 = vmatpush1.bf16.msra.mxu0 0
  %2138 = vmatprep.subr.bf16.mxu0 0
  %2139 = vmatpush1.bf16.msra.mxu0 0
  %2140 = vmatprep.subr.bf16.mxu0 0
  %2141 = vmatpush1.bf16.msra.mxu0 0
  %2142 = vmatprep.subr.bf16.mxu0 0
  %2143 = vmatpush1.bf16.msra.mxu0 0
  %2144 = vmatprep.subr.bf16.mxu0 0
  %2145 = vmatpush1.bf16.msra.mxu0 0
  %2146 = vmatprep.subr.bf16.mxu0 0
  %2147 = vmatpush1.bf16.msra.mxu0 0
  %2148 = vmatprep.subr.bf16.mxu0 0
  %2149 = vmatpush1.bf16.msra.mxu0 0
  %2150 = vmatprep.subr.bf16.mxu0 0
  %2151 = vmatpush1.bf16.msra.mxu0 0
  %2152 = vmatprep.mubr.bf16.mxu0 0
  %2153 = vmatmul.mubr.bf16.gmra.mrb[0].mxu0 %v2051
  %v2154 = vpop.f32.mrb[0].mxu0
  %v2155 = vadd.f32 0.0, %v2154
  %v2156 = vpop.f32.mrb[0].mxu0
  %v2157 = vpop.f32.mrb[0].mxu0
  %v2158 = vadd.f32 0.0, %v2157
  %v2159 = vpop.f32.mrb[0].mxu0
  %2160 = vmatprep.mubr.bf16.mxu0 0
  %2161 = vmatmul.mubr.bf16.gmra.mrb[0].mxu0 %v2052
  %v2162 = vpop.f32.mrb[0].mxu0
  %v2163 = vadd.f32 0.0, %v2162
  %v2164 = vpop.f32.mrb[0].mxu0
  %v2165 = vpop.f32.mrb[0].mxu0
  %v2166 = vadd.f32 0.0, %v2165
  %v2167 = vpop.f32.mrb[0].mxu0
  %2168 = vmatprep.mubr.bf16.mxu0 0
  %2169 = vmatmul.mubr.bf16.gmra.mrb[0].mxu0 %v2053
  %v2170 = vpop.f32.mrb[0].mxu0
  %v2171 = vadd.f32 0.0, %v2170
  %v2172 = vpop.f32.mrb[0].mxu0
  %v2173 = vpop.f32.mrb[0].mxu0
  %v2174 = vadd.f32 0.0, %v2173
  %v2175 = vpop.f32.mrb[0].mxu0
  %2176 = vmatprep.mubr.bf16.mxu0 0
  %2177 = vmatmul.mubr.bf16.gmra.mrb[0].mxu0 %v2054
  %v2178 = vpop.f32.mrb[0].mxu0
  %v2179 = vadd.f32 0.0, %v2178
  %v2180 = vpop.f32.mrb[0].mxu0
  %v2181 = vpop.f32.mrb[0].mxu0
  %v2182 = vadd.f32 0.0, %v2181
  %v2183 = vpop.f32.mrb[0].mxu0
  %2184 = vdwg.mxu0
  %v2201 = vunpack.c.l.b16 %v2035
  %v2202 = vunpack.c.l.b16 %v2036
  %v2203 = vunpack.c.l.b16 %v2037
  %v2204 = vunpack.c.l.b16 %v2038
  %v2205 = vunpack.c.l.b16 %v2039
  %v2206 = vunpack.c.l.b16 %v2040
  %v2207 = vunpack.c.l.b16 %v2041
  %v2208 = vunpack.c.l.b16 %v2042
  %v2209 = vunpack.c.l.b16 %v2043
  %v2210 = vunpack.c.l.b16 %v2044
  %v2211 = vunpack.c.l.b16 %v2045
  %v2212 = vunpack.c.l.b16 %v2046
  %v2213 = vunpack.c.l.b16 %v2047
  %v2214 = vunpack.c.l.b16 %v2048
  %v2215 = vunpack.c.l.b16 %v2049
  %v2216 = vunpack.c.l.b16 %v2050
  %v2217 = vpack.c.b16 %v2202, %v2201
  %v2218 = vpack.c.b16 %v2204, %v2203
  %v2219 = vpack.c.b16 %v2206, %v2205
  %v2220 = vpack.c.b16 %v2208, %v2207
  %v2221 = vpack.c.b16 %v2210, %v2209
  %v2222 = vpack.c.b16 %v2212, %v2211
  %v2223 = vpack.c.b16 %v2214, %v2213
  %v2224 = vpack.c.b16 %v2216, %v2215
  %2233 = vmatprep.subr.bf16.mxu0 0
  %2234 = vmatpush1.bf16.msra.mxu0 %v2217
  %2235 = vmatprep.subr.bf16.mxu0 0
  %2236 = vmatpush1.bf16.msra.mxu0 %v2218
  %2237 = vmatprep.subr.bf16.mxu0 0
  %2238 = vmatpush1.bf16.msra.mxu0 %v2219
  %2239 = vmatprep.subr.bf16.mxu0 0
  %2240 = vmatpush1.bf16.msra.mxu0 %v2220
  %2241 = vmatprep.subr.bf16.mxu0 0
  %2242 = vmatpush1.bf16.msra.mxu0 %v2221
  %2243 = vmatprep.subr.bf16.mxu0 0
  %2244 = vmatpush1.bf16.msra.mxu0 %v2222
  %2245 = vmatprep.subr.bf16.mxu0 0
  %2246 = vmatpush1.bf16.msra.mxu0 %v2223
  %2247 = vmatprep.subr.bf16.mxu0 0
  %2248 = vmatpush1.bf16.msra.mxu0 %v2224
  %2249 = vmatprep.subr.bf16.mxu0 0
  %2250 = vmatpush1.bf16.msra.mxu0 0
  %2251 = vmatprep.subr.bf16.mxu0 0
  %2252 = vmatpush1.bf16.msra.mxu0 0
  %2253 = vmatprep.subr.bf16.mxu0 0
  %2254 = vmatpush1.bf16.msra.mxu0 0
  %2255 = vmatprep.subr.bf16.mxu0 0
  %2256 = vmatpush1.bf16.msra.mxu0 0
  %2257 = vmatprep.subr.bf16.mxu0 0
  %2258 = vmatpush1.bf16.msra.mxu0 0
  %2259 = vmatprep.subr.bf16.mxu0 0
  %2260 = vmatpush1.bf16.msra.mxu0 0
  %2261 = vmatprep.subr.bf16.mxu0 0
  %2262 = vmatpush1.bf16.msra.mxu0 0
  %2263 = vmatprep.subr.bf16.mxu0 0
  %2264 = vmatpush1.bf16.msra.mxu0 0
  %2265 = vmatprep.mubr.bf16.mxu0 0
  %2266 = vmatmul.mubr.bf16.gmra.mrb[0].mxu0 %v2031
  %v2267 = vpop.f32.mrb[0].mxu0
  %v2268 = vadd.f32 %v2155, %v2267
  %v2269 = vpop.f32.mrb[0].mxu0
  %v2270 = vpop.f32.mrb[0].mxu0
  %v2271 = vadd.f32 %v2158, %v2270
  %v2272 = vpop.f32.mrb[0].mxu0
  %2273 = vmatprep.mubr.bf16.mxu0 0
  %2274 = vmatmul.mubr.bf16.gmra.mrb[0].mxu0 %v2032
  %v2275 = vpop.f32.mrb[0].mxu0
  %v2276 = vadd.f32 %v2163, %v2275
  %v2277 = vpop.f32.mrb[0].mxu0
  %v2278 = vpop.f32.mrb[0].mxu0
  %v2279 = vadd.f32 %v2166, %v2278
  %v2280 = vpop.f32.mrb[0].mxu0
  %2281 = vmatprep.mubr.bf16.mxu0 0
  %2282 = vmatmul.mubr.bf16.gmra.mrb[0].mxu0 %v2033
  %v2283 = vpop.f32.mrb[0].mxu0
  %v2284 = vadd.f32 %v2171, %v2283
  %v2285 = vpop.f32.mrb[0].mxu0
  %v2286 = vpop.f32.mrb[0].mxu0
  %v2287 = vadd.f32 %v2174, %v2286
  %v2288 = vpop.f32.mrb[0].mxu0
  %2289 = vmatprep.mubr.bf16.mxu0 0
  %2290 = vmatmul.mubr.bf16.gmra.mrb[0].mxu0 %v2034
  %v2291 = vpop.f32.mrb[0].mxu0
  %v2292 = vadd.f32 %v2179, %v2291
  %v2293 = vpop.f32.mrb[0].mxu0
  %v2294 = vpop.f32.mrb[0].mxu0
  %v2295 = vadd.f32 %v2182, %v2294
  %v2296 = vpop.f32.mrb[0].mxu0
  %2297 = vdwg.mxu0
  %v2298 = vpack.c.bf16 %v2024, %v2023
  %v2299 = vpack.c.bf16 %v2026, %v2025
  %v2300 = vpack.c.bf16 %v2028, %v2027
  %v2301 = vpack.c.bf16 %v2030, %v2029
  %s2302 = scalar_lea.vmem %s6, 128
  %v2303 = vld [vmem:[%s2302] sm:$0xf]
  %v2304 = vld [vmem:[%s2302 + $0x4] sm:$0xf]
  %v2305 = vld [vmem:[%s2302 + $0x8] sm:$0xf]
  %v2306 = vld [vmem:[%s2302 + $0xc] sm:$0xf]
  %v2307 = vld [vmem:[%s2302 + $0x10] sm:$0xf]
  %v2308 = vld [vmem:[%s2302 + $0x14] sm:$0xf]
  %v2309 = vld [vmem:[%s2302 + $0x18] sm:$0xf]
  %v2310 = vld [vmem:[%s2302 + $0x1c] sm:$0xf]
  %v2311 = vld [vmem:[%s2302 + $0x20] sm:$0xf]
  %v2312 = vld [vmem:[%s2302 + $0x24] sm:$0xf]
  %v2313 = vld [vmem:[%s2302 + $0x28] sm:$0xf]
  %v2314 = vld [vmem:[%s2302 + $0x2c] sm:$0xf]
  %v2315 = vld [vmem:[%s2302 + $0x30] sm:$0xf]
  %v2316 = vld [vmem:[%s2302 + $0x34] sm:$0xf]
  %v2317 = vld [vmem:[%s2302 + $0x38] sm:$0xf]
  %v2318 = vld [vmem:[%s2302 + $0x3c] sm:$0xf]
  %v2335 = vunpack.c.l.b16 %v2303
  %v2336 = vunpack.c.l.b16 %v2304
  %v2337 = vunpack.c.l.b16 %v2305
  %v2338 = vunpack.c.l.b16 %v2306
  %v2339 = vunpack.c.l.b16 %v2307
  %v2340 = vunpack.c.l.b16 %v2308
  %v2341 = vunpack.c.l.b16 %v2309
  %v2342 = vunpack.c.l.b16 %v2310
  %v2343 = vunpack.c.l.b16 %v2311
  %v2344 = vunpack.c.l.b16 %v2312
  %v2345 = vunpack.c.l.b16 %v2313
  %v2346 = vunpack.c.l.b16 %v2314
  %v2347 = vunpack.c.l.b16 %v2315
  %v2348 = vunpack.c.l.b16 %v2316
  %v2349 = vunpack.c.l.b16 %v2317
  %v2350 = vunpack.c.l.b16 %v2318
  %v2351 = vpack.c.b16 %v2336, %v2335
  %v2352 = vpack.c.b16 %v2338, %v2337
  %v2353 = vpack.c.b16 %v2340, %v2339
  %v2354 = vpack.c.b16 %v2342, %v2341
  %v2355 = vpack.c.b16 %v2344, %v2343
  %v2356 = vpack.c.b16 %v2346, %v2345
  %v2357 = vpack.c.b16 %v2348, %v2347
  %v2358 = vpack.c.b16 %v2350, %v2349
  %2367 = vmatprep.subr.bf16.mxu0 0
  %2368 = vmatpush1.bf16.msra.mxu0 %v2351
  %2369 = vmatprep.subr.bf16.mxu0 0
  %2370 = vmatpush1.bf16.msra.mxu0 %v2352
  %2371 = vmatprep.subr.bf16.mxu0 0
  %2372 = vmatpush1.bf16.msra.mxu0 %v2353
  %2373 = vmatprep.subr.bf16.mxu0 0
  %2374 = vmatpush1.bf16.msra.mxu0 %v2354
  %2375 = vmatprep.subr.bf16.mxu0 0
  %2376 = vmatpush1.bf16.msra.mxu0 %v2355
  %2377 = vmatprep.subr.bf16.mxu0 0
  %2378 = vmatpush1.bf16.msra.mxu0 %v2356
  %2379 = vmatprep.subr.bf16.mxu0 0
  %2380 = vmatpush1.bf16.msra.mxu0 %v2357
  %2381 = vmatprep.subr.bf16.mxu0 0
  %2382 = vmatpush1.bf16.msra.mxu0 %v2358
  %2383 = vmatprep.subr.bf16.mxu0 0
  %2384 = vmatpush1.bf16.msra.mxu0 0
  %2385 = vmatprep.subr.bf16.mxu0 0
  %2386 = vmatpush1.bf16.msra.mxu0 0
  %2387 = vmatprep.subr.bf16.mxu0 0
  %2388 = vmatpush1.bf16.msra.mxu0 0
  %2389 = vmatprep.subr.bf16.mxu0 0
  %2390 = vmatpush1.bf16.msra.mxu0 0
  %2391 = vmatprep.subr.bf16.mxu0 0
  %2392 = vmatpush1.bf16.msra.mxu0 0
  %2393 = vmatprep.subr.bf16.mxu0 0
  %2394 = vmatpush1.bf16.msra.mxu0 0
  %2395 = vmatprep.subr.bf16.mxu0 0
  %2396 = vmatpush1.bf16.msra.mxu0 0
  %2397 = vmatprep.subr.bf16.mxu0 0
  %2398 = vmatpush1.bf16.msra.mxu0 0
  %2399 = vmatprep.mubr.bf16.mxu0 0
  %2400 = vmatmul.mubr.bf16.gmra.mrb[0].mxu0 %v2298
  %v2401 = vpop.f32.mrb[0].mxu0
  %v2402 = vadd.f32 0.0, %v2401
  %v2403 = vpop.f32.mrb[0].mxu0
  %v2404 = vpop.f32.mrb[0].mxu0
  %v2405 = vadd.f32 0.0, %v2404
  %v2406 = vpop.f32.mrb[0].mxu0
  %2407 = vmatprep.mubr.bf16.mxu0 0
  %2408 = vmatmul.mubr.bf16.gmra.mrb[0].mxu0 %v2299
  %v2409 = vpop.f32.mrb[0].mxu0
  %v2410 = vadd.f32 0.0, %v2409
  %v2411 = vpop.f32.mrb[0].mxu0
  %v2412 = vpop.f32.mrb[0].mxu0
  %v2413 = vadd.f32 0.0, %v2412
  %v2414 = vpop.f32.mrb[0].mxu0
  %2415 = vmatprep.mubr.bf16.mxu0 0
  %2416 = vmatmul.mubr.bf16.gmra.mrb[0].mxu0 %v2300
  %v2417 = vpop.f32.mrb[0].mxu0
  %v2418 = vadd.f32 0.0, %v2417
  %v2419 = vpop.f32.mrb[0].mxu0
  %v2420 = vpop.f32.mrb[0].mxu0
  %v2421 = vadd.f32 0.0, %v2420
  %v2422 = vpop.f32.mrb[0].mxu0
  %2423 = vmatprep.mubr.bf16.mxu0 0
  %2424 = vmatmul.mubr.bf16.gmra.mrb[0].mxu0 %v2301
  %v2425 = vpop.f32.mrb[0].mxu0
  %v2426 = vadd.f32 0.0, %v2425
  %v2427 = vpop.f32.mrb[0].mxu0
  %v2428 = vpop.f32.mrb[0].mxu0
  %v2429 = vadd.f32 0.0, %v2428
  %v2430 = vpop.f32.mrb[0].mxu0
  %2431 = vdwg.mxu0
  %v2432 = vadd.f32 %v2268, %v2402
  %v2433 = vadd.f32 %v2271, %v2405
  %v2434 = vadd.f32 %v2276, %v2410
  %v2435 = vadd.f32 %v2279, %v2413
  %v2436 = vadd.f32 %v2284, %v2418
  %v2437 = vadd.f32 %v2287, %v2421
  %v2438 = vadd.f32 %v2292, %v2426
  %v2439 = vadd.f32 %v2295, %v2429
  %v2440 = vadd.f32 %v1951, %v2432
  %v2441 = vadd.f32 %v1952, %v2433
  %v2442 = vadd.f32 %v1953, %v2434
  %v2443 = vadd.f32 %v1954, %v2435
  %v2444 = vadd.f32 %v1955, %v2436
  %v2445 = vadd.f32 %v1956, %v2437
  %v2446 = vadd.f32 %v1957, %v2438
  %v2447 = vadd.f32 %v1958, %v2439
  %v2448 = vlaneseq
  %v2449 = vshrl.u32 %v2448, 7
  %v2450 = vsub.s32 2, %v2449
  %v2451 = vrot.slane %v39, %v2450
  %v2452 = vadd.f32 %v2440, %v2451
  %v2453 = vadd.f32 %v2441, %v2451
  %v2454 = vadd.f32 %v2442, %v2451
  %v2455 = vadd.f32 %v2443, %v2451
  %v2456 = vadd.f32 %v2444, %v2451
  %v2457 = vadd.f32 %v2445, %v2451
  %v2458 = vadd.f32 %v2446, %v2451
  %v2459 = vadd.f32 %v2447, %v2451
  %vm2460 = vcmp.ge.f32.partialorder %v2452, 0.0
  %vm2461 = vcmp.ge.f32.partialorder %v2453, 0.0
  %vm2462 = vcmp.ge.f32.partialorder %v2454, 0.0
  %vm2463 = vcmp.ge.f32.partialorder %v2455, 0.0
  %vm2464 = vcmp.ge.f32.partialorder %v2456, 0.0
  %vm2465 = vcmp.ge.f32.partialorder %v2457, 0.0
  %vm2466 = vcmp.ge.f32.partialorder %v2458, 0.0
  %vm2467 = vcmp.ge.f32.partialorder %v2459, 0.0
  %v2468 = vmul.f32 %v2452, 0.2
  %v2469 = vmul.f32 %v2453, 0.2
  %v2470 = vmul.f32 %v2454, 0.2
  %v2471 = vmul.f32 %v2455, 0.2
  %v2472 = vmul.f32 %v2456, 0.2
  %v2473 = vmul.f32 %v2457, 0.2
  %v2474 = vmul.f32 %v2458, 0.2
  %v2475 = vmul.f32 %v2459, 0.2
  %v2476 = vsel %vm2460, %v2452, %v2468
  %v2477 = vsel %vm2461, %v2453, %v2469
  %v2478 = vsel %vm2462, %v2454, %v2470
  %v2479 = vsel %vm2463, %v2455, %v2471
  %v2480 = vsel %vm2464, %v2456, %v2472
  %v2481 = vsel %vm2465, %v2457, %v2473
  %v2482 = vsel %vm2466, %v2458, %v2474
  %v2483 = vsel %vm2467, %v2459, %v2475
  %v2492 = vrot.slane %v2476, 7
  %v2493 = vrot.slane %v2477, 7
  %v2494 = vsel %vm619, %v2492, %v2493
  %v2495 = vrot.slane %v2478, 7
  %v2496 = vsel %vm619, %v2493, %v2495
  %v2497 = vrot.slane %v2479, 7
  %v2498 = vsel %vm619, %v2495, %v2497
  %v2499 = vrot.slane %v2480, 7
  %v2500 = vsel %vm619, %v2497, %v2499
  %v2501 = vrot.slane %v2481, 7
  %v2502 = vsel %vm619, %v2499, %v2501
  %v2503 = vrot.slane %v2482, 7
  %v2504 = vsel %vm619, %v2501, %v2503
  %v2505 = vrot.slane %v2483, 7
  %v2506 = vsel %vm619, %v2503, %v2505
  %v2515 = vsel %vm619, 0.0, %v2492
  %v2516 = vmul.f32 %v2515, %v671
  %v2517 = vmul.f32 %v2494, %v676
  %v2518 = vmul.f32 %v2496, %v681
  %v2519 = vmul.f32 %v2498, %v686
  %v2520 = vmul.f32 %v2500, %v691
  %v2521 = vmul.f32 %v2502, %v696
  %v2522 = vmul.f32 %v2504, %v701
  %v2523 = vmul.f32 %v2506, %v706
  %v2524 = vrot.slane %v2476, 1
  %v2525 = vrot.slane %v2477, 1
  %v2526 = vsel %vm724, %v2524, %v2525
  %v2527 = vrot.slane %v2478, 1
  %v2528 = vsel %vm724, %v2525, %v2527
  %v2529 = vrot.slane %v2479, 1
  %v2530 = vsel %vm724, %v2527, %v2529
  %v2531 = vrot.slane %v2480, 1
  %v2532 = vsel %vm724, %v2529, %v2531
  %v2533 = vrot.slane %v2481, 1
  %v2534 = vsel %vm724, %v2531, %v2533
  %v2535 = vrot.slane %v2482, 1
  %v2536 = vsel %vm724, %v2533, %v2535
  %v2537 = vrot.slane %v2483, 1
  %v2538 = vsel %vm724, %v2535, %v2537
  %v2547 = vsel %vm724, %v2537, 0.0
  %v2548 = vmul.f32 %v2526, %v775
  %v2549 = vmul.f32 %v2528, %v779
  %v2550 = vmul.f32 %v2530, %v783
  %v2551 = vmul.f32 %v2532, %v787
  %v2552 = vmul.f32 %v2534, %v791
  %v2553 = vmul.f32 %v2536, %v795
  %v2554 = vmul.f32 %v2538, %v799
  %v2555 = vmul.f32 %v2547, %v803
  %v2556 = vpack.c.bf16 %v2517, %v2516
  %v2557 = vpack.c.bf16 %v2519, %v2518
  %v2558 = vpack.c.bf16 %v2521, %v2520
  %v2559 = vpack.c.bf16 %v2523, %v2522
  %v2560 = vld [vmem:[%s7] sm:$0xf]
  %v2561 = vld [vmem:[%s7 + $0x4] sm:$0xf]
  %v2562 = vld [vmem:[%s7 + $0x8] sm:$0xf]
  %v2563 = vld [vmem:[%s7 + $0xc] sm:$0xf]
  %v2564 = vld [vmem:[%s7 + $0x10] sm:$0xf]
  %v2565 = vld [vmem:[%s7 + $0x14] sm:$0xf]
  %v2566 = vld [vmem:[%s7 + $0x18] sm:$0xf]
  %v2567 = vld [vmem:[%s7 + $0x1c] sm:$0xf]
  %v2568 = vld [vmem:[%s7 + $0x20] sm:$0xf]
  %v2569 = vld [vmem:[%s7 + $0x24] sm:$0xf]
  %v2570 = vld [vmem:[%s7 + $0x28] sm:$0xf]
  %v2571 = vld [vmem:[%s7 + $0x2c] sm:$0xf]
  %v2572 = vld [vmem:[%s7 + $0x30] sm:$0xf]
  %v2573 = vld [vmem:[%s7 + $0x34] sm:$0xf]
  %v2574 = vld [vmem:[%s7 + $0x38] sm:$0xf]
  %v2575 = vld [vmem:[%s7 + $0x3c] sm:$0xf]
  %v2576 = vpack.c.bf16 %v2477, %v2476
  %v2577 = vpack.c.bf16 %v2479, %v2478
  %v2578 = vpack.c.bf16 %v2481, %v2480
  %v2579 = vpack.c.bf16 %v2483, %v2482
  %s2580 = scalar_lea.vmem %s7, 64
  %v2581 = vld [vmem:[%s2580] sm:$0xf]
  %v2582 = vld [vmem:[%s2580 + $0x4] sm:$0xf]
  %v2583 = vld [vmem:[%s2580 + $0x8] sm:$0xf]
  %v2584 = vld [vmem:[%s2580 + $0xc] sm:$0xf]
  %v2585 = vld [vmem:[%s2580 + $0x10] sm:$0xf]
  %v2586 = vld [vmem:[%s2580 + $0x14] sm:$0xf]
  %v2587 = vld [vmem:[%s2580 + $0x18] sm:$0xf]
  %v2588 = vld [vmem:[%s2580 + $0x1c] sm:$0xf]
  %v2589 = vld [vmem:[%s2580 + $0x20] sm:$0xf]
  %v2590 = vld [vmem:[%s2580 + $0x24] sm:$0xf]
  %v2591 = vld [vmem:[%s2580 + $0x28] sm:$0xf]
  %v2592 = vld [vmem:[%s2580 + $0x2c] sm:$0xf]
  %v2593 = vld [vmem:[%s2580 + $0x30] sm:$0xf]
  %v2594 = vld [vmem:[%s2580 + $0x34] sm:$0xf]
  %v2595 = vld [vmem:[%s2580 + $0x38] sm:$0xf]
  %v2596 = vld [vmem:[%s2580 + $0x3c] sm:$0xf]
  %v2613 = vunpack.c.l.b16 %v2581
  %v2614 = vunpack.c.l.b16 %v2582
  %v2615 = vunpack.c.l.b16 %v2583
  %v2616 = vunpack.c.l.b16 %v2584
  %v2617 = vunpack.c.l.b16 %v2585
  %v2618 = vunpack.c.l.b16 %v2586
  %v2619 = vunpack.c.l.b16 %v2587
  %v2620 = vunpack.c.l.b16 %v2588
  %v2621 = vunpack.c.l.b16 %v2589
  %v2622 = vunpack.c.l.b16 %v2590
  %v2623 = vunpack.c.l.b16 %v2591
  %v2624 = vunpack.c.l.b16 %v2592
  %v2625 = vunpack.c.l.b16 %v2593
  %v2626 = vunpack.c.l.b16 %v2594
  %v2627 = vunpack.c.l.b16 %v2595
  %v2628 = vunpack.c.l.b16 %v2596
  %v2629 = vpack.c.b16 %v2614, %v2613
  %v2630 = vpack.c.b16 %v2616, %v2615
  %v2631 = vpack.c.b16 %v2618, %v2617
  %v2632 = vpack.c.b16 %v2620, %v2619
  %v2633 = vpack.c.b16 %v2622, %v2621
  %v2634 = vpack.c.b16 %v2624, %v2623
  %v2635 = vpack.c.b16 %v2626, %v2625
  %v2636 = vpack.c.b16 %v2628, %v2627
  %2645 = vmatprep.subr.bf16.mxu0 0
  %2646 = vmatpush1.bf16.msra.mxu0 %v2629
  %2647 = vmatprep.subr.bf16.mxu0 0
  %2648 = vmatpush1.bf16.msra.mxu0 %v2630
  %2649 = vmatprep.subr.bf16.mxu0 0
  %2650 = vmatpush1.bf16.msra.mxu0 %v2631
  %2651 = vmatprep.subr.bf16.mxu0 0
  %2652 = vmatpush1.bf16.msra.mxu0 %v2632
  %2653 = vmatprep.subr.bf16.mxu0 0
  %2654 = vmatpush1.bf16.msra.mxu0 %v2633
  %2655 = vmatprep.subr.bf16.mxu0 0
  %2656 = vmatpush1.bf16.msra.mxu0 %v2634
  %2657 = vmatprep.subr.bf16.mxu0 0
  %2658 = vmatpush1.bf16.msra.mxu0 %v2635
  %2659 = vmatprep.subr.bf16.mxu0 0
  %2660 = vmatpush1.bf16.msra.mxu0 %v2636
  %2661 = vmatprep.subr.bf16.mxu0 0
  %2662 = vmatpush1.bf16.msra.mxu0 0
  %2663 = vmatprep.subr.bf16.mxu0 0
  %2664 = vmatpush1.bf16.msra.mxu0 0
  %2665 = vmatprep.subr.bf16.mxu0 0
  %2666 = vmatpush1.bf16.msra.mxu0 0
  %2667 = vmatprep.subr.bf16.mxu0 0
  %2668 = vmatpush1.bf16.msra.mxu0 0
  %2669 = vmatprep.subr.bf16.mxu0 0
  %2670 = vmatpush1.bf16.msra.mxu0 0
  %2671 = vmatprep.subr.bf16.mxu0 0
  %2672 = vmatpush1.bf16.msra.mxu0 0
  %2673 = vmatprep.subr.bf16.mxu0 0
  %2674 = vmatpush1.bf16.msra.mxu0 0
  %2675 = vmatprep.subr.bf16.mxu0 0
  %2676 = vmatpush1.bf16.msra.mxu0 0
  %2677 = vmatprep.mubr.bf16.mxu0 0
  %2678 = vmatmul.mubr.bf16.gmra.mrb[0].mxu0 %v2576
  %v2679 = vpop.f32.mrb[0].mxu0
  %v2680 = vadd.f32 0.0, %v2679
  %v2681 = vpop.f32.mrb[0].mxu0
  %v2682 = vpop.f32.mrb[0].mxu0
  %v2683 = vadd.f32 0.0, %v2682
  %v2684 = vpop.f32.mrb[0].mxu0
  %2685 = vmatprep.mubr.bf16.mxu0 0
  %2686 = vmatmul.mubr.bf16.gmra.mrb[0].mxu0 %v2577
  %v2687 = vpop.f32.mrb[0].mxu0
  %v2688 = vadd.f32 0.0, %v2687
  %v2689 = vpop.f32.mrb[0].mxu0
  %v2690 = vpop.f32.mrb[0].mxu0
  %v2691 = vadd.f32 0.0, %v2690
  %v2692 = vpop.f32.mrb[0].mxu0
  %2693 = vmatprep.mubr.bf16.mxu0 0
  %2694 = vmatmul.mubr.bf16.gmra.mrb[0].mxu0 %v2578
  %v2695 = vpop.f32.mrb[0].mxu0
  %v2696 = vadd.f32 0.0, %v2695
  %v2697 = vpop.f32.mrb[0].mxu0
  %v2698 = vpop.f32.mrb[0].mxu0
  %v2699 = vadd.f32 0.0, %v2698
  %v2700 = vpop.f32.mrb[0].mxu0
  %2701 = vmatprep.mubr.bf16.mxu0 0
  %2702 = vmatmul.mubr.bf16.gmra.mrb[0].mxu0 %v2579
  %v2703 = vpop.f32.mrb[0].mxu0
  %v2704 = vadd.f32 0.0, %v2703
  %v2705 = vpop.f32.mrb[0].mxu0
  %v2706 = vpop.f32.mrb[0].mxu0
  %v2707 = vadd.f32 0.0, %v2706
  %v2708 = vpop.f32.mrb[0].mxu0
  %2709 = vdwg.mxu0
  %v2726 = vunpack.c.l.b16 %v2560
  %v2727 = vunpack.c.l.b16 %v2561
  %v2728 = vunpack.c.l.b16 %v2562
  %v2729 = vunpack.c.l.b16 %v2563
  %v2730 = vunpack.c.l.b16 %v2564
  %v2731 = vunpack.c.l.b16 %v2565
  %v2732 = vunpack.c.l.b16 %v2566
  %v2733 = vunpack.c.l.b16 %v2567
  %v2734 = vunpack.c.l.b16 %v2568
  %v2735 = vunpack.c.l.b16 %v2569
  %v2736 = vunpack.c.l.b16 %v2570
  %v2737 = vunpack.c.l.b16 %v2571
  %v2738 = vunpack.c.l.b16 %v2572
  %v2739 = vunpack.c.l.b16 %v2573
  %v2740 = vunpack.c.l.b16 %v2574
  %v2741 = vunpack.c.l.b16 %v2575
  %v2742 = vpack.c.b16 %v2727, %v2726
  %v2743 = vpack.c.b16 %v2729, %v2728
  %v2744 = vpack.c.b16 %v2731, %v2730
  %v2745 = vpack.c.b16 %v2733, %v2732
  %v2746 = vpack.c.b16 %v2735, %v2734
  %v2747 = vpack.c.b16 %v2737, %v2736
  %v2748 = vpack.c.b16 %v2739, %v2738
  %v2749 = vpack.c.b16 %v2741, %v2740
  %2758 = vmatprep.subr.bf16.mxu0 0
  %2759 = vmatpush1.bf16.msra.mxu0 %v2742
  %2760 = vmatprep.subr.bf16.mxu0 0
  %2761 = vmatpush1.bf16.msra.mxu0 %v2743
  %2762 = vmatprep.subr.bf16.mxu0 0
  %2763 = vmatpush1.bf16.msra.mxu0 %v2744
  %2764 = vmatprep.subr.bf16.mxu0 0
  %2765 = vmatpush1.bf16.msra.mxu0 %v2745
  %2766 = vmatprep.subr.bf16.mxu0 0
  %2767 = vmatpush1.bf16.msra.mxu0 %v2746
  %2768 = vmatprep.subr.bf16.mxu0 0
  %2769 = vmatpush1.bf16.msra.mxu0 %v2747
  %2770 = vmatprep.subr.bf16.mxu0 0
  %2771 = vmatpush1.bf16.msra.mxu0 %v2748
  %2772 = vmatprep.subr.bf16.mxu0 0
  %2773 = vmatpush1.bf16.msra.mxu0 %v2749
  %2774 = vmatprep.subr.bf16.mxu0 0
  %2775 = vmatpush1.bf16.msra.mxu0 0
  %2776 = vmatprep.subr.bf16.mxu0 0
  %2777 = vmatpush1.bf16.msra.mxu0 0
  %2778 = vmatprep.subr.bf16.mxu0 0
  %2779 = vmatpush1.bf16.msra.mxu0 0
  %2780 = vmatprep.subr.bf16.mxu0 0
  %2781 = vmatpush1.bf16.msra.mxu0 0
  %2782 = vmatprep.subr.bf16.mxu0 0
  %2783 = vmatpush1.bf16.msra.mxu0 0
  %2784 = vmatprep.subr.bf16.mxu0 0
  %2785 = vmatpush1.bf16.msra.mxu0 0
  %2786 = vmatprep.subr.bf16.mxu0 0
  %2787 = vmatpush1.bf16.msra.mxu0 0
  %2788 = vmatprep.subr.bf16.mxu0 0
  %2789 = vmatpush1.bf16.msra.mxu0 0
  %2790 = vmatprep.mubr.bf16.mxu0 0
  %2791 = vmatmul.mubr.bf16.gmra.mrb[0].mxu0 %v2556
  %v2792 = vpop.f32.mrb[0].mxu0
  %v2793 = vadd.f32 %v2680, %v2792
  %v2794 = vpop.f32.mrb[0].mxu0
  %v2795 = vpop.f32.mrb[0].mxu0
  %v2796 = vadd.f32 %v2683, %v2795
  %v2797 = vpop.f32.mrb[0].mxu0
  %2798 = vmatprep.mubr.bf16.mxu0 0
  %2799 = vmatmul.mubr.bf16.gmra.mrb[0].mxu0 %v2557
  %v2800 = vpop.f32.mrb[0].mxu0
  %v2801 = vadd.f32 %v2688, %v2800
  %v2802 = vpop.f32.mrb[0].mxu0
  %v2803 = vpop.f32.mrb[0].mxu0
  %v2804 = vadd.f32 %v2691, %v2803
  %v2805 = vpop.f32.mrb[0].mxu0
  %2806 = vmatprep.mubr.bf16.mxu0 0
  %2807 = vmatmul.mubr.bf16.gmra.mrb[0].mxu0 %v2558
  %v2808 = vpop.f32.mrb[0].mxu0
  %v2809 = vadd.f32 %v2696, %v2808
  %v2810 = vpop.f32.mrb[0].mxu0
  %v2811 = vpop.f32.mrb[0].mxu0
  %v2812 = vadd.f32 %v2699, %v2811
  %v2813 = vpop.f32.mrb[0].mxu0
  %2814 = vmatprep.mubr.bf16.mxu0 0
  %2815 = vmatmul.mubr.bf16.gmra.mrb[0].mxu0 %v2559
  %v2816 = vpop.f32.mrb[0].mxu0
  %v2817 = vadd.f32 %v2704, %v2816
  %v2818 = vpop.f32.mrb[0].mxu0
  %v2819 = vpop.f32.mrb[0].mxu0
  %v2820 = vadd.f32 %v2707, %v2819
  %v2821 = vpop.f32.mrb[0].mxu0
  %2822 = vdwg.mxu0
  %v2823 = vpack.c.bf16 %v2549, %v2548
  %v2824 = vpack.c.bf16 %v2551, %v2550
  %v2825 = vpack.c.bf16 %v2553, %v2552
  %v2826 = vpack.c.bf16 %v2555, %v2554
  %s2827 = scalar_lea.vmem %s7, 128
  %v2828 = vld [vmem:[%s2827] sm:$0xf]
  %v2829 = vld [vmem:[%s2827 + $0x4] sm:$0xf]
  %v2830 = vld [vmem:[%s2827 + $0x8] sm:$0xf]
  %v2831 = vld [vmem:[%s2827 + $0xc] sm:$0xf]
  %v2832 = vld [vmem:[%s2827 + $0x10] sm:$0xf]
  %v2833 = vld [vmem:[%s2827 + $0x14] sm:$0xf]
  %v2834 = vld [vmem:[%s2827 + $0x18] sm:$0xf]
  %v2835 = vld [vmem:[%s2827 + $0x1c] sm:$0xf]
  %v2836 = vld [vmem:[%s2827 + $0x20] sm:$0xf]
  %v2837 = vld [vmem:[%s2827 + $0x24] sm:$0xf]
  %v2838 = vld [vmem:[%s2827 + $0x28] sm:$0xf]
  %v2839 = vld [vmem:[%s2827 + $0x2c] sm:$0xf]
  %v2840 = vld [vmem:[%s2827 + $0x30] sm:$0xf]
  %v2841 = vld [vmem:[%s2827 + $0x34] sm:$0xf]
  %v2842 = vld [vmem:[%s2827 + $0x38] sm:$0xf]
  %v2843 = vld [vmem:[%s2827 + $0x3c] sm:$0xf]
  %v2860 = vunpack.c.l.b16 %v2828
  %v2861 = vunpack.c.l.b16 %v2829
  %v2862 = vunpack.c.l.b16 %v2830
  %v2863 = vunpack.c.l.b16 %v2831
  %v2864 = vunpack.c.l.b16 %v2832
  %v2865 = vunpack.c.l.b16 %v2833
  %v2866 = vunpack.c.l.b16 %v2834
  %v2867 = vunpack.c.l.b16 %v2835
  %v2868 = vunpack.c.l.b16 %v2836
  %v2869 = vunpack.c.l.b16 %v2837
  %v2870 = vunpack.c.l.b16 %v2838
  %v2871 = vunpack.c.l.b16 %v2839
  %v2872 = vunpack.c.l.b16 %v2840
  %v2873 = vunpack.c.l.b16 %v2841
  %v2874 = vunpack.c.l.b16 %v2842
  %v2875 = vunpack.c.l.b16 %v2843
  %v2876 = vpack.c.b16 %v2861, %v2860
  %v2877 = vpack.c.b16 %v2863, %v2862
  %v2878 = vpack.c.b16 %v2865, %v2864
  %v2879 = vpack.c.b16 %v2867, %v2866
  %v2880 = vpack.c.b16 %v2869, %v2868
  %v2881 = vpack.c.b16 %v2871, %v2870
  %v2882 = vpack.c.b16 %v2873, %v2872
  %v2883 = vpack.c.b16 %v2875, %v2874
  %2892 = vmatprep.subr.bf16.mxu0 0
  %2893 = vmatpush1.bf16.msra.mxu0 %v2876
  %2894 = vmatprep.subr.bf16.mxu0 0
  %2895 = vmatpush1.bf16.msra.mxu0 %v2877
  %2896 = vmatprep.subr.bf16.mxu0 0
  %2897 = vmatpush1.bf16.msra.mxu0 %v2878
  %2898 = vmatprep.subr.bf16.mxu0 0
  %2899 = vmatpush1.bf16.msra.mxu0 %v2879
  %2900 = vmatprep.subr.bf16.mxu0 0
  %2901 = vmatpush1.bf16.msra.mxu0 %v2880
  %2902 = vmatprep.subr.bf16.mxu0 0
  %2903 = vmatpush1.bf16.msra.mxu0 %v2881
  %2904 = vmatprep.subr.bf16.mxu0 0
  %2905 = vmatpush1.bf16.msra.mxu0 %v2882
  %2906 = vmatprep.subr.bf16.mxu0 0
  %2907 = vmatpush1.bf16.msra.mxu0 %v2883
  %2908 = vmatprep.subr.bf16.mxu0 0
  %2909 = vmatpush1.bf16.msra.mxu0 0
  %2910 = vmatprep.subr.bf16.mxu0 0
  %2911 = vmatpush1.bf16.msra.mxu0 0
  %2912 = vmatprep.subr.bf16.mxu0 0
  %2913 = vmatpush1.bf16.msra.mxu0 0
  %2914 = vmatprep.subr.bf16.mxu0 0
  %2915 = vmatpush1.bf16.msra.mxu0 0
  %2916 = vmatprep.subr.bf16.mxu0 0
  %2917 = vmatpush1.bf16.msra.mxu0 0
  %2918 = vmatprep.subr.bf16.mxu0 0
  %2919 = vmatpush1.bf16.msra.mxu0 0
  %2920 = vmatprep.subr.bf16.mxu0 0
  %2921 = vmatpush1.bf16.msra.mxu0 0
  %2922 = vmatprep.subr.bf16.mxu0 0
  %2923 = vmatpush1.bf16.msra.mxu0 0
  %2924 = vmatprep.mubr.bf16.mxu0 0
  %2925 = vmatmul.mubr.bf16.gmra.mrb[0].mxu0 %v2823
  %v2926 = vpop.f32.mrb[0].mxu0
  %v2927 = vadd.f32 0.0, %v2926
  %v2928 = vpop.f32.mrb[0].mxu0
  %v2929 = vpop.f32.mrb[0].mxu0
  %v2930 = vadd.f32 0.0, %v2929
  %v2931 = vpop.f32.mrb[0].mxu0
  %2932 = vmatprep.mubr.bf16.mxu0 0
  %2933 = vmatmul.mubr.bf16.gmra.mrb[0].mxu0 %v2824
  %v2934 = vpop.f32.mrb[0].mxu0
  %v2935 = vadd.f32 0.0, %v2934
  %v2936 = vpop.f32.mrb[0].mxu0
  %v2937 = vpop.f32.mrb[0].mxu0
  %v2938 = vadd.f32 0.0, %v2937
  %v2939 = vpop.f32.mrb[0].mxu0
  %2940 = vmatprep.mubr.bf16.mxu0 0
  %2941 = vmatmul.mubr.bf16.gmra.mrb[0].mxu0 %v2825
  %v2942 = vpop.f32.mrb[0].mxu0
  %v2943 = vadd.f32 0.0, %v2942
  %v2944 = vpop.f32.mrb[0].mxu0
  %v2945 = vpop.f32.mrb[0].mxu0
  %v2946 = vadd.f32 0.0, %v2945
  %v2947 = vpop.f32.mrb[0].mxu0
  %2948 = vmatprep.mubr.bf16.mxu0 0
  %2949 = vmatmul.mubr.bf16.gmra.mrb[0].mxu0 %v2826
  %v2950 = vpop.f32.mrb[0].mxu0
  %v2951 = vadd.f32 0.0, %v2950
  %v2952 = vpop.f32.mrb[0].mxu0
  %v2953 = vpop.f32.mrb[0].mxu0
  %v2954 = vadd.f32 0.0, %v2953
  %v2955 = vpop.f32.mrb[0].mxu0
  %2956 = vdwg.mxu0
  %v2957 = vadd.f32 %v2793, %v2927
  %v2958 = vadd.f32 %v2796, %v2930
  %v2959 = vadd.f32 %v2801, %v2935
  %v2960 = vadd.f32 %v2804, %v2938
  %v2961 = vadd.f32 %v2809, %v2943
  %v2962 = vadd.f32 %v2812, %v2946
  %v2963 = vadd.f32 %v2817, %v2951
  %v2964 = vadd.f32 %v2820, %v2954
  %v2965 = vlaneseq
  %v2966 = vshrl.u32 %v2965, 7
  %v2967 = vsub.s32 3, %v2966
  %v2968 = vrot.slane %v39, %v2967
  %v2969 = vadd.f32 %v2957, %v2968
  %v2970 = vadd.f32 %v2958, %v2968
  %v2971 = vadd.f32 %v2959, %v2968
  %v2972 = vadd.f32 %v2960, %v2968
  %v2973 = vadd.f32 %v2961, %v2968
  %v2974 = vadd.f32 %v2962, %v2968
  %v2975 = vadd.f32 %v2963, %v2968
  %v2976 = vadd.f32 %v2964, %v2968
  %vm2977 = vcmp.ge.f32.partialorder %v2969, 0.0
  %vm2978 = vcmp.ge.f32.partialorder %v2970, 0.0
  %vm2979 = vcmp.ge.f32.partialorder %v2971, 0.0
  %vm2980 = vcmp.ge.f32.partialorder %v2972, 0.0
  %vm2981 = vcmp.ge.f32.partialorder %v2973, 0.0
  %vm2982 = vcmp.ge.f32.partialorder %v2974, 0.0
  %vm2983 = vcmp.ge.f32.partialorder %v2975, 0.0
  %vm2984 = vcmp.ge.f32.partialorder %v2976, 0.0
  %v2985 = vmul.f32 %v2969, 0.2
  %v2986 = vmul.f32 %v2970, 0.2
  %v2987 = vmul.f32 %v2971, 0.2
  %v2988 = vmul.f32 %v2972, 0.2
  %v2989 = vmul.f32 %v2973, 0.2
  %v2990 = vmul.f32 %v2974, 0.2
  %v2991 = vmul.f32 %v2975, 0.2
  %v2992 = vmul.f32 %v2976, 0.2
  %v2993 = vsel %vm2977, %v2969, %v2985
  %v2994 = vsel %vm2978, %v2970, %v2986
  %v2995 = vsel %vm2979, %v2971, %v2987
  %v2996 = vsel %vm2980, %v2972, %v2988
  %v2997 = vsel %vm2981, %v2973, %v2989
  %v2998 = vsel %vm2982, %v2974, %v2990
  %v2999 = vsel %vm2983, %v2975, %v2991
  %v3000 = vsel %vm2984, %v2976, %v2992
  %v3001 = vld [vmem:[%s8] sm:$0xf]
  %v3002 = vld [vmem:[%s8 + $0x4] sm:$0xf]
  %v3003 = vld [vmem:[%s8 + $0x8] sm:$0xf]
  %v3004 = vld [vmem:[%s8 + $0xc] sm:$0xf]
  %v3005 = vld [vmem:[%s8 + $0x10] sm:$0xf]
  %v3006 = vld [vmem:[%s8 + $0x14] sm:$0xf]
  %v3007 = vld [vmem:[%s8 + $0x18] sm:$0xf]
  %v3008 = vld [vmem:[%s8 + $0x1c] sm:$0xf]
  %v3009 = vld [vmem:[%s8 + $0x20] sm:$0xf]
  %v3010 = vld [vmem:[%s8 + $0x24] sm:$0xf]
  %v3011 = vld [vmem:[%s8 + $0x28] sm:$0xf]
  %v3012 = vld [vmem:[%s8 + $0x2c] sm:$0xf]
  %v3013 = vld [vmem:[%s8 + $0x30] sm:$0xf]
  %v3014 = vld [vmem:[%s8 + $0x34] sm:$0xf]
  %v3015 = vld [vmem:[%s8 + $0x38] sm:$0xf]
  %v3016 = vld [vmem:[%s8 + $0x3c] sm:$0xf]
  %s3017 = scalar_lea.vmem %s8, 64
  %v3018 = vld [vmem:[%s3017] sm:$0xf]
  %v3019 = vld [vmem:[%s3017 + $0x4] sm:$0xf]
  %v3020 = vld [vmem:[%s3017 + $0x8] sm:$0xf]
  %v3021 = vld [vmem:[%s3017 + $0xc] sm:$0xf]
  %v3022 = vld [vmem:[%s3017 + $0x10] sm:$0xf]
  %v3023 = vld [vmem:[%s3017 + $0x14] sm:$0xf]
  %v3024 = vld [vmem:[%s3017 + $0x18] sm:$0xf]
  %v3025 = vld [vmem:[%s3017 + $0x1c] sm:$0xf]
  %v3026 = vld [vmem:[%s3017 + $0x20] sm:$0xf]
  %v3027 = vld [vmem:[%s3017 + $0x24] sm:$0xf]
  %v3028 = vld [vmem:[%s3017 + $0x28] sm:$0xf]
  %v3029 = vld [vmem:[%s3017 + $0x2c] sm:$0xf]
  %v3030 = vld [vmem:[%s3017 + $0x30] sm:$0xf]
  %v3031 = vld [vmem:[%s3017 + $0x34] sm:$0xf]
  %v3032 = vld [vmem:[%s3017 + $0x38] sm:$0xf]
  %v3033 = vld [vmem:[%s3017 + $0x3c] sm:$0xf]
  %v3050 = vunpack.c.l.b16 %v3018
  %v3051 = vunpack.c.l.b16 %v3019
  %v3052 = vunpack.c.l.b16 %v3020
  %v3053 = vunpack.c.l.b16 %v3021
  %v3054 = vunpack.c.l.b16 %v3022
  %v3055 = vunpack.c.l.b16 %v3023
  %v3056 = vunpack.c.l.b16 %v3024
  %v3057 = vunpack.c.l.b16 %v3025
  %v3058 = vunpack.c.l.b16 %v3026
  %v3059 = vunpack.c.l.b16 %v3027
  %v3060 = vunpack.c.l.b16 %v3028
  %v3061 = vunpack.c.l.b16 %v3029
  %v3062 = vunpack.c.l.b16 %v3030
  %v3063 = vunpack.c.l.b16 %v3031
  %v3064 = vunpack.c.l.b16 %v3032
  %v3065 = vunpack.c.l.b16 %v3033
  %v3066 = vpack.c.b16 %v3051, %v3050
  %v3067 = vpack.c.b16 %v3053, %v3052
  %v3068 = vpack.c.b16 %v3055, %v3054
  %v3069 = vpack.c.b16 %v3057, %v3056
  %v3070 = vpack.c.b16 %v3059, %v3058
  %v3071 = vpack.c.b16 %v3061, %v3060
  %v3072 = vpack.c.b16 %v3063, %v3062
  %v3073 = vpack.c.b16 %v3065, %v3064
  %3082 = vmatprep.subr.bf16.mxu0 0
  %3083 = vmatpush1.bf16.msra.mxu0 %v3066
  %3084 = vmatprep.subr.bf16.mxu0 0
  %3085 = vmatpush1.bf16.msra.mxu0 %v3067
  %3086 = vmatprep.subr.bf16.mxu0 0
  %3087 = vmatpush1.bf16.msra.mxu0 %v3068
  %3088 = vmatprep.subr.bf16.mxu0 0
  %3089 = vmatpush1.bf16.msra.mxu0 %v3069
  %3090 = vmatprep.subr.bf16.mxu0 0
  %3091 = vmatpush1.bf16.msra.mxu0 %v3070
  %3092 = vmatprep.subr.bf16.mxu0 0
  %3093 = vmatpush1.bf16.msra.mxu0 %v3071
  %3094 = vmatprep.subr.bf16.mxu0 0
  %3095 = vmatpush1.bf16.msra.mxu0 %v3072
  %3096 = vmatprep.subr.bf16.mxu0 0
  %3097 = vmatpush1.bf16.msra.mxu0 %v3073
  %3098 = vmatprep.subr.bf16.mxu0 0
  %3099 = vmatpush1.bf16.msra.mxu0 0
  %3100 = vmatprep.subr.bf16.mxu0 0
  %3101 = vmatpush1.bf16.msra.mxu0 0
  %3102 = vmatprep.subr.bf16.mxu0 0
  %3103 = vmatpush1.bf16.msra.mxu0 0
  %3104 = vmatprep.subr.bf16.mxu0 0
  %3105 = vmatpush1.bf16.msra.mxu0 0
  %3106 = vmatprep.subr.bf16.mxu0 0
  %3107 = vmatpush1.bf16.msra.mxu0 0
  %3108 = vmatprep.subr.bf16.mxu0 0
  %3109 = vmatpush1.bf16.msra.mxu0 0
  %3110 = vmatprep.subr.bf16.mxu0 0
  %3111 = vmatpush1.bf16.msra.mxu0 0
  %3112 = vmatprep.subr.bf16.mxu0 0
  %3113 = vmatpush1.bf16.msra.mxu0 0
  %3114 = vmatprep.mubr.bf16.mxu0 0
  %3115 = vmatmul.mubr.bf16.gmra.mrb[0].mxu0 %v2051
  %v3116 = vpop.f32.mrb[0].mxu0
  %v3117 = vadd.f32 0.0, %v3116
  %v3118 = vpop.f32.mrb[0].mxu0
  %v3119 = vpop.f32.mrb[0].mxu0
  %v3120 = vadd.f32 0.0, %v3119
  %v3121 = vpop.f32.mrb[0].mxu0
  %3122 = vmatprep.mubr.bf16.mxu0 0
  %3123 = vmatmul.mubr.bf16.gmra.mrb[0].mxu0 %v2052
  %v3124 = vpop.f32.mrb[0].mxu0
  %v3125 = vadd.f32 0.0, %v3124
  %v3126 = vpop.f32.mrb[0].mxu0
  %v3127 = vpop.f32.mrb[0].mxu0
  %v3128 = vadd.f32 0.0, %v3127
  %v3129 = vpop.f32.mrb[0].mxu0
  %3130 = vmatprep.mubr.bf16.mxu0 0
  %3131 = vmatmul.mubr.bf16.gmra.mrb[0].mxu0 %v2053
  %v3132 = vpop.f32.mrb[0].mxu0
  %v3133 = vadd.f32 0.0, %v3132
  %v3134 = vpop.f32.mrb[0].mxu0
  %v3135 = vpop.f32.mrb[0].mxu0
  %v3136 = vadd.f32 0.0, %v3135
  %v3137 = vpop.f32.mrb[0].mxu0
  %3138 = vmatprep.mubr.bf16.mxu0 0
  %3139 = vmatmul.mubr.bf16.gmra.mrb[0].mxu0 %v2054
  %v3140 = vpop.f32.mrb[0].mxu0
  %v3141 = vadd.f32 0.0, %v3140
  %v3142 = vpop.f32.mrb[0].mxu0
  %v3143 = vpop.f32.mrb[0].mxu0
  %v3144 = vadd.f32 0.0, %v3143
  %v3145 = vpop.f32.mrb[0].mxu0
  %3146 = vdwg.mxu0
  %v3163 = vunpack.c.l.b16 %v3001
  %v3164 = vunpack.c.l.b16 %v3002
  %v3165 = vunpack.c.l.b16 %v3003
  %v3166 = vunpack.c.l.b16 %v3004
  %v3167 = vunpack.c.l.b16 %v3005
  %v3168 = vunpack.c.l.b16 %v3006
  %v3169 = vunpack.c.l.b16 %v3007
  %v3170 = vunpack.c.l.b16 %v3008
  %v3171 = vunpack.c.l.b16 %v3009
  %v3172 = vunpack.c.l.b16 %v3010
  %v3173 = vunpack.c.l.b16 %v3011
  %v3174 = vunpack.c.l.b16 %v3012
  %v3175 = vunpack.c.l.b16 %v3013
  %v3176 = vunpack.c.l.b16 %v3014
  %v3177 = vunpack.c.l.b16 %v3015
  %v3178 = vunpack.c.l.b16 %v3016
  %v3179 = vpack.c.b16 %v3164, %v3163
  %v3180 = vpack.c.b16 %v3166, %v3165
  %v3181 = vpack.c.b16 %v3168, %v3167
  %v3182 = vpack.c.b16 %v3170, %v3169
  %v3183 = vpack.c.b16 %v3172, %v3171
  %v3184 = vpack.c.b16 %v3174, %v3173
  %v3185 = vpack.c.b16 %v3176, %v3175
  %v3186 = vpack.c.b16 %v3178, %v3177
  %3195 = vmatprep.subr.bf16.mxu0 0
  %3196 = vmatpush1.bf16.msra.mxu0 %v3179
  %3197 = vmatprep.subr.bf16.mxu0 0
  %3198 = vmatpush1.bf16.msra.mxu0 %v3180
  %3199 = vmatprep.subr.bf16.mxu0 0
  %3200 = vmatpush1.bf16.msra.mxu0 %v3181
  %3201 = vmatprep.subr.bf16.mxu0 0
  %3202 = vmatpush1.bf16.msra.mxu0 %v3182
  %3203 = vmatprep.subr.bf16.mxu0 0
  %3204 = vmatpush1.bf16.msra.mxu0 %v3183
  %3205 = vmatprep.subr.bf16.mxu0 0
  %3206 = vmatpush1.bf16.msra.mxu0 %v3184
  %3207 = vmatprep.subr.bf16.mxu0 0
  %3208 = vmatpush1.bf16.msra.mxu0 %v3185
  %3209 = vmatprep.subr.bf16.mxu0 0
  %3210 = vmatpush1.bf16.msra.mxu0 %v3186
  %3211 = vmatprep.subr.bf16.mxu0 0
  %3212 = vmatpush1.bf16.msra.mxu0 0
  %3213 = vmatprep.subr.bf16.mxu0 0
  %3214 = vmatpush1.bf16.msra.mxu0 0
  %3215 = vmatprep.subr.bf16.mxu0 0
  %3216 = vmatpush1.bf16.msra.mxu0 0
  %3217 = vmatprep.subr.bf16.mxu0 0
  %3218 = vmatpush1.bf16.msra.mxu0 0
  %3219 = vmatprep.subr.bf16.mxu0 0
  %3220 = vmatpush1.bf16.msra.mxu0 0
  %3221 = vmatprep.subr.bf16.mxu0 0
  %3222 = vmatpush1.bf16.msra.mxu0 0
  %3223 = vmatprep.subr.bf16.mxu0 0
  %3224 = vmatpush1.bf16.msra.mxu0 0
  %3225 = vmatprep.subr.bf16.mxu0 0
  %3226 = vmatpush1.bf16.msra.mxu0 0
  %3227 = vmatprep.mubr.bf16.mxu0 0
  %3228 = vmatmul.mubr.bf16.gmra.mrb[0].mxu0 %v1570
  %v3229 = vpop.f32.mrb[0].mxu0
  %v3230 = vadd.f32 %v3117, %v3229
  %v3231 = vpop.f32.mrb[0].mxu0
  %v3232 = vpop.f32.mrb[0].mxu0
  %v3233 = vadd.f32 %v3120, %v3232
  %v3234 = vpop.f32.mrb[0].mxu0
  %3235 = vmatprep.mubr.bf16.mxu0 0
  %3236 = vmatmul.mubr.bf16.gmra.mrb[0].mxu0 %v1571
  %v3237 = vpop.f32.mrb[0].mxu0
  %v3238 = vadd.f32 %v3125, %v3237
  %v3239 = vpop.f32.mrb[0].mxu0
  %v3240 = vpop.f32.mrb[0].mxu0
  %v3241 = vadd.f32 %v3128, %v3240
  %v3242 = vpop.f32.mrb[0].mxu0
  %3243 = vmatprep.mubr.bf16.mxu0 0
  %3244 = vmatmul.mubr.bf16.gmra.mrb[0].mxu0 %v1572
  %v3245 = vpop.f32.mrb[0].mxu0
  %v3246 = vadd.f32 %v3133, %v3245
  %v3247 = vpop.f32.mrb[0].mxu0
  %v3248 = vpop.f32.mrb[0].mxu0
  %v3249 = vadd.f32 %v3136, %v3248
  %v3250 = vpop.f32.mrb[0].mxu0
  %3251 = vmatprep.mubr.bf16.mxu0 0
  %3252 = vmatmul.mubr.bf16.gmra.mrb[0].mxu0 %v1573
  %v3253 = vpop.f32.mrb[0].mxu0
  %v3254 = vadd.f32 %v3141, %v3253
  %v3255 = vpop.f32.mrb[0].mxu0
  %v3256 = vpop.f32.mrb[0].mxu0
  %v3257 = vadd.f32 %v3144, %v3256
  %v3258 = vpop.f32.mrb[0].mxu0
  %3259 = vdwg.mxu0
  %v3260 = vlaneseq
  %v3261 = vshrl.u32 %v3260, 7
  %v3262 = vsub.s32 4, %v3261
  %v3263 = vrot.slane %v39, %v3262
  %v3264 = vadd.f32 %v3230, %v3263
  %v3265 = vadd.f32 %v3233, %v3263
  %v3266 = vadd.f32 %v3238, %v3263
  %v3267 = vadd.f32 %v3241, %v3263
  %v3268 = vadd.f32 %v3246, %v3263
  %v3269 = vadd.f32 %v3249, %v3263
  %v3270 = vadd.f32 %v3254, %v3263
  %v3271 = vadd.f32 %v3257, %v3263
  %v3272 = vadd.f32 %v2993, %v3264
  %v3273 = vadd.f32 %v2994, %v3265
  %v3274 = vadd.f32 %v2995, %v3266
  %v3275 = vadd.f32 %v2996, %v3267
  %v3276 = vadd.f32 %v2997, %v3268
  %v3277 = vadd.f32 %v2998, %v3269
  %v3278 = vadd.f32 %v2999, %v3270
  %v3279 = vadd.f32 %v3000, %v3271
  %v3280 = vpack.c.bf16 %v3273, %v3272
  %v3281 = vpack.c.bf16 %v3275, %v3274
  %v3282 = vpack.c.bf16 %v3277, %v3276
  %v3283 = vpack.c.bf16 %v3279, %v3278
  %v3288 = vunpack.c.l.b16 %v3280
  %v3289 = vunpack.c.h.b16 %v3280
  %v3290 = vunpack.c.l.b16 %v3281
  %v3291 = vunpack.c.h.b16 %v3281
  %v3292 = vunpack.c.l.b16 %v3282
  %v3293 = vunpack.c.h.b16 %v3282
  %v3294 = vunpack.c.l.b16 %v3283
  %v3295 = vunpack.c.h.b16 %v3283
  %v3296 = vpack.c.b16 %v3288, %v3288
  %v3297 = vpack.c.b16 %v3289, %v3289
  %v3298 = vpack.c.b16 %v3290, %v3290
  %v3299 = vpack.c.b16 %v3291, %v3291
  %v3300 = vpack.c.b16 %v3292, %v3292
  %v3301 = vpack.c.b16 %v3293, %v3293
  %v3302 = vpack.c.b16 %v3294, %v3294
  %v3303 = vpack.c.b16 %v3295, %v3295
  %3312 = vst [vmem:[%s11] sm:$0xf] %v3296
  %3313 = vst [vmem:[%s11 + $0x4] sm:$0xf] %v3297
  %3314 = vst [vmem:[%s11 + $0x8] sm:$0xf] %v3298
  %3315 = vst [vmem:[%s11 + $0xc] sm:$0xf] %v3299
  %3316 = vst [vmem:[%s11 + $0x10] sm:$0xf] %v3300
  %3317 = vst [vmem:[%s11 + $0x14] sm:$0xf] %v3301
  %3318 = vst [vmem:[%s11 + $0x18] sm:$0xf] %v3302
  %3319 = vst [vmem:[%s11 + $0x1c] sm:$0xf] %v3303
  // Predicated region
  $region46: #{decoder_forward.3} parent=0 // pred_check
    _
  $region47: #{decoder_forward.3} parent=0 // pred_check_branch
    %3321 = sbr.rel (0) target = $region49
  $region48: #{decoder_forward.3} parent=0 // pred_region
    _
  $region49: #{decoder_forward.3} parent=0 // pred_fallthru
    _
  // Predicated region
  $region50: #{decoder_forward.3} parent=0 // pred_check
    _
  $region51: #{decoder_forward.3} parent=0 // pred_check_branch
    %3323 = sbr.rel (0) target = $region53
  $region52: #{decoder_forward.3} parent=0 // pred_region
    _
  $region53: #{decoder_forward.3} parent=0 // pred_fallthru
    _

</llo_original>
